<compile_context>
chip_gen: v6e
topology: v6e:2x2x1
jax: 0.10.0
libtpu: 0.0.40
codegen_flags: <defaults>
</compile_context>

<pallas_src>
import functools

import jax
import jax.numpy as jnp
from jax.experimental import pallas as pl
from jax.experimental.pallas import tpu as pltpu

EPS = 1e-5
LANE = 128


# ----------------------------------------------------------------------------
# small helpers
# ----------------------------------------------------------------------------
def _round_up(x, m):
    return ((x + m - 1) // m) * m


def _pick_tile(m, target):
    """Largest divisor of m that is a multiple of 8 and <= target; else m."""
    cands = [t for t in range(8, min(m, target) + 1, 8) if m % t == 0]
    return max(cands) if cands else m


def _pick_rows(ho, wo, target_px):
    """Output-row block for the conv stage: divides ho, lane/sublane legal."""
    cands = [r for r in range(1, ho + 1)
             if ho % r == 0 and r * wo <= target_px
             and ((r * wo) % 8 == 0 or r == ho)]
    return max(cands) if cands else ho


def _pad_last(a, target):
    pad = target - a.shape[-1]
    if pad == 0:
        return a
    return jnp.pad(a, [(0, 0)] * (a.ndim - 1) + [(0, pad)])


def _pad_mat(w, rows, cols):
    return jnp.pad(w, ((0, rows - w.shape[0]), (0, cols - w.shape[1])))


def _cparams(sem, block_bytes):
    """dimension_semantics + an explicit VMEM budget derived from the blocks."""
    vmem = int(min(max(2 * block_bytes + (4 << 20), 32 << 20), 64 << 20))
    return pltpu.CompilerParams(dimension_semantics=sem, vmem_limit_bytes=vmem)


# ----------------------------------------------------------------------------
# Kernels
# ----------------------------------------------------------------------------
def _mm_stats_kernel(x_ref, w_ref, y_ref, s_ref, ss_ref):
    """y = x @ w (bf16 operands, f32 accum), bf16 store + f32 BN partial stats."""
    y = jnp.dot(x_ref[...], w_ref[...], preferred_element_type=jnp.float32)
    yq = y.astype(y_ref.dtype)
    y_ref[...] = yq
    yf = yq.astype(jnp.float32)
    s_ref[0] = jnp.sum(yf, axis=0, keepdims=True)
    ss_ref[0] = jnp.sum(yf * yf, axis=0, keepdims=True)


def _bn_relu_kernel(y_ref, scale_ref, shift_ref, h_ref):
    """h = relu(y * scale + shift); f32 math, bf16 output (next matmul operand)."""
    h = y_ref[...].astype(jnp.float32) * scale_ref[...] + shift_ref[...]
    h_ref[...] = jnp.maximum(h, 0.0).astype(h_ref.dtype)


def _conv3x3_kernel(p00_ref, p01_ref, p02_ref, p10_ref, p11_ref, p12_ref,
                    w_ref, y_ref, s_ref, ss_ref, *, rb, wo):
    """3x3 stride-2 pad-1 conv for one image / one block of output rows.

    pRD holds the (row-parity R, column-tap D) plane of the spatially
    zero-padded input, flattened to (1, (ho+1)*wo, C).  Tap (dh, dw) for
    output rows [r0, r0+rb) is the contiguous range
    [(r0 + dh//2)*wo, (r0 + dh//2 + rb)*wo) of plane (dh%2, dw) -- a pure
    offset along the flat row axis, so no relayout copy is materialized.
    The per-block accumulator (rb*wo, C) stays small (no spills).
    """
    planes = ((p00_ref, p01_ref, p02_ref), (p10_ref, p11_ref, p12_ref))
    cp = w_ref.shape[-1]
    j = pl.program_id(1)
    acc = jnp.zeros((rb * wo, cp), jnp.float32)
    for dh in range(3):
        for dw in range(3):
            src = planes[dh % 2][dw]
            start = pl.multiple_of((j * rb + dh // 2) * wo, wo)
            tap = src[0, pl.ds(start, rb * wo), :]
            acc = acc + jnp.dot(tap, w_ref[dh * 3 + dw],
                                preferred_element_type=jnp.float32)
    yq = acc.astype(y_ref.dtype)
    y_ref[0] = yq
    yf = yq.astype(jnp.float32)
    s_ref[0, 0] = jnp.sum(yf, axis=0, keepdims=True)
    ss_ref[0, 0] = jnp.sum(yf * yf, axis=0, keepdims=True)


def _stats3_kernel(y2_ref, sc2_ref, sh2_ref, w3_ref, s_ref, ss_ref):
    """Fused BN2+ReLU apply + convout matmul; emits only BN3 partial stats.

    y3 never leaves registers/VMEM scratch -- it is recomputed in the final
    fused kernel instead of being round-tripped through HBM.
    """
    h2 = jnp.maximum(y2_ref[...].astype(jnp.float32) * sc2_ref[...]
                     + sh2_ref[...], 0.0)
    y3 = jnp.dot(h2.astype(jnp.bfloat16), w3_ref[...],
                 preferred_element_type=jnp.float32)
    s_ref[0] = jnp.sum(y3, axis=0, keepdims=True)
    ss_ref[0] = jnp.sum(y3 * y3, axis=0, keepdims=True)


def _final_kernel(y2_ref, xr_ref, w3_ref, wr_ref, sc2_ref, sh2_ref,
                  sc3_ref, sh3_ref, br_ref, o_ref):
    """relu(BN3(relu(BN2(y2)) @ w3) + xr @ wr + br) per M tile."""
    h2 = jnp.maximum(y2_ref[...].astype(jnp.float32) * sc2_ref[...]
                     + sh2_ref[...], 0.0)
    y3 = jnp.dot(h2.astype(jnp.bfloat16), w3_ref[...],
                 preferred_element_type=jnp.float32)
    main = y3 * sc3_ref[...] + sh3_ref[...]
    res = jnp.dot(xr_ref[...], wr_ref[...], preferred_element_type=jnp.float32)
    o_ref[...] = jnp.maximum(main + res + br_ref[...], 0.0)


# ----------------------------------------------------------------------------
# pallas_call wrappers
# ----------------------------------------------------------------------------
def matmul_stats(x, w, *, m_tile):
    m, k = x.shape
    ncol = w.shape[1]
    tm = _pick_tile(m, m_tile)
    g = m // tm
    blk = 2 * tm * k + 2 * k * ncol + 2 * tm * ncol + 8 * ncol
    return pl.pallas_call(
        _mm_stats_kernel,
        grid=(g,),
        in_specs=[
            pl.BlockSpec((tm, k), lambda i: (i, 0)),
            pl.BlockSpec((k, ncol), lambda i: (0, 0)),      # resident weights
        ],
        out_specs=[
            pl.BlockSpec((tm, ncol), lambda i: (i, 0)),
            pl.BlockSpec((1, 1, ncol), lambda i: (i, 0, 0)),
            pl.BlockSpec((1, 1, ncol), lambda i: (i, 0, 0)),
        ],
        out_shape=[
            jax.ShapeDtypeStruct((m, ncol), jnp.bfloat16),
            jax.ShapeDtypeStruct((g, 1, ncol), jnp.float32),
            jax.ShapeDtypeStruct((g, 1, ncol), jnp.float32),
        ],
        compiler_params=_cparams(("parallel",), blk),
    )(x, w)


def bn_relu_apply(y, scale, shift, *, m_tile):
    m, ncol = y.shape
    tm = _pick_tile(m, m_tile)
    blk = 2 * tm * ncol + 8 * ncol + 2 * tm * ncol
    return pl.pallas_call(
        _bn_relu_kernel,
        grid=(m // tm,),
        in_specs=[
            pl.BlockSpec((tm, ncol), lambda i: (i, 0)),
            pl.BlockSpec((1, ncol), lambda i: (0, 0)),
            pl.BlockSpec((1, ncol), lambda i: (0, 0)),
        ],
        out_specs=pl.BlockSpec((tm, ncol), lambda i: (i, 0)),
        out_shape=jax.ShapeDtypeStruct((m, ncol), jnp.bfloat16),
        compiler_params=_cparams(("parallel",), blk),
    )(y, scale, shift)


def conv3x3_stats(planes, w2, *, n, ho, wo, rb):
    cp = w2.shape[-1]
    nrb = ho // rb
    kern = functools.partial(_conv3x3_kernel, rb=rb, wo=wo)
    p_spec = pl.BlockSpec((1, (ho + 1) * wo, cp), lambda i, j: (i, 0, 0))
    blk = (6 * (ho + 1) * wo * cp * 2 + 9 * cp * cp * 2
           + rb * wo * cp * 2 + 8 * cp)
    return pl.pallas_call(
        kern,
        grid=(n, nrb),
        in_specs=[p_spec] * 6 + [pl.BlockSpec((9, cp, cp),
                                              lambda i, j: (0, 0, 0))],
        out_specs=[
            pl.BlockSpec((1, rb * wo, cp), lambda i, j: (i, j, 0)),
            pl.BlockSpec((1, 1, 1, cp), lambda i, j: (i, j, 0, 0)),
            pl.BlockSpec((1, 1, 1, cp), lambda i, j: (i, j, 0, 0)),
        ],
        out_shape=[
            jax.ShapeDtypeStruct((n, ho * wo, cp), jnp.bfloat16),
            jax.ShapeDtypeStruct((n, nrb, 1, cp), jnp.float32),
            jax.ShapeDtypeStruct((n, nrb, 1, cp), jnp.float32),
        ],
        compiler_params=_cparams(("parallel", "parallel"), blk),
    )(*planes, w2)


def stage3_stats(y2, sc2, sh2, w3, *, m_tile):
    m, cp = y2.shape
    c4p = w3.shape[1]
    tm = _pick_tile(m, m_tile)
    g = m // tm
    blk = 2 * tm * cp + 8 * cp + 2 * cp * c4p + 8 * c4p
    return pl.pallas_call(
        _stats3_kernel,
        grid=(g,),
        in_specs=[
            pl.BlockSpec((tm, cp), lambda i: (i, 0)),
            pl.BlockSpec((1, cp), lambda i: (0, 0)),
            pl.BlockSpec((1, cp), lambda i: (0, 0)),
            pl.BlockSpec((cp, c4p), lambda i: (0, 0)),
        ],
        out_specs=[
            pl.BlockSpec((1, 1, c4p), lambda i: (i, 0, 0)),
            pl.BlockSpec((1, 1, c4p), lambda i: (i, 0, 0)),
        ],
        out_shape=[
            jax.ShapeDtypeStruct((g, 1, c4p), jnp.float32),
            jax.ShapeDtypeStruct((g, 1, c4p), jnp.float32),
        ],
        compiler_params=_cparams(("parallel",), blk),
    )(y2, sc2, sh2, w3)


def final_stage(y2, xr, w3, wr, sc2, sh2, sc3, sh3, br, *, m_tile):
    m, cp = y2.shape
    cinp = xr.shape[1]
    c4p = w3.shape[1]
    tm = _pick_tile(m, m_tile)
    blk = (2 * tm * cp + 2 * tm * cinp + 2 * cp * c4p + 2 * cinp * c4p
           + 8 * cp + 12 * c4p + 4 * tm * c4p)
    return pl.pallas_call(
        _final_kernel,
        grid=(m // tm,),
        in_specs=[
            pl.BlockSpec((tm, cp), lambda i: (i, 0)),
            pl.BlockSpec((tm, cinp), lambda i: (i, 0)),
            pl.BlockSpec((cp, c4p), lambda i: (0, 0)),
            pl.BlockSpec((cinp, c4p), lambda i: (0, 0)),
            pl.BlockSpec((1, cp), lambda i: (0, 0)),
            pl.BlockSpec((1, cp), lambda i: (0, 0)),
            pl.BlockSpec((1, c4p), lambda i: (0, 0)),
            pl.BlockSpec((1, c4p), lambda i: (0, 0)),
            pl.BlockSpec((1, c4p), lambda i: (0, 0)),
        ],
        out_specs=pl.BlockSpec((tm, c4p), lambda i: (i, 0)),
        out_shape=jax.ShapeDtypeStruct((m, c4p), jnp.float32),
        compiler_params=_cparams(("parallel",), blk),
    )(y2, xr, w3, wr, sc2, sh2, sc3, sh3, br)


# ----------------------------------------------------------------------------
# BN finalize (tiny (1, C) vector math on the reduced partial stats)
# ----------------------------------------------------------------------------
def _bn_coeffs(s_part, ss_part, count, gamma, beta, cpad):
    # TODO(synk): E[y^2]-mean^2 in f32 can lose digits for channels with
    # |mean| >> std; switch to centered per-tile stats if tolerance tightens.
    s = jnp.sum(s_part.reshape(-1, cpad), axis=0)
    ss = jnp.sum(ss_part.reshape(-1, cpad), axis=0)
    mean = s / count
    var = jnp.maximum(ss / count - mean * mean, 0.0)   # biased batch variance
    g = _pad_last(gamma, cpad)
    b = _pad_last(beta, cpad)
    scale = g * jax.lax.rsqrt(var + EPS)
    shift = b - mean * scale
    return scale.reshape(1, cpad), shift.reshape(1, cpad)


# ----------------------------------------------------------------------------
# Full bottleneck forward (reduce path: inchannel != 4*channel)
# ----------------------------------------------------------------------------
def bottleneck_forward(x_nchw, p, *, m_tile_narrow=512, m_tile_wide=256,
                       conv_rows=None):
    n, cin, h, w = x_nchw.shape
    # TODO(synk): odd H/W would need a generalized parity split for the 3x3
    # stride-2 stage; even spatial dims assumed here.
    assert h % 2 == 0 and w % 2 == 0, "even spatial dims assumed"
    c = p["w1"].shape[1]
    c4 = 4 * c
    # TODO(synk): identity-shortcut branch (inchannel == 4*channel) not built.
    assert cin != c4, "reduce path assumed (inchannel != 4*channel)"
    cin_p = _round_up(cin, LANE)
    c_p = _round_up(c, LANE)
    c4_p = _round_up(c4, LANE)
    ho, wo = h // 2, w // 2

    # ---- layout plumbing (XLA): NCHW -> NHWC, lane padding, bf16 cast ------
    x = jnp.transpose(x_nchw, (0, 2, 3, 1))
    xb = _pad_last(x, cin_p).astype(jnp.bfloat16)
    x0 = xb.reshape(n * h * w, cin_p)

    # ---- stage 1: convin 1x1 (+BN stats), then BN + ReLU apply -------------
    # conv bias b1 is dropped: a per-channel constant is cancelled by BN.
    w1 = _pad_mat(p["w1"], cin_p, c_p).astype(jnp.bfloat16)
    y1, s1, ss1 = matmul_stats(x0, w1, m_tile=m_tile_narrow)
    sc1, sh1 = _bn_coeffs(s1, ss1, n * h * w, p["g1"], p["be1"], c_p)
    # TODO(synk): BN1+ReLU could be fused into the conv kernel with a
    # per-channel neutral pad value; kept standalone for robustness.
    h1 = bn_relu_apply(y1, sc1, sh1, m_tile=m_tile_narrow)       # bf16

    # ---- stage 2: 3x3 stride-2 conv over 6 (row-parity x col-tap) planes ---
    h1 = h1.reshape(n, h, w, c_p)
    h1p = jnp.pad(h1, ((0, 0), (1, 1), (1, 1), (0, 0)))          # conv padding=1
    planes = [h1p[:, rp::2, dw:dw + 2 * wo:2, :].reshape(n, (ho + 1) * wo, c_p)
              for rp in (0, 1) for dw in (0, 1, 2)]
    w2 = jnp.pad(p["w2"], ((0, 0), (0, 0), (0, c_p - c), (0, c_p - c)))
    w2 = w2.reshape(9, c_p, c_p).astype(jnp.bfloat16)
    rb = conv_rows if conv_rows is not None else _pick_rows(ho, wo, 512)
    assert ho % rb == 0 and ((rb * wo) % 8 == 0 or rb == ho)
    y2, s2, ss2 = conv3x3_stats(planes, w2, n=n, ho=ho, wo=wo, rb=rb)
    sc2, sh2 = _bn_coeffs(s2, ss2, n * ho * wo, p["g2"], p["be2"], c_p)

    # ---- stage 3: fused BN2+ReLU + convout matmul, BN3 stats only ----------
    y2f = y2.reshape(n * ho * wo, c_p)
    w3 = _pad_mat(p["w3"], c_p, c4_p).astype(jnp.bfloat16)
    s3, ss3 = stage3_stats(y2f, sc2, sh2, w3, m_tile=m_tile_wide)
    sc3, sh3 = _bn_coeffs(s3, ss3, n * ho * wo, p["g3"], p["be3"], c4_p)

    # ---- final fused kernel: BN2+ReLU -> convout -> BN3 + residual + ReLU --
    xr = xb[:, 0::2, 0::2, :].reshape(n * ho * wo, cin_p)
    wr = _pad_mat(p["wr"], cin_p, c4_p).astype(jnp.bfloat16)
    br = _pad_last(p["br"], c4_p).reshape(1, c4_p)
    out = final_stage(y2f, xr, w3, wr, sc2, sh2, sc3, sh3, br,
                      m_tile=m_tile_wide)

    out = out[:, :c4].reshape(n, ho, wo, c4)
    return jnp.transpose(out, (0, 3, 1, 2))                      # back to NCHW


# ----------------------------------------------------------------------------
# Parameters (same shapes/semantics as the PyTorch module; conv weights stored
# in matmul layout: 1x1 -> (Cin, Cout); 3x3 -> (kh, kw, Cin, Cout), i.e. the
# torch (Cout, Cin, kh, kw) weight transposed by (2, 3, 1, 0)).
# ----------------------------------------------------------------------------
def init_params(key, inchannel, channel):
    c4 = 4 * channel
    ks = jax.random.split(key, 14)

    def u(k, shape, s=0.2):
        return jax.random.uniform(k, shape, jnp.float32, -s, s)

    return dict(
        w1=u(ks[0], (inchannel, channel)), b1=u(ks[1], (channel,)),
        g1=1.0 + u(ks[2], (channel,)), be1=u(ks[3], (channel,)),
        w2=u(ks[4], (3, 3, channel, channel)), b2=u(ks[5], (channel,)),
        g2=1.0 + u(ks[6], (channel,)), be2=u(ks[7], (channel,)),
        w3=u(ks[8], (channel, c4)), b3=u(ks[9], (c4,)),
        g3=1.0 + u(ks[10], (c4,)), be3=u(ks[11], (c4,)),
        wr=u(ks[12], (inchannel, c4)), br=u(ks[13], (c4,)),
    )


# ----------------------------------------------------------------------------
# Pure-JAX reference (PyTorch math incl. conv biases, mirroring the kernel's
# bf16 casts -- matmul operands and the bf16-stored y1/y2/h1/h2 intermediates
# -- so the comparison isolates structural errors; precision deltas vs pure
# f32 PyTorch are bf16-level, as accepted in the perf review).
# ----------------------------------------------------------------------------
def _bn_train(y, g, be):
    mean = jnp.mean(y, axis=0, keepdims=True)
    var = jnp.mean((y - mean) ** 2, axis=0, keepdims=True)
    return (y - mean) * jax.lax.rsqrt(var + EPS) * g + be


def reference_forward(x_nchw, p):
    n, cin, h, w = x_nchw.shape
    c = p["w1"].shape[1]
    c4 = 4 * c
    ho, wo = h // 2, w // 2
    bf = lambda a: a.astype(jnp.bfloat16).astype(jnp.float32)

    x = jnp.transpose(x_nchw, (0, 2, 3, 1))
    xb = bf(x)

    y1 = bf(xb.reshape(-1, cin) @ bf(p["w1"])) + p["b1"]
    h1 = jnp.maximum(_bn_train(y1, p["g1"], p["be1"]), 0.0)
    h1 = bf(h1).reshape(n, h, w, c)

    h1p = jnp.pad(h1, ((0, 0), (1, 1), (1, 1), (0, 0)))
    w2b = bf(p["w2"])
    y2 = jnp.zeros((n, ho, wo, c), jnp.float32)
    for dh in range(3):
        for dw in range(3):
            tap = h1p[:, dh:dh + 2 * ho:2, dw:dw + 2 * wo:2, :]
            y2 = y2 + jnp.einsum("nhwc,cd->nhwd", tap, w2b[dh, dw])
    y2 = bf(y2.reshape(-1, c)) + p["b2"]
    h2 = bf(jnp.maximum(_bn_train(y2, p["g2"], p["be2"]), 0.0))

    y3 = h2 @ bf(p["w3"]) + p["b3"]
    main = _bn_train(y3, p["g3"], p["be3"])

    xr = xb[:, 0::2, 0::2, :].reshape(-1, cin)
    res = xr @ bf(p["wr"]) + p["br"]
    out = jnp.maximum(main + res, 0.0)
    return jnp.transpose(out.reshape(n, ho, wo, c4), (0, 3, 1, 2))


if __name__ == "__main__":
    key = jax.random.PRNGKey(0)
    inchannel, channel = 4, 4          # inchannel != 4*channel -> reduce path
    N, H, W = 2, 16, 16

    kx, kp = jax.random.split(key)
    x = jax.random.normal(kx, (N, inchannel, H, W), jnp.float32)
    params = init_params(kp, inchannel, channel)

    # Small tiles so the toy shapes exercise multi-tile grids everywhere
    # (real workloads: m_tile_narrow ~512-1024, m_tile_wide ~256-512 depending
    # on generation; conv row block auto-picked for ~512 output pixels).
    fwd = jax.jit(functools.partial(bottleneck_forward,
                                    m_tile_narrow=128, m_tile_wide=64,
                                    conv_rows=4))
    out = jax.block_until_ready(fwd(x, params))
    ref = jax.block_until_ready(reference_forward(x, params))

    assert out.shape == (N, 4 * channel, H // 2, W // 2), out.shape
    err = float(jnp.max(jnp.abs(out - ref)))
    assert err < 3e-2, f"max abs error {err}"
    print("KERNEL_OK")
</pallas_src>

<mosaic_0001>
module attributes {stable_mosaic.version = 11 : i64} {
  func.func @_mm_stats_kernel(%arg0: i32, %arg1: memref<128x128xbf16, #tpu.memory_space<vmem>>, %arg2: memref<128x128xbf16, #tpu.memory_space<vmem>>, %arg3: memref<128x128xbf16, #tpu.memory_space<vmem>>, %arg4: memref<1x1x128xf32, #tpu.memory_space<vmem>>, %arg5: memref<1x1x128xf32, #tpu.memory_space<vmem>>) attributes {dimension_semantics = [#tpu.dimension_semantics<parallel>], iteration_bounds = array<i64: 4>, scalar_prefetch = 0 : i64, scratch_operands = 0 : i64, tpu.core_type = #tpu.core_type<tc>, window_params = [{transform_indices = @transform_0, window_bounds = array<i64: 128, 128>}, {pipeline_mode = #tpu.pipeline_mode<synchronous>, transform_indices = @transform_1, window_bounds = array<i64: 128, 128>}, {transform_indices = @transform_2, window_bounds = array<i64: 128, 128>}, {transform_indices = @transform_3, window_bounds = array<i64: 1, 1, 128>}, {transform_indices = @transform_4, window_bounds = array<i64: 1, 1, 128>}]} {
    %c0 = arith.constant 0 : index
    %c0_0 = arith.constant 0 : index
    %0 = vector.load %arg1[%c0, %c0_0] : memref<128x128xbf16, #tpu.memory_space<vmem>>, vector<128x128xbf16>
    %c0_1 = arith.constant 0 : index
    %c0_2 = arith.constant 0 : index
    %1 = vector.load %arg2[%c0_1, %c0_2] : memref<128x128xbf16, #tpu.memory_space<vmem>>, vector<128x128xbf16>
    %cst = arith.constant dense<0.000000e+00> : vector<128x128xf32>
    %2 = tpu.matmul %0, %1, %cst {dimension_numbers = #tpu.dot_dimension_numbers<[1], [0], [0], [1], [0, 0, 1, 1], [], []>} : vector<128x128xbf16>, vector<128x128xbf16>, vector<128x128xf32> -> vector<128x128xf32>
    %3 = arith.truncf %2 : vector<128x128xf32> to vector<128x128xbf16>
    %c0_3 = arith.constant 0 : index
    %c0_4 = arith.constant 0 : index
    %4 = vector.load %arg3[%c0_3, %c0_4] : memref<128x128xbf16, #tpu.memory_space<vmem>>, vector<128x128xbf16>
    tpu.vector_store %arg3[%c0_3, %c0_4], %3 {strides = array<i32>} : memref<128x128xbf16, #tpu.memory_space<vmem>>, vector<128x128xbf16>,
    %5 = arith.extf %3 : vector<128x128xbf16> to vector<128x128xf32>
    %cst_5 = arith.constant dense<0.000000e+00> : vector<128xf32>
    %6 = vector.multi_reduction <add>, %5, %cst_5 [0] : vector<128x128xf32> to vector<128xf32>
    %7 = vector.shape_cast %6 : vector<128xf32> to vector<1x128xf32>
    %c0_6 = arith.constant 0 : index
    %c0_7 = arith.constant 0 : index
    %c0_8 = arith.constant 0 : index
    %8 = vector.load %arg4[%c0_6, %c0_7, %c0_8] : memref<1x1x128xf32, #tpu.memory_space<vmem>>, vector<1x1x128xf32>
    %9 = vector.shape_cast %8 : vector<1x1x128xf32> to vector<1x128xf32>
    %10 = vector.shape_cast %7 : vector<1x128xf32> to vector<1x1x128xf32>
    tpu.vector_store %arg4[%c0_6, %c0_7, %c0_8], %10 {strides = array<i32>} : memref<1x1x128xf32, #tpu.memory_space<vmem>>, vector<1x1x128xf32>,
    %11 = arith.mulf %5, %5 : vector<128x128xf32>
    %cst_9 = arith.constant dense<0.000000e+00> : vector<128xf32>
    %12 = vector.multi_reduction <add>, %11, %cst_9 [0] : vector<128x128xf32> to vector<128xf32>
    %13 = vector.shape_cast %12 : vector<128xf32> to vector<1x128xf32>
    %c0_10 = arith.constant 0 : index
    %c0_11 = arith.constant 0 : index
    %c0_12 = arith.constant 0 : index
    %14 = vector.load %arg5[%c0_10, %c0_11, %c0_12] : memref<1x1x128xf32, #tpu.memory_space<vmem>>, vector<1x1x128xf32>
    %15 = vector.shape_cast %14 : vector<1x1x128xf32> to vector<1x128xf32>
    %16 = vector.shape_cast %13 : vector<1x128xf32> to vector<1x1x128xf32>
    tpu.vector_store %arg5[%c0_10, %c0_11, %c0_12], %16 {strides = array<i32>} : memref<1x1x128xf32, #tpu.memory_space<vmem>>, vector<1x1x128xf32>,
    return
  }
  func.func @transform_0(%arg0: i32) -> (i32, i32) {
    %c0_i32 = arith.constant 0 : i32
    %c0_i32_0 = arith.constant 0 : i32
    return %arg0, %c0_i32 : i32, i32
  }
  func.func @transform_1(%arg0: i32) -> (i32, i32) {
    %c0_i32 = arith.constant 0 : i32
    %c0_i32_0 = arith.constant 0 : i32
    %c0_i32_1 = arith.constant 0 : i32
    return %c0_i32, %c0_i32_0 : i32, i32
  }
  func.func @transform_2(%arg0: i32) -> (i32, i32) {
    %c0_i32 = arith.constant 0 : i32
    %c0_i32_0 = arith.constant 0 : i32
    return %arg0, %c0_i32 : i32, i32
  }
  func.func @transform_3(%arg0: i32) -> (i32, i32, i32) {
    %c0_i32 = arith.constant 0 : i32
    %c0_i32_0 = arith.constant 0 : i32
    %c0_i32_1 = arith.constant 0 : i32
    return %arg0, %c0_i32, %c0_i32_0 : i32, i32, i32
  }
  func.func @transform_4(%arg0: i32) -> (i32, i32, i32) {
    %c0_i32 = arith.constant 0 : i32
    %c0_i32_0 = arith.constant 0 : i32
    %c0_i32_1 = arith.constant 0 : i32
    return %arg0, %c0_i32, %c0_i32_0 : i32, i32, i32
  }
}

module attributes {stable_mosaic.version = 11 : i64} {
  func.func @_bn_relu_kernel(%arg0: i32, %arg1: memref<128x128xbf16, #tpu.memory_space<vmem>>, %arg2: memref<1x128xf32, #tpu.memory_space<vmem>>, %arg3: memref<1x128xf32, #tpu.memory_space<vmem>>, %arg4: memref<128x128xbf16, #tpu.memory_space<vmem>>) attributes {dimension_semantics = [#tpu.dimension_semantics<parallel>], iteration_bounds = array<i64: 4>, scalar_prefetch = 0 : i64, scratch_operands = 0 : i64, tpu.core_type = #tpu.core_type<tc>, window_params = [{transform_indices = @transform_0, window_bounds = array<i64: 128, 128>}, {pipeline_mode = #tpu.pipeline_mode<synchronous>, transform_indices = @transform_1, window_bounds = array<i64: 1, 128>}, {pipeline_mode = #tpu.pipeline_mode<synchronous>, transform_indices = @transform_2, window_bounds = array<i64: 1, 128>}, {transform_indices = @transform_3, window_bounds = array<i64: 128, 128>}]} {
    %c0 = arith.constant 0 : index
    %c0_0 = arith.constant 0 : index
    %0 = vector.load %arg1[%c0, %c0_0] : memref<128x128xbf16, #tpu.memory_space<vmem>>, vector<128x128xbf16>
    %1 = arith.extf %0 : vector<128x128xbf16> to vector<128x128xf32>
    %c0_1 = arith.constant 0 : index
    %c0_2 = arith.constant 0 : index
    %2 = vector.load %arg2[%c0_1, %c0_2] : memref<1x128xf32, #tpu.memory_space<vmem>>, vector<1x128xf32>
    %3 = vector.broadcast %2 : vector<1x128xf32> to vector<128x128xf32>
    %4 = arith.mulf %1, %3 : vector<128x128xf32>
    %c0_3 = arith.constant 0 : index
    %c0_4 = arith.constant 0 : index
    %5 = vector.load %arg3[%c0_3, %c0_4] : memref<1x128xf32, #tpu.memory_space<vmem>>, vector<1x128xf32>
    %6 = vector.broadcast %5 : vector<1x128xf32> to vector<128x128xf32>
    %7 = arith.addf %4, %6 : vector<128x128xf32>
    %cst = arith.constant 0.000000e+00 : f32
    %8 = vector.broadcast %cst : f32 to vector<128x128xf32>
    %9 = arith.maximumf %7, %8 : vector<128x128xf32>
    %10 = arith.truncf %9 : vector<128x128xf32> to vector<128x128xbf16>
    %c0_5 = arith.constant 0 : index
    %c0_6 = arith.constant 0 : index
    %11 = vector.load %arg4[%c0_5, %c0_6] : memref<128x128xbf16, #tpu.memory_space<vmem>>, vector<128x128xbf16>
    tpu.vector_store %arg4[%c0_5, %c0_6], %10 {strides = array<i32>} : memref<128x128xbf16, #tpu.memory_space<vmem>>, vector<128x128xbf16>,
    return
  }
  func.func @transform_0(%arg0: i32) -> (i32, i32) {
    %c0_i32 = arith.constant 0 : i32
    %c0_i32_0 = arith.constant 0 : i32
    return %arg0, %c0_i32 : i32, i32
  }
  func.func @transform_1(%arg0: i32) -> (i32, i32) {
    %c0_i32 = arith.constant 0 : i32
    %c0_i32_0 = arith.constant 0 : i32
    %c0_i32_1 = arith.constant 0 : i32
    return %c0_i32, %c0_i32_0 : i32, i32
  }
  func.func @transform_2(%arg0: i32) -> (i32, i32) {
    %c0_i32 = arith.constant 0 : i32
    %c0_i32_0 = arith.constant 0 : i32
    %c0_i32_1 = arith.constant 0 : i32
    return %c0_i32, %c0_i32_0 : i32, i32
  }
  func.func @transform_3(%arg0: i32) -> (i32, i32) {
    %c0_i32 = arith.constant 0 : i32
    %c0_i32_0 = arith.constant 0 : i32
    return %arg0, %c0_i32 : i32, i32
  }
}

module attributes {stable_mosaic.version = 11 : i64} {
  func.func @_conv3x3_kernel(%arg0: i32, %arg1: i32, %arg2: memref<1x72x128xbf16, #tpu.memory_space<vmem>>, %arg3: memref<1x72x128xbf16, #tpu.memory_space<vmem>>, %arg4: memref<1x72x128xbf16, #tpu.memory_space<vmem>>, %arg5: memref<1x72x128xbf16, #tpu.memory_space<vmem>>, %arg6: memref<1x72x128xbf16, #tpu.memory_space<vmem>>, %arg7: memref<1x72x128xbf16, #tpu.memory_space<vmem>>, %arg8: memref<9x128x128xbf16, #tpu.memory_space<vmem>>, %arg9: memref<1x32x128xbf16, #tpu.memory_space<vmem>>, %arg10: memref<1x1x1x128xf32, #tpu.memory_space<vmem>>, %arg11: memref<1x1x1x128xf32, #tpu.memory_space<vmem>>) attributes {dimension_semantics = [#tpu.dimension_semantics<parallel>, #tpu.dimension_semantics<parallel>], iteration_bounds = array<i64: 2, 2>, scalar_prefetch = 0 : i64, scratch_operands = 0 : i64, tpu.core_type = #tpu.core_type<tc>, window_params = [{transform_indices = @transform_0, window_bounds = array<i64: 1, 72, 128>}, {transform_indices = @transform_1, window_bounds = array<i64: 1, 72, 128>}, {transform_indices = @transform_2, window_bounds = array<i64: 1, 72, 128>}, {transform_indices = @transform_3, window_bounds = array<i64: 1, 72, 128>}, {transform_indices = @transform_4, window_bounds = array<i64: 1, 72, 128>}, {transform_indices = @transform_5, window_bounds = array<i64: 1, 72, 128>}, {pipeline_mode = #tpu.pipeline_mode<synchronous>, transform_indices = @transform_6, window_bounds = array<i64: 9, 128, 128>}, {transform_indices = @transform_7, window_bounds = array<i64: 1, 32, 128>}, {transform_indices = @transform_8, window_bounds = array<i64: 1, 1, 1, 128>}, {transform_indices = @transform_9, window_bounds = array<i64: 1, 1, 1, 128>}]} {
    %cst = arith.constant 0.000000e+00 : f32
    %0 = vector.broadcast %cst : f32 to vector<32x128xf32>
    %c4_i32 = arith.constant 4 : i32
    %1 = arith.muli %arg1, %c4_i32 : i32
    %c0_i32 = arith.constant 0 : i32
    %2 = arith.addi %1, %c0_i32 : i32
    %c8_i32 = arith.constant 8 : i32
    %3 = arith.muli %2, %c8_i32 : i32
    %4 = tpu.assume_multiple %3, 8 : i32
    %c0 = arith.constant 0 : index
    %5 = arith.index_cast %4 : i32 to index
    %c0_0 = arith.constant 0 : index
    %6 = vector.load %arg2[%c0, %5, %c0_0] : memref<1x72x128xbf16, #tpu.memory_space<vmem>>, vector<1x32x128xbf16>
    %7 = vector.shape_cast %6 : vector<1x32x128xbf16> to vector<32x128xbf16>
    %c0_1 = arith.constant 0 : index
    %c0_2 = arith.constant 0 : index
    %c0_3 = arith.constant 0 : index
    %8 = vector.load %arg8[%c0_1, %c0_2, %c0_3] : memref<9x128x128xbf16, #tpu.memory_space<vmem>>, vector<1x128x128xbf16>
    %9 = vector.shape_cast %8 : vector<1x128x128xbf16> to vector<128x128xbf16>
    %cst_4 = arith.constant dense<0.000000e+00> : vector<32x128xf32>
    %10 = tpu.matmul %7, %9, %cst_4 {dimension_numbers = #tpu.dot_dimension_numbers<[1], [0], [0], [1], [0, 0, 1, 1], [], []>} : vector<32x128xbf16>, vector<128x128xbf16>, vector<32x128xf32> -> vector<32x128xf32>
    %11 = arith.addf %0, %10 : vector<32x128xf32>
    %c4_i32_5 = arith.constant 4 : i32
    %12 = arith.muli %arg1, %c4_i32_5 : i32
    %c0_i32_6 = arith.constant 0 : i32
    %13 = arith.addi %12, %c0_i32_6 : i32
    %c8_i32_7 = arith.constant 8 : i32
    %14 = arith.muli %13, %c8_i32_7 : i32
    %15 = tpu.assume_multiple %14, 8 : i32
    %c0_8 = arith.constant 0 : index
    %16 = arith.index_cast %15 : i32 to index
    %c0_9 = arith.constant 0 : index
    %17 = vector.load %arg3[%c0_8, %16, %c0_9] : memref<1x72x128xbf16, #tpu.memory_space<vmem>>, vector<1x32x128xbf16>
    %18 = vector.shape_cast %17 : vector<1x32x128xbf16> to vector<32x128xbf16>
    %c1 = arith.constant 1 : index
    %c0_10 = arith.constant 0 : index
    %c0_11 = arith.constant 0 : index
    %19 = vector.load %arg8[%c1, %c0_10, %c0_11] : memref<9x128x128xbf16, #tpu.memory_space<vmem>>, vector<1x128x128xbf16>
    %20 = vector.shape_cast %19 : vector<1x128x128xbf16> to vector<128x128xbf16>
    %cst_12 = arith.constant dense<0.000000e+00> : vector<32x128xf32>
    %21 = tpu.matmul %18, %20, %cst_12 {dimension_numbers = #tpu.dot_dimension_numbers<[1], [0], [0], [1], [0, 0, 1, 1], [], []>} : vector<32x128xbf16>, vector<128x128xbf16>, vector<32x128xf32> -> vector<32x128xf32>
    %22 = arith.addf %11, %21 : vector<32x128xf32>
    %c4_i32_13 = arith.constant 4 : i32
    %23 = arith.muli %arg1, %c4_i32_13 : i32
    %c0_i32_14 = arith.constant 0 : i32
    %24 = arith.addi %23, %c0_i32_14 : i32
    %c8_i32_15 = arith.constant 8 : i32
    %25 = arith.muli %24, %c8_i32_15 : i32
    %26 = tpu.assume_multiple %25, 8 : i32
    %c0_16 = arith.constant 0 : index
    %27 = arith.index_cast %26 : i32 to index
    %c0_17 = arith.constant 0 : index
    %28 = vector.load %arg4[%c0_16, %27, %c0_17] : memref<1x72x128xbf16, #tpu.memory_space<vmem>>, vector<1x32x128xbf16>
    %29 = vector.shape_cast %28 : vector<1x32x128xbf16> to vector<32x128xbf16>
    %c2 = arith.constant 2 : index
    %c0_18 = arith.constant 0 : index
    %c0_19 = arith.constant 0 : index
    %30 = vector.load %arg8[%c2, %c0_18, %c0_19] : memref<9x128x128xbf16, #tpu.memory_space<vmem>>, vector<1x128x128xbf16>
    %31 = vector.shape_cast %30 : vector<1x128x128xbf16> to vector<128x128xbf16>
    %cst_20 = arith.constant dense<0.000000e+00> : vector<32x128xf32>
    %32 = tpu.matmul %29, %31, %cst_20 {dimension_numbers = #tpu.dot_dimension_numbers<[1], [0], [0], [1], [0, 0, 1, 1], [], []>} : vector<32x128xbf16>, vector<128x128xbf16>, vector<32x128xf32> -> vector<32x128xf32>
    %33 = arith.addf %22, %32 : vector<32x128xf32>
    %c4_i32_21 = arith.constant 4 : i32
    %34 = arith.muli %arg1, %c4_i32_21 : i32
    %c0_i32_22 = arith.constant 0 : i32
    %35 = arith.addi %34, %c0_i32_22 : i32
    %c8_i32_23 = arith.constant 8 : i32
    %36 = arith.muli %35, %c8_i32_23 : i32
    %37 = tpu.assume_multiple %36, 8 : i32
    %c0_24 = arith.constant 0 : index
    %38 = arith.index_cast %37 : i32 to index
    %c0_25 = arith.constant 0 : index
    %39 = vector.load %arg5[%c0_24, %38, %c0_25] : memref<1x72x128xbf16, #tpu.memory_space<vmem>>, vector<1x32x128xbf16>
    %40 = vector.shape_cast %39 : vector<1x32x128xbf16> to vector<32x128xbf16>
    %c3 = arith.constant 3 : index
    %c0_26 = arith.constant 0 : index
    %c0_27 = arith.constant 0 : index
    %41 = vector.load %arg8[%c3, %c0_26, %c0_27] : memref<9x128x128xbf16, #tpu.memory_space<vmem>>, vector<1x128x128xbf16>
    %42 = vector.shape_cast %41 : vector<1x128x128xbf16> to vector<128x128xbf16>
    %cst_28 = arith.constant dense<0.000000e+00> : vector<32x128xf32>
    %43 = tpu.matmul %40, %42, %cst_28 {dimension_numbers = #tpu.dot_dimension_numbers<[1], [0], [0], [1], [0, 0, 1, 1], [], []>} : vector<32x128xbf16>, vector<128x128xbf16>, vector<32x128xf32> -> vector<32x128xf32>
    %44 = arith.addf %33, %43 : vector<32x128xf32>
    %c4_i32_29 = arith.constant 4 : i32
    %45 = arith.muli %arg1, %c4_i32_29 : i32
    %c0_i32_30 = arith.constant 0 : i32
    %46 = arith.addi %45, %c0_i32_30 : i32
    %c8_i32_31 = arith.constant 8 : i32
    %47 = arith.muli %46, %c8_i32_31 : i32
    %48 = tpu.assume_multiple %47, 8 : i32
    %c0_32 = arith.constant 0 : index
    %49 = arith.index_cast %48 : i32 to index
    %c0_33 = arith.constant 0 : index
    %50 = vector.load %arg6[%c0_32, %49, %c0_33] : memref<1x72x128xbf16, #tpu.memory_space<vmem>>, vector<1x32x128xbf16>
    %51 = vector.shape_cast %50 : vector<1x32x128xbf16> to vector<32x128xbf16>
    %c4 = arith.constant 4 : index
    %c0_34 = arith.constant 0 : index
    %c0_35 = arith.constant 0 : index
    %52 = vector.load %arg8[%c4, %c0_34, %c0_35] : memref<9x128x128xbf16, #tpu.memory_space<vmem>>, vector<1x128x128xbf16>
    %53 = vector.shape_cast %52 : vector<1x128x128xbf16> to vector<128x128xbf16>
    %cst_36 = arith.constant dense<0.000000e+00> : vector<32x128xf32>
    %54 = tpu.matmul %51, %53, %cst_36 {dimension_numbers = #tpu.dot_dimension_numbers<[1], [0], [0], [1], [0, 0, 1, 1], [], []>} : vector<32x128xbf16>, vector<128x128xbf16>, vector<32x128xf32> -> vector<32x128xf32>
    %55 = arith.addf %44, %54 : vector<32x128xf32>
    %c4_i32_37 = arith.constant 4 : i32
    %56 = arith.muli %arg1, %c4_i32_37 : i32
    %c0_i32_38 = arith.constant 0 : i32
    %57 = arith.addi %56, %c0_i32_38 : i32
    %c8_i32_39 = arith.constant 8 : i32
    %58 = arith.muli %57, %c8_i32_39 : i32
    %59 = tpu.assume_multiple %58, 8 : i32
    %c0_40 = arith.constant 0 : index
    %60 = arith.index_cast %59 : i32 to index
    %c0_41 = arith.constant 0 : index
    %61 = vector.load %arg7[%c0_40, %60, %c0_41] : memref<1x72x128xbf16, #tpu.memory_space<vmem>>, vector<1x32x128xbf16>
    %62 = vector.shape_cast %61 : vector<1x32x128xbf16> to vector<32x128xbf16>
    %c5 = arith.constant 5 : index
    %c0_42 = arith.constant 0 : index
    %c0_43 = arith.constant 0 : index
    %63 = vector.load %arg8[%c5, %c0_42, %c0_43] : memref<9x128x128xbf16, #tpu.memory_space<vmem>>, vector<1x128x128xbf16>
    %64 = vector.shape_cast %63 : vector<1x128x128xbf16> to vector<128x128xbf16>
    %cst_44 = arith.constant dense<0.000000e+00> : vector<32x128xf32>
    %65 = tpu.matmul %62, %64, %cst_44 {dimension_numbers = #tpu.dot_dimension_numbers<[1], [0], [0], [1], [0, 0, 1, 1], [], []>} : vector<32x128xbf16>, vector<128x128xbf16>, vector<32x128xf32> -> vector<32x128xf32>
    %66 = arith.addf %55, %65 : vector<32x128xf32>
    %c4_i32_45 = arith.constant 4 : i32
    %67 = arith.muli %arg1, %c4_i32_45 : i32
    %c1_i32 = arith.constant 1 : i32
    %68 = arith.addi %67, %c1_i32 : i32
    %c8_i32_46 = arith.constant 8 : i32
    %69 = arith.muli %68, %c8_i32_46 : i32
    %70 = tpu.assume_multiple %69, 8 : i32
    %c0_47 = arith.constant 0 : index
    %71 = arith.index_cast %70 : i32 to index
    %c0_48 = arith.constant 0 : index
    %72 = vector.load %arg2[%c0_47, %71, %c0_48] : memref<1x72x128xbf16, #tpu.memory_space<vmem>>, vector<1x32x128xbf16>
    %73 = vector.shape_cast %72 : vector<1x32x128xbf16> to vector<32x128xbf16>
    %c6 = arith.constant 6 : index
    %c0_49 = arith.constant 0 : index
    %c0_50 = arith.constant 0 : index
    %74 = vector.load %arg8[%c6, %c0_49, %c0_50] : memref<9x128x128xbf16, #tpu.memory_space<vmem>>, vector<1x128x128xbf16>
    %75 = vector.shape_cast %74 : vector<1x128x128xbf16> to vector<128x128xbf16>
    %cst_51 = arith.constant dense<0.000000e+00> : vector<32x128xf32>
    %76 = tpu.matmul %73, %75, %cst_51 {dimension_numbers = #tpu.dot_dimension_numbers<[1], [0], [0], [1], [0, 0, 1, 1], [], []>} : vector<32x128xbf16>, vector<128x128xbf16>, vector<32x128xf32> -> vector<32x128xf32>
    %77 = arith.addf %66, %76 : vector<32x128xf32>
    %c4_i32_52 = arith.constant 4 : i32
    %78 = arith.muli %arg1, %c4_i32_52 : i32
    %c1_i32_53 = arith.constant 1 : i32
    %79 = arith.addi %78, %c1_i32_53 : i32
    %c8_i32_54 = arith.constant 8 : i32
    %80 = arith.muli %79, %c8_i32_54 : i32
    %81 = tpu.assume_multiple %80, 8 : i32
    %c0_55 = arith.constant 0 : index
    %82 = arith.index_cast %81 : i32 to index
    %c0_56 = arith.constant 0 : index
    %83 = vector.load %arg3[%c0_55, %82, %c0_56] : memref<1x72x128xbf16, #tpu.memory_space<vmem>>, vector<1x32x128xbf16>
    %84 = vector.shape_cast %83 : vector<1x32x128xbf16> to vector<32x128xbf16>
    %c7 = arith.constant 7 : index
    %c0_57 = arith.constant 0 : index
    %c0_58 = arith.constant 0 : index
    %85 = vector.load %arg8[%c7, %c0_57, %c0_58] : memref<9x128x128xbf16, #tpu.memory_space<vmem>>, vector<1x128x128xbf16>
    %86 = vector.shape_cast %85 : vector<1x128x128xbf16> to vector<128x128xbf16>
    %cst_59 = arith.constant dense<0.000000e+00> : vector<32x128xf32>
    %87 = tpu.matmul %84, %86, %cst_59 {dimension_numbers = #tpu.dot_dimension_numbers<[1], [0], [0], [1], [0, 0, 1, 1], [], []>} : vector<32x128xbf16>, vector<128x128xbf16>, vector<32x128xf32> -> vector<32x128xf32>
    %88 = arith.addf %77, %87 : vector<32x128xf32>
    %c4_i32_60 = arith.constant 4 : i32
    %89 = arith.muli %arg1, %c4_i32_60 : i32
    %c1_i32_61 = arith.constant 1 : i32
    %90 = arith.addi %89, %c1_i32_61 : i32
    %c8_i32_62 = arith.constant 8 : i32
    %91 = arith.muli %90, %c8_i32_62 : i32
    %92 = tpu.assume_multiple %91, 8 : i32
    %c0_63 = arith.constant 0 : index
    %93 = arith.index_cast %92 : i32 to index
    %c0_64 = arith.constant 0 : index
    %94 = vector.load %arg4[%c0_63, %93, %c0_64] : memref<1x72x128xbf16, #tpu.memory_space<vmem>>, vector<1x32x128xbf16>
    %95 = vector.shape_cast %94 : vector<1x32x128xbf16> to vector<32x128xbf16>
    %c8 = arith.constant 8 : index
    %c0_65 = arith.constant 0 : index
    %c0_66 = arith.constant 0 : index
    %96 = vector.load %arg8[%c8, %c0_65, %c0_66] : memref<9x128x128xbf16, #tpu.memory_space<vmem>>, vector<1x128x128xbf16>
    %97 = vector.shape_cast %96 : vector<1x128x128xbf16> to vector<128x128xbf16>
    %cst_67 = arith.constant dense<0.000000e+00> : vector<32x128xf32>
    %98 = tpu.matmul %95, %97, %cst_67 {dimension_numbers = #tpu.dot_dimension_numbers<[1], [0], [0], [1], [0, 0, 1, 1], [], []>} : vector<32x128xbf16>, vector<128x128xbf16>, vector<32x128xf32> -> vector<32x128xf32>
    %99 = arith.addf %88, %98 : vector<32x128xf32>
    %100 = arith.truncf %99 : vector<32x128xf32> to vector<32x128xbf16>
    %c0_68 = arith.constant 0 : index
    %c0_69 = arith.constant 0 : index
    %c0_70 = arith.constant 0 : index
    %101 = vector.load %arg9[%c0_68, %c0_69, %c0_70] : memref<1x32x128xbf16, #tpu.memory_space<vmem>>, vector<1x32x128xbf16>
    %102 = vector.shape_cast %101 : vector<1x32x128xbf16> to vector<32x128xbf16>
    %103 = vector.shape_cast %100 : vector<32x128xbf16> to vector<1x32x128xbf16>
    tpu.vector_store %arg9[%c0_68, %c0_69, %c0_70], %103 {strides = array<i32>} : memref<1x32x128xbf16, #tpu.memory_space<vmem>>, vector<1x32x128xbf16>,
    %104 = arith.extf %100 : vector<32x128xbf16> to vector<32x128xf32>
    %cst_71 = arith.constant dense<0.000000e+00> : vector<128xf32>
    %105 = vector.multi_reduction <add>, %104, %cst_71 [0] : vector<32x128xf32> to vector<128xf32>
    %106 = vector.shape_cast %105 : vector<128xf32> to vector<1x128xf32>
    %c0_72 = arith.constant 0 : index
    %c0_73 = arith.constant 0 : index
    %c0_74 = arith.constant 0 : index
    %c0_75 = arith.constant 0 : index
    %107 = vector.load %arg10[%c0_72, %c0_73, %c0_74, %c0_75] : memref<1x1x1x128xf32, #tpu.memory_space<vmem>>, vector<1x1x1x128xf32>
    %108 = vector.shape_cast %107 : vector<1x1x1x128xf32> to vector<1x128xf32>
    %109 = vector.shape_cast %106 : vector<1x128xf32> to vector<1x1x1x128xf32>
    tpu.vector_store %arg10[%c0_72, %c0_73, %c0_74, %c0_75], %109 {strides = array<i32>} : memref<1x1x1x128xf32, #tpu.memory_space<vmem>>, vector<1x1x1x128xf32>,
    %110 = arith.mulf %104, %104 : vector<32x128xf32>
    %cst_76 = arith.constant dense<0.000000e+00> : vector<128xf32>
    %111 = vector.multi_reduction <add>, %110, %cst_76 [0] : vector<32x128xf32> to vector<128xf32>
    %112 = vector.shape_cast %111 : vector<128xf32> to vector<1x128xf32>
    %c0_77 = arith.constant 0 : index
    %c0_78 = arith.constant 0 : index
    %c0_79 = arith.constant 0 : index
    %c0_80 = arith.constant 0 : index
    %113 = vector.load %arg11[%c0_77, %c0_78, %c0_79, %c0_80] : memref<1x1x1x128xf32, #tpu.memory_space<vmem>>, vector<1x1x1x128xf32>
    %114 = vector.shape_cast %113 : vector<1x1x1x128xf32> to vector<1x128xf32>
    %115 = vector.shape_cast %112 : vector<1x128xf32> to vector<1x1x1x128xf32>
    tpu.vector_store %arg11[%c0_77, %c0_78, %c0_79, %c0_80], %115 {strides = array<i32>} : memref<1x1x1x128xf32, #tpu.memory_space<vmem>>, vector<1x1x1x128xf32>,
    return
  }
  func.func @transform_0(%arg0: i32, %arg1: i32) -> (i32, i32, i32) {
    %c0_i32 = arith.constant 0 : i32
    %c0_i32_0 = arith.constant 0 : i32
    %c0_i32_1 = arith.constant 0 : i32
    return %arg0, %c0_i32, %c0_i32_0 : i32, i32, i32
  }
  func.func @transform_1(%arg0: i32, %arg1: i32) -> (i32, i32, i32) {
    %c0_i32 = arith.constant 0 : i32
    %c0_i32_0 = arith.constant 0 : i32
    %c0_i32_1 = arith.constant 0 : i32
    return %arg0, %c0_i32, %c0_i32_0 : i32, i32, i32
  }
  func.func @transform_2(%arg0: i32, %arg1: i32) -> (i32, i32, i32) {
    %c0_i32 = arith.constant 0 : i32
    %c0_i32_0 = arith.constant 0 : i32
    %c0_i32_1 = arith.constant 0 : i32
    return %arg0, %c0_i32, %c0_i32_0 : i32, i32, i32
  }
  func.func @transform_3(%arg0: i32, %arg1: i32) -> (i32, i32, i32) {
    %c0_i32 = arith.constant 0 : i32
    %c0_i32_0 = arith.constant 0 : i32
    %c0_i32_1 = arith.constant 0 : i32
    return %arg0, %c0_i32, %c0_i32_0 : i32, i32, i32
  }
  func.func @transform_4(%arg0: i32, %arg1: i32) -> (i32, i32, i32) {
    %c0_i32 = arith.constant 0 : i32
    %c0_i32_0 = arith.constant 0 : i32
    %c0_i32_1 = arith.constant 0 : i32
    return %arg0, %c0_i32, %c0_i32_0 : i32, i32, i32
  }
  func.func @transform_5(%arg0: i32, %arg1: i32) -> (i32, i32, i32) {
    %c0_i32 = arith.constant 0 : i32
    %c0_i32_0 = arith.constant 0 : i32
    %c0_i32_1 = arith.constant 0 : i32
    return %arg0, %c0_i32, %c0_i32_0 : i32, i32, i32
  }
  func.func @transform_6(%arg0: i32, %arg1: i32) -> (i32, i32, i32) {
    %c0_i32 = arith.constant 0 : i32
    %c0_i32_0 = arith.constant 0 : i32
    %c0_i32_1 = arith.constant 0 : i32
    %c0_i32_2 = arith.constant 0 : i32
    return %c0_i32, %c0_i32_0, %c0_i32_1 : i32, i32, i32
  }
  func.func @transform_7(%arg0: i32, %arg1: i32) -> (i32, i32, i32) {
    %c0_i32 = arith.constant 0 : i32
    %c0_i32_0 = arith.constant 0 : i32
    return %arg0, %arg1, %c0_i32 : i32, i32, i32
  }
  func.func @transform_8(%arg0: i32, %arg1: i32) -> (i32, i32, i32, i32) {
    %c0_i32 = arith.constant 0 : i32
    %c0_i32_0 = arith.constant 0 : i32
    %c0_i32_1 = arith.constant 0 : i32
    return %arg0, %arg1, %c0_i32, %c0_i32_0 : i32, i32, i32, i32
  }
  func.func @transform_9(%arg0: i32, %arg1: i32) -> (i32, i32, i32, i32) {
    %c0_i32 = arith.constant 0 : i32
    %c0_i32_0 = arith.constant 0 : i32
    %c0_i32_1 = arith.constant 0 : i32
    return %arg0, %arg1, %c0_i32, %c0_i32_0 : i32, i32, i32, i32
  }
}

module attributes {stable_mosaic.version = 11 : i64} {
  func.func @_stats3_kernel(%arg0: i32, %arg1: memref<64x128xbf16, #tpu.memory_space<vmem>>, %arg2: memref<1x128xf32, #tpu.memory_space<vmem>>, %arg3: memref<1x128xf32, #tpu.memory_space<vmem>>, %arg4: memref<128x128xbf16, #tpu.memory_space<vmem>>, %arg5: memref<1x1x128xf32, #tpu.memory_space<vmem>>, %arg6: memref<1x1x128xf32, #tpu.memory_space<vmem>>) attributes {dimension_semantics = [#tpu.dimension_semantics<parallel>], iteration_bounds = array<i64: 2>, scalar_prefetch = 0 : i64, scratch_operands = 0 : i64, tpu.core_type = #tpu.core_type<tc>, window_params = [{transform_indices = @transform_0, window_bounds = array<i64: 64, 128>}, {pipeline_mode = #tpu.pipeline_mode<synchronous>, transform_indices = @transform_1, window_bounds = array<i64: 1, 128>}, {pipeline_mode = #tpu.pipeline_mode<synchronous>, transform_indices = @transform_2, window_bounds = array<i64: 1, 128>}, {pipeline_mode = #tpu.pipeline_mode<synchronous>, transform_indices = @transform_3, window_bounds = array<i64: 128, 128>}, {transform_indices = @transform_4, window_bounds = array<i64: 1, 1, 128>}, {transform_indices = @transform_5, window_bounds = array<i64: 1, 1, 128>}]} {
    %c0 = arith.constant 0 : index
    %c0_0 = arith.constant 0 : index
    %0 = vector.load %arg1[%c0, %c0_0] : memref<64x128xbf16, #tpu.memory_space<vmem>>, vector<64x128xbf16>
    %1 = arith.extf %0 : vector<64x128xbf16> to vector<64x128xf32>
    %c0_1 = arith.constant 0 : index
    %c0_2 = arith.constant 0 : index
    %2 = vector.load %arg2[%c0_1, %c0_2] : memref<1x128xf32, #tpu.memory_space<vmem>>, vector<1x128xf32>
    %3 = vector.broadcast %2 : vector<1x128xf32> to vector<64x128xf32>
    %4 = arith.mulf %1, %3 : vector<64x128xf32>
    %c0_3 = arith.constant 0 : index
    %c0_4 = arith.constant 0 : index
    %5 = vector.load %arg3[%c0_3, %c0_4] : memref<1x128xf32, #tpu.memory_space<vmem>>, vector<1x128xf32>
    %6 = vector.broadcast %5 : vector<1x128xf32> to vector<64x128xf32>
    %7 = arith.addf %4, %6 : vector<64x128xf32>
    %cst = arith.constant 0.000000e+00 : f32
    %8 = vector.broadcast %cst : f32 to vector<64x128xf32>
    %9 = arith.maximumf %7, %8 : vector<64x128xf32>
    %10 = arith.truncf %9 : vector<64x128xf32> to vector<64x128xbf16>
    %c0_5 = arith.constant 0 : index
    %c0_6 = arith.constant 0 : index
    %11 = vector.load %arg4[%c0_5, %c0_6] : memref<128x128xbf16, #tpu.memory_space<vmem>>, vector<128x128xbf16>
    %cst_7 = arith.constant dense<0.000000e+00> : vector<64x128xf32>
    %12 = tpu.matmul %10, %11, %cst_7 {dimension_numbers = #tpu.dot_dimension_numbers<[1], [0], [0], [1], [0, 0, 1, 1], [], []>} : vector<64x128xbf16>, vector<128x128xbf16>, vector<64x128xf32> -> vector<64x128xf32>
    %cst_8 = arith.constant dense<0.000000e+00> : vector<128xf32>
    %13 = vector.multi_reduction <add>, %12, %cst_8 [0] : vector<64x128xf32> to vector<128xf32>
    %14 = vector.shape_cast %13 : vector<128xf32> to vector<1x128xf32>
    %c0_9 = arith.constant 0 : index
    %c0_10 = arith.constant 0 : index
    %c0_11 = arith.constant 0 : index
    %15 = vector.load %arg5[%c0_9, %c0_10, %c0_11] : memref<1x1x128xf32, #tpu.memory_space<vmem>>, vector<1x1x128xf32>
    %16 = vector.shape_cast %15 : vector<1x1x128xf32> to vector<1x128xf32>
    %17 = vector.shape_cast %14 : vector<1x128xf32> to vector<1x1x128xf32>
    tpu.vector_store %arg5[%c0_9, %c0_10, %c0_11], %17 {strides = array<i32>} : memref<1x1x128xf32, #tpu.memory_space<vmem>>, vector<1x1x128xf32>,
    %18 = arith.mulf %12, %12 : vector<64x128xf32>
    %cst_12 = arith.constant dense<0.000000e+00> : vector<128xf32>
    %19 = vector.multi_reduction <add>, %18, %cst_12 [0] : vector<64x128xf32> to vector<128xf32>
    %20 = vector.shape_cast %19 : vector<128xf32> to vector<1x128xf32>
    %c0_13 = arith.constant 0 : index
    %c0_14 = arith.constant 0 : index
    %c0_15 = arith.constant 0 : index
    %21 = vector.load %arg6[%c0_13, %c0_14, %c0_15] : memref<1x1x128xf32, #tpu.memory_space<vmem>>, vector<1x1x128xf32>
    %22 = vector.shape_cast %21 : vector<1x1x128xf32> to vector<1x128xf32>
    %23 = vector.shape_cast %20 : vector<1x128xf32> to vector<1x1x128xf32>
    tpu.vector_store %arg6[%c0_13, %c0_14, %c0_15], %23 {strides = array<i32>} : memref<1x1x128xf32, #tpu.memory_space<vmem>>, vector<1x1x128xf32>,
    return
  }
  func.func @transform_0(%arg0: i32) -> (i32, i32) {
    %c0_i32 = arith.constant 0 : i32
    %c0_i32_0 = arith.constant 0 : i32
    return %arg0, %c0_i32 : i32, i32
  }
  func.func @transform_1(%arg0: i32) -> (i32, i32) {
    %c0_i32 = arith.constant 0 : i32
    %c0_i32_0 = arith.constant 0 : i32
    %c0_i32_1 = arith.constant 0 : i32
    return %c0_i32, %c0_i32_0 : i32, i32
  }
  func.func @transform_2(%arg0: i32) -> (i32, i32) {
    %c0_i32 = arith.constant 0 : i32
    %c0_i32_0 = arith.constant 0 : i32
    %c0_i32_1 = arith.constant 0 : i32
    return %c0_i32, %c0_i32_0 : i32, i32
  }
  func.func @transform_3(%arg0: i32) -> (i32, i32) {
    %c0_i32 = arith.constant 0 : i32
    %c0_i32_0 = arith.constant 0 : i32
    %c0_i32_1 = arith.constant 0 : i32
    return %c0_i32, %c0_i32_0 : i32, i32
  }
  func.func @transform_4(%arg0: i32) -> (i32, i32, i32) {
    %c0_i32 = arith.constant 0 : i32
    %c0_i32_0 = arith.constant 0 : i32
    %c0_i32_1 = arith.constant 0 : i32
    return %arg0, %c0_i32, %c0_i32_0 : i32, i32, i32
  }
  func.func @transform_5(%arg0: i32) -> (i32, i32, i32) {
    %c0_i32 = arith.constant 0 : i32
    %c0_i32_0 = arith.constant 0 : i32
    %c0_i32_1 = arith.constant 0 : i32
    return %arg0, %c0_i32, %c0_i32_0 : i32, i32, i32
  }
}

module attributes {stable_mosaic.version = 11 : i64} {
  func.func @_final_kernel(%arg0: i32, %arg1: memref<64x128xbf16, #tpu.memory_space<vmem>>, %arg2: memref<64x128xbf16, #tpu.memory_space<vmem>>, %arg3: memref<128x128xbf16, #tpu.memory_space<vmem>>, %arg4: memref<128x128xbf16, #tpu.memory_space<vmem>>, %arg5: memref<1x128xf32, #tpu.memory_space<vmem>>, %arg6: memref<1x128xf32, #tpu.memory_space<vmem>>, %arg7: memref<1x128xf32, #tpu.memory_space<vmem>>, %arg8: memref<1x128xf32, #tpu.memory_space<vmem>>, %arg9: memref<1x128xf32, #tpu.memory_space<vmem>>, %arg10: memref<64x128xf32, #tpu.memory_space<vmem>>) attributes {dimension_semantics = [#tpu.dimension_semantics<parallel>], iteration_bounds = array<i64: 2>, scalar_prefetch = 0 : i64, scratch_operands = 0 : i64, tpu.core_type = #tpu.core_type<tc>, window_params = [{transform_indices = @transform_0, window_bounds = array<i64: 64, 128>}, {transform_indices = @transform_1, window_bounds = array<i64: 64, 128>}, {pipeline_mode = #tpu.pipeline_mode<synchronous>, transform_indices = @transform_2, window_bounds = array<i64: 128, 128>}, {pipeline_mode = #tpu.pipeline_mode<synchronous>, transform_indices = @transform_3, window_bounds = array<i64: 128, 128>}, {pipeline_mode = #tpu.pipeline_mode<synchronous>, transform_indices = @transform_4, window_bounds = array<i64: 1, 128>}, {pipeline_mode = #tpu.pipeline_mode<synchronous>, transform_indices = @transform_5, window_bounds = array<i64: 1, 128>}, {pipeline_mode = #tpu.pipeline_mode<synchronous>, transform_indices = @transform_6, window_bounds = array<i64: 1, 128>}, {pipeline_mode = #tpu.pipeline_mode<synchronous>, transform_indices = @transform_7, window_bounds = array<i64: 1, 128>}, {pipeline_mode = #tpu.pipeline_mode<synchronous>, transform_indices = @transform_8, window_bounds = array<i64: 1, 128>}, {transform_indices = @transform_9, window_bounds = array<i64: 64, 128>}]} {
    %c0 = arith.constant 0 : index
    %c0_0 = arith.constant 0 : index
    %0 = vector.load %arg1[%c0, %c0_0] : memref<64x128xbf16, #tpu.memory_space<vmem>>, vector<64x128xbf16>
    %1 = arith.extf %0 : vector<64x128xbf16> to vector<64x128xf32>
    %c0_1 = arith.constant 0 : index
    %c0_2 = arith.constant 0 : index
    %2 = vector.load %arg5[%c0_1, %c0_2] : memref<1x128xf32, #tpu.memory_space<vmem>>, vector<1x128xf32>
    %3 = vector.broadcast %2 : vector<1x128xf32> to vector<64x128xf32>
    %4 = arith.mulf %1, %3 : vector<64x128xf32>
    %c0_3 = arith.constant 0 : index
    %c0_4 = arith.constant 0 : index
    %5 = vector.load %arg6[%c0_3, %c0_4] : memref<1x128xf32, #tpu.memory_space<vmem>>, vector<1x128xf32>
    %6 = vector.broadcast %5 : vector<1x128xf32> to vector<64x128xf32>
    %7 = arith.addf %4, %6 : vector<64x128xf32>
    %cst = arith.constant 0.000000e+00 : f32
    %8 = vector.broadcast %cst : f32 to vector<64x128xf32>
    %9 = arith.maximumf %7, %8 : vector<64x128xf32>
    %10 = arith.truncf %9 : vector<64x128xf32> to vector<64x128xbf16>
    %c0_5 = arith.constant 0 : index
    %c0_6 = arith.constant 0 : index
    %11 = vector.load %arg3[%c0_5, %c0_6] : memref<128x128xbf16, #tpu.memory_space<vmem>>, vector<128x128xbf16>
    %cst_7 = arith.constant dense<0.000000e+00> : vector<64x128xf32>
    %12 = tpu.matmul %10, %11, %cst_7 {dimension_numbers = #tpu.dot_dimension_numbers<[1], [0], [0], [1], [0, 0, 1, 1], [], []>} : vector<64x128xbf16>, vector<128x128xbf16>, vector<64x128xf32> -> vector<64x128xf32>
    %c0_8 = arith.constant 0 : index
    %c0_9 = arith.constant 0 : index
    %13 = vector.load %arg7[%c0_8, %c0_9] : memref<1x128xf32, #tpu.memory_space<vmem>>, vector<1x128xf32>
    %14 = vector.broadcast %13 : vector<1x128xf32> to vector<64x128xf32>
    %15 = arith.mulf %12, %14 : vector<64x128xf32>
    %c0_10 = arith.constant 0 : index
    %c0_11 = arith.constant 0 : index
    %16 = vector.load %arg8[%c0_10, %c0_11] : memref<1x128xf32, #tpu.memory_space<vmem>>, vector<1x128xf32>
    %17 = vector.broadcast %16 : vector<1x128xf32> to vector<64x128xf32>
    %18 = arith.addf %15, %17 : vector<64x128xf32>
    %c0_12 = arith.constant 0 : index
    %c0_13 = arith.constant 0 : index
    %19 = vector.load %arg2[%c0_12, %c0_13] : memref<64x128xbf16, #tpu.memory_space<vmem>>, vector<64x128xbf16>
    %c0_14 = arith.constant 0 : index
    %c0_15 = arith.constant 0 : index
    %20 = vector.load %arg4[%c0_14, %c0_15] : memref<128x128xbf16, #tpu.memory_space<vmem>>, vector<128x128xbf16>
    %cst_16 = arith.constant dense<0.000000e+00> : vector<64x128xf32>
    %21 = tpu.matmul %19, %20, %cst_16 {dimension_numbers = #tpu.dot_dimension_numbers<[1], [0], [0], [1], [0, 0, 1, 1], [], []>} : vector<64x128xbf16>, vector<128x128xbf16>, vector<64x128xf32> -> vector<64x128xf32>
    %22 = arith.addf %18, %21 : vector<64x128xf32>
    %c0_17 = arith.constant 0 : index
    %c0_18 = arith.constant 0 : index
    %23 = vector.load %arg9[%c0_17, %c0_18] : memref<1x128xf32, #tpu.memory_space<vmem>>, vector<1x128xf32>
    %24 = vector.broadcast %23 : vector<1x128xf32> to vector<64x128xf32>
    %25 = arith.addf %22, %24 : vector<64x128xf32>
    %cst_19 = arith.constant 0.000000e+00 : f32
    %26 = vector.broadcast %cst_19 : f32 to vector<64x128xf32>
    %27 = arith.maximumf %25, %26 : vector<64x128xf32>
    %c0_20 = arith.constant 0 : index
    %c0_21 = arith.constant 0 : index
    %28 = vector.load %arg10[%c0_20, %c0_21] : memref<64x128xf32, #tpu.memory_space<vmem>>, vector<64x128xf32>
    tpu.vector_store %arg10[%c0_20, %c0_21], %27 {strides = array<i32>} : memref<64x128xf32, #tpu.memory_space<vmem>>, vector<64x128xf32>,
    return
  }
  func.func @transform_0(%arg0: i32) -> (i32, i32) {
    %c0_i32 = arith.constant 0 : i32
    %c0_i32_0 = arith.constant 0 : i32
    return %arg0, %c0_i32 : i32, i32
  }
  func.func @transform_1(%arg0: i32) -> (i32, i32) {
    %c0_i32 = arith.constant 0 : i32
    %c0_i32_0 = arith.constant 0 : i32
    return %arg0, %c0_i32 : i32, i32
  }
  func.func @transform_2(%arg0: i32) -> (i32, i32) {
    %c0_i32 = arith.constant 0 : i32
    %c0_i32_0 = arith.constant 0 : i32
    %c0_i32_1 = arith.constant 0 : i32
    return %c0_i32, %c0_i32_0 : i32, i32
  }
  func.func @transform_3(%arg0: i32) -> (i32, i32) {
    %c0_i32 = arith.constant 0 : i32
    %c0_i32_0 = arith.constant 0 : i32
    %c0_i32_1 = arith.constant 0 : i32
    return %c0_i32, %c0_i32_0 : i32, i32
  }
  func.func @transform_4(%arg0: i32) -> (i32, i32) {
    %c0_i32 = arith.constant 0 : i32
    %c0_i32_0 = arith.constant 0 : i32
    %c0_i32_1 = arith.constant 0 : i32
    return %c0_i32, %c0_i32_0 : i32, i32
  }
  func.func @transform_5(%arg0: i32) -> (i32, i32) {
    %c0_i32 = arith.constant 0 : i32
    %c0_i32_0 = arith.constant 0 : i32
    %c0_i32_1 = arith.constant 0 : i32
    return %c0_i32, %c0_i32_0 : i32, i32
  }
  func.func @transform_6(%arg0: i32) -> (i32, i32) {
    %c0_i32 = arith.constant 0 : i32
    %c0_i32_0 = arith.constant 0 : i32
    %c0_i32_1 = arith.constant 0 : i32
    return %c0_i32, %c0_i32_0 : i32, i32
  }
  func.func @transform_7(%arg0: i32) -> (i32, i32) {
    %c0_i32 = arith.constant 0 : i32
    %c0_i32_0 = arith.constant 0 : i32
    %c0_i32_1 = arith.constant 0 : i32
    return %c0_i32, %c0_i32_0 : i32, i32
  }
  func.func @transform_8(%arg0: i32) -> (i32, i32) {
    %c0_i32 = arith.constant 0 : i32
    %c0_i32_0 = arith.constant 0 : i32
    %c0_i32_1 = arith.constant 0 : i32
    return %c0_i32, %c0_i32_0 : i32, i32
  }
  func.func @transform_9(%arg0: i32) -> (i32, i32) {
    %c0_i32 = arith.constant 0 : i32
    %c0_i32_0 = arith.constant 0 : i32
    return %arg0, %c0_i32 : i32, i32
  }
}

</mosaic_0001>

<llo_original>
// kernel: bottleneck_forward.6
$region0: #{bottleneck_forward.6}
  #allocation0 [shape = 'u32[]', space=smem, size = 0x4, offset = 0x4, fixed_abs, tag = 'smem constant byte address 0x4 - core index']
  #allocation1 [shape = 'u32[144,128]{1,0:T(1,128)}', space=vmem, size = 0x12000, scoped, tag = 'internal scratch']
  %s0 = inlined_call_operand.vmem [shape: bf16[512,128], index: 0, kind: input, shape index: {}]
  %s1 = inlined_call_operand.vmem [shape: f32[1,128], index: 1, kind: input, shape index: {}]
  %s2 = inlined_call_operand.vmem [shape: f32[1,128], index: 2, kind: input, shape index: {}]
  %s3 = inlined_call_operand.vmem [shape: bf16[512,128], index: 3, kind: output, shape index: {}]
  %s4 = sld [smem:[#allocation0]]
  $region45: #{bottleneck_forward.6} parent=0
    _
  %s6 = ssub.s32 1, %s4
  %s7 = scalar_select 0, %s6, %s4
  loop: start=0, step=1, limit=6
  $region2: #{bottleneck_forward.6} parent=0 // loop_pre_header
    _
  $region3: #{bottleneck_forward.6} parent=0 // loop_header
    %s9 = sphi 0, %s13
    %p10 = scmp.ge.s32.totalorder %s9, 6
    %s19 = sphi 0, %s21
    %s22 = sphi 0, %s19
    %s23 = sphi 0, %s22
    %s39 = sphi 0, %s23
    %s43 = sphi 0, %s43
    %s45 = sphi 0, %s43
    %s46 = sphi 0, %s45
    %s60 = sphi 0, %s46
    %s64 = sphi 0, %s64
    %s66 = sphi 0, %s64
    %s67 = sphi 0, %s66
    %s81 = sphi 0, %s67
    %s87 = sphi 0, %s89
    %s90 = sphi 0, %s87
    %s91 = sphi 0, %s90
    %s107 = sphi 0, %s91
  $region4: #{bottleneck_forward.6} parent=0 // loop_header_branch
    %12 = sbr.rel (%p10) target = $region8
  $region5: #{bottleneck_forward.6} parent=0 // loop_body
    %s14 = ssub.s32 %s9, 1
    %s15 = ssub.s32 %s9, 2
    %s16 = sadd.s32 %s9, 1
    %s17 = ssub.s32 %s9, %s16
    %p18 = scmp.eq.s32.totalorder %s17, 0
    %s20 = sadd.s32 %s19, 1
    %s21 = scalar_select %p18, %s19, %s20
    %p24 = pneg %p18
    %p25 = scmp.eq.s32.totalorder %s9, 3
    %p26 = por %p24, %p25
    %p27 = scmp.ne.s32.totalorder %s19, %s22
    %p28 = scmp.eq.s32.totalorder %s9, 0
    %p29 = por %p27, %p28
    %p30 = scmp.ne.s32.totalorder %s19, %s22
    %p31 = scmp.eq.s32.totalorder %s14, 3
    %p32 = por %p30, %p31
    %p33 = scmp.ne.s32.totalorder %s22, %s23
    %p34 = scmp.eq.s32.totalorder %s14, 0
    %p35 = por %p33, %p34
    %p36 = scmp.ne.s32.totalorder %s22, %s23
    %p37 = scmp.eq.s32.totalorder %s15, 3
    %p38 = por %p36, %p37
    %p40 = scmp.ne.s32.totalorder %s23, %s39
    %p41 = scmp.eq.s32.totalorder %s15, 0
    %p42 = por %p40, %p41
    %s44 = sadd.s32 %s43, 1
    %p47 = scmp.eq.s32.totalorder %s9, 3
    %p48 = scmp.ne.s32.totalorder %s43, %s45
    %p49 = scmp.eq.s32.totalorder %s9, 0
    %p50 = por %p48, %p49
    %p51 = scmp.ne.s32.totalorder %s43, %s45
    %p52 = scmp.eq.s32.totalorder %s14, 3
    %p53 = por %p51, %p52
    %p54 = scmp.ne.s32.totalorder %s45, %s46
    %p55 = scmp.eq.s32.totalorder %s14, 0
    %p56 = por %p54, %p55
    %p57 = scmp.ne.s32.totalorder %s45, %s46
    %p58 = scmp.eq.s32.totalorder %s15, 3
    %p59 = por %p57, %p58
    %p61 = scmp.ne.s32.totalorder %s46, %s60
    %p62 = scmp.eq.s32.totalorder %s15, 0
    %p63 = por %p61, %p62
    %s65 = sadd.s32 %s64, 1
    %p68 = scmp.eq.s32.totalorder %s9, 3
    %p69 = scmp.ne.s32.totalorder %s64, %s66
    %p70 = scmp.eq.s32.totalorder %s9, 0
    %p71 = por %p69, %p70
    %p72 = scmp.ne.s32.totalorder %s64, %s66
    %p73 = scmp.eq.s32.totalorder %s14, 3
    %p74 = por %p72, %p73
    %p75 = scmp.ne.s32.totalorder %s66, %s67
    %p76 = scmp.eq.s32.totalorder %s14, 0
    %p77 = por %p75, %p76
    %p78 = scmp.ne.s32.totalorder %s66, %s67
    %p79 = scmp.eq.s32.totalorder %s15, 3
    %p80 = por %p78, %p79
    %p82 = scmp.ne.s32.totalorder %s67, %s81
    %p83 = scmp.eq.s32.totalorder %s15, 0
    %p84 = por %p82, %p83
    %s85 = ssub.s32 %s9, %s16
    %p86 = scmp.eq.s32.totalorder %s85, 0
    %s88 = sadd.s32 %s87, 1
    %s89 = scalar_select %p86, %s87, %s88
    %p92 = pneg %p86
    %p93 = scmp.eq.s32.totalorder %s9, 3
    %p94 = por %p92, %p93
    %p95 = scmp.ne.s32.totalorder %s87, %s90
    %p96 = scmp.eq.s32.totalorder %s9, 0
    %p97 = por %p95, %p96
    %p98 = scmp.ne.s32.totalorder %s87, %s90
    %p99 = scmp.eq.s32.totalorder %s14, 3
    %p100 = por %p98, %p99
    %p101 = scmp.ne.s32.totalorder %s90, %s91
    %p102 = scmp.eq.s32.totalorder %s14, 0
    %p103 = por %p101, %p102
    %p104 = scmp.ne.s32.totalorder %s90, %s91
    %p105 = scmp.eq.s32.totalorder %s15, 3
    %p106 = por %p104, %p105
    %p108 = scmp.ne.s32.totalorder %s91, %s107
    %p109 = scmp.eq.s32.totalorder %s15, 0
    %p110 = por %p108, %p109
    %p111 = scmp.le.s32.totalorder 1, %s9
    %p112 = scmp.lt.s32.totalorder %s9, 5
    %p113 = pnand %p111, %p112
    %p114 = pneg %p113
    // Predicated region
    $region9: #{bottleneck_forward.6} parent=5 // pred_check
      _
    $region10: #{bottleneck_forward.6} parent=5 // pred_check_branch
      %116 = sbr.rel (%p113) target = $region12
    $region11: #{bottleneck_forward.6} parent=5 // pred_region
      %s117 = ssub.s32 %s9, 1
      // Predicated region
      $region13: #{bottleneck_forward.6} parent=11 // pred_check
        %p118 = pneg %p56
      $region14: #{bottleneck_forward.6} parent=11 // pred_check_branch
        %120 = sbr.rel (%p118) target = $region16
      $region15: #{bottleneck_forward.6} parent=11 // pred_region
        _
      $region16: #{bottleneck_forward.6} parent=11 // pred_fallthru
        _
      // Predicated region
      $region17: #{bottleneck_forward.6} parent=11 // pred_check
        %p121 = pneg %p77
      $region18: #{bottleneck_forward.6} parent=11 // pred_check_branch
        %123 = sbr.rel (%p121) target = $region20
      $region19: #{bottleneck_forward.6} parent=11 // pred_region
        _
      $region20: #{bottleneck_forward.6} parent=11 // pred_fallthru
        _
    $region12: #{bottleneck_forward.6} parent=5 // pred_fallthru
      _
    %p124 = scmp.lt.s32.totalorder %s9, 4
    // Predicated region
    $region21: #{bottleneck_forward.6} parent=5 // pred_check
      %p125 = pneg %p124
    $region22: #{bottleneck_forward.6} parent=5 // pred_check_branch
      %127 = sbr.rel (%p125) target = $region24
    $region23: #{bottleneck_forward.6} parent=5 // pred_region
      // Predicated region
      $region25: #{bottleneck_forward.6} parent=23 // pred_check
        %p128 = pneg %p29
      $region26: #{bottleneck_forward.6} parent=23 // pred_check_branch
        %130 = sbr.rel (%p128) target = $region28
      $region27: #{bottleneck_forward.6} parent=23 // pred_region
        %s131 = smul.u32 16, %s9
        %p132 = scmp.lt.s32.totalorder %s131, 63
        %s133 = scalar_select %p132, %s131, 63
        %s134 = smul.addr %s133, 4
        %s135 = scalar_lea.vmem %s0, %s134
        %s136 = smul.u32 16, %s9
      $region28: #{bottleneck_forward.6} parent=23 // pred_fallthru
        _
    $region24: #{bottleneck_forward.6} parent=5 // pred_fallthru
      _
    %p137 = scmp.le.s32.totalorder 1, %s9
    %p138 = scmp.lt.s32.totalorder %s9, 5
    %p139 = pnand %p137, %p138
    %p140 = pneg %p139
    // Predicated region
    $region29: #{bottleneck_forward.6} parent=5 // pred_check
      _
    $region30: #{bottleneck_forward.6} parent=5 // pred_check_branch
      %142 = sbr.rel (%p139) target = $region32
    $region31: #{bottleneck_forward.6} parent=5 // pred_region
      %s143 = ssub.s32 %s9, 1
      %s144 = smul.u32 16, %s14
      %p145 = scmp.lt.s32.totalorder %s144, 63
      %s146 = scalar_select %p145, %s144, 63
      %s147 = smul.addr %s146, 4
      %s148 = scalar_lea.vmem %s0, %s147
      %p149 = pneg %p35
      %p150 = pneg %p32
      %p151 = pneg %p56
      %p152 = pneg %p53
      %p153 = pneg %p77
      %p154 = pneg %p74
      %p155 = pneg %p103
      %p156 = pneg %p100
      %s157 = smul.u32 16, %s14
      %p158 = scmp.lt.s32.totalorder %s157, 63
      %s159 = scalar_select %p158, %s157, 63
      %s160 = smul.addr %s159, 4
      %s161 = scalar_lea.vmem %s3, %s160
      %s162 = smul.u32 16, %s14
      %p163 = scmp.lt.s32.totalorder %s162, 63
      %s164 = scalar_select %p163, %s162, 63
      %s165 = smul.addr %s164, 4
      %s166 = scalar_lea.vmem %s0, %s165
      %s167 = smul.u32 16, %s14
      %s168 = smul.u32 16, %s14
      %p169 = scmp.lt.s32.totalorder %s168, 63
      %s170 = scalar_select %p169, %s168, 63
      %s171 = smul.addr %s170, 4
      %s172 = scalar_lea.vmem %s3, %s171
      %s173 = smul.u32 16, %s14
      %v174 = vld [vmem:[%s166] sm:$0xf]
      %v175 = vld [vmem:[%s166 + $0x4] sm:$0xf]
      %v176 = vld [vmem:[%s166 + $0x8] sm:$0xf]
      %v177 = vld [vmem:[%s166 + $0xc] sm:$0xf]
      %v178 = vld [vmem:[%s166 + $0x10] sm:$0xf]
      %v179 = vld [vmem:[%s166 + $0x14] sm:$0xf]
      %v180 = vld [vmem:[%s166 + $0x18] sm:$0xf]
      %v181 = vld [vmem:[%s166 + $0x1c] sm:$0xf]
      %v182 = vld [vmem:[%s166 + $0x20] sm:$0xf]
      %v183 = vld [vmem:[%s166 + $0x24] sm:$0xf]
      %v184 = vld [vmem:[%s166 + $0x28] sm:$0xf]
      %v185 = vld [vmem:[%s166 + $0x2c] sm:$0xf]
      %v186 = vld [vmem:[%s166 + $0x30] sm:$0xf]
      %v187 = vld [vmem:[%s166 + $0x34] sm:$0xf]
      %v188 = vld [vmem:[%s166 + $0x38] sm:$0xf]
      %v189 = vld [vmem:[%s166 + $0x3c] sm:$0xf]
      %v190 = vunpack.c.l.bf16 %v174
      %v191 = vunpack.c.l.bf16 %v175
      %v192 = vunpack.c.l.bf16 %v176
      %v193 = vunpack.c.l.bf16 %v177
      %v194 = vunpack.c.l.bf16 %v178
      %v195 = vunpack.c.l.bf16 %v179
      %v196 = vunpack.c.l.bf16 %v180
      %v197 = vunpack.c.l.bf16 %v181
      %v198 = vunpack.c.l.bf16 %v182
      %v199 = vunpack.c.l.bf16 %v183
      %v200 = vunpack.c.l.bf16 %v184
      %v201 = vunpack.c.l.bf16 %v185
      %v202 = vunpack.c.l.bf16 %v186
      %v203 = vunpack.c.l.bf16 %v187
      %v204 = vunpack.c.l.bf16 %v188
      %v205 = vunpack.c.l.bf16 %v189
      %v206 = vld [vmem:[%s1] sm:$0x1]
      %v208 = vlaneseq
      %v209 = vshrl.u32 %v208, 7
      %v210 = vsub.s32 0, %v209
      %v211 = vrot.slane %v206, %v210
      %v213 = vmul.f32 %v190, %v211
      %v214 = vmul.f32 %v191, %v211
      %v215 = vmul.f32 %v192, %v211
      %v216 = vmul.f32 %v193, %v211
      %v217 = vmul.f32 %v194, %v211
      %v218 = vmul.f32 %v195, %v211
      %v219 = vmul.f32 %v196, %v211
      %v220 = vmul.f32 %v197, %v211
      %v221 = vmul.f32 %v198, %v211
      %v222 = vmul.f32 %v199, %v211
      %v223 = vmul.f32 %v200, %v211
      %v224 = vmul.f32 %v201, %v211
      %v225 = vmul.f32 %v202, %v211
      %v226 = vmul.f32 %v203, %v211
      %v227 = vmul.f32 %v204, %v211
      %v228 = vmul.f32 %v205, %v211
      %v229 = vld [vmem:[%s2] sm:$0x1]
      %v231 = vlaneseq
      %v232 = vshrl.u32 %v231, 7
      %v233 = vsub.s32 0, %v232
      %v234 = vrot.slane %v229, %v233
      %v236 = vadd.f32 %v213, %v234
      %v237 = vadd.f32 %v214, %v234
      %v238 = vadd.f32 %v215, %v234
      %v239 = vadd.f32 %v216, %v234
      %v240 = vadd.f32 %v217, %v234
      %v241 = vadd.f32 %v218, %v234
      %v242 = vadd.f32 %v219, %v234
      %v243 = vadd.f32 %v220, %v234
      %v244 = vadd.f32 %v221, %v234
      %v245 = vadd.f32 %v222, %v234
      %v246 = vadd.f32 %v223, %v234
      %v247 = vadd.f32 %v224, %v234
      %v248 = vadd.f32 %v225, %v234
      %v249 = vadd.f32 %v226, %v234
      %v250 = vadd.f32 %v227, %v234
      %v251 = vadd.f32 %v228, %v234
      %v252 = vmax.f32 %v236, 0.0
      %v253 = vmax.f32 %v237, 0.0
      %v254 = vmax.f32 %v238, 0.0
      %v255 = vmax.f32 %v239, 0.0
      %v256 = vmax.f32 %v240, 0.0
      %v257 = vmax.f32 %v241, 0.0
      %v258 = vmax.f32 %v242, 0.0
      %v259 = vmax.f32 %v243, 0.0
      %v260 = vmax.f32 %v244, 0.0
      %v261 = vmax.f32 %v245, 0.0
      %v262 = vmax.f32 %v246, 0.0
      %v263 = vmax.f32 %v247, 0.0
      %v264 = vmax.f32 %v248, 0.0
      %v265 = vmax.f32 %v249, 0.0
      %v266 = vmax.f32 %v250, 0.0
      %v267 = vmax.f32 %v251, 0.0
      %v268 = vpack.c.bf16 %v253, %v252
      %v269 = vpack.c.bf16 %v255, %v254
      %v270 = vpack.c.bf16 %v257, %v256
      %v271 = vpack.c.bf16 %v259, %v258
      %v272 = vpack.c.bf16 %v261, %v260
      %v273 = vpack.c.bf16 %v263, %v262
      %v274 = vpack.c.bf16 %v265, %v264
      %v275 = vpack.c.bf16 %v267, %v266
      %v284 = vunpack.c.l.b16 %v268
      %v285 = vunpack.c.h.b16 %v268
      %v286 = vunpack.c.l.b16 %v269
      %v287 = vunpack.c.h.b16 %v269
      %v288 = vunpack.c.l.b16 %v270
      %v289 = vunpack.c.h.b16 %v270
      %v290 = vunpack.c.l.b16 %v271
      %v291 = vunpack.c.h.b16 %v271
      %v292 = vunpack.c.l.b16 %v272
      %v293 = vunpack.c.h.b16 %v272
      %v294 = vunpack.c.l.b16 %v273
      %v295 = vunpack.c.h.b16 %v273
      %v296 = vunpack.c.l.b16 %v274
      %v297 = vunpack.c.h.b16 %v274
      %v298 = vunpack.c.l.b16 %v275
      %v299 = vunpack.c.h.b16 %v275
      %v300 = vpack.c.b16 %v284, %v284
      %v301 = vpack.c.b16 %v285, %v285
      %v302 = vpack.c.b16 %v286, %v286
      %v303 = vpack.c.b16 %v287, %v287
      %v304 = vpack.c.b16 %v288, %v288
      %v305 = vpack.c.b16 %v289, %v289
      %v306 = vpack.c.b16 %v290, %v290
      %v307 = vpack.c.b16 %v291, %v291
      %v308 = vpack.c.b16 %v292, %v292
      %v309 = vpack.c.b16 %v293, %v293
      %v310 = vpack.c.b16 %v294, %v294
      %v311 = vpack.c.b16 %v295, %v295
      %v312 = vpack.c.b16 %v296, %v296
      %v313 = vpack.c.b16 %v297, %v297
      %v314 = vpack.c.b16 %v298, %v298
      %v315 = vpack.c.b16 %v299, %v299
      %332 = vst [vmem:[%s172] sm:$0xf] %v300
      %333 = vst [vmem:[%s172 + $0x4] sm:$0xf] %v301
      %334 = vst [vmem:[%s172 + $0x8] sm:$0xf] %v302
      %335 = vst [vmem:[%s172 + $0xc] sm:$0xf] %v303
      %336 = vst [vmem:[%s172 + $0x10] sm:$0xf] %v304
      %337 = vst [vmem:[%s172 + $0x14] sm:$0xf] %v305
      %338 = vst [vmem:[%s172 + $0x18] sm:$0xf] %v306
      %339 = vst [vmem:[%s172 + $0x1c] sm:$0xf] %v307
      %340 = vst [vmem:[%s172 + $0x20] sm:$0xf] %v308
      %341 = vst [vmem:[%s172 + $0x24] sm:$0xf] %v309
      %342 = vst [vmem:[%s172 + $0x28] sm:$0xf] %v310
      %343 = vst [vmem:[%s172 + $0x2c] sm:$0xf] %v311
      %344 = vst [vmem:[%s172 + $0x30] sm:$0xf] %v312
      %345 = vst [vmem:[%s172 + $0x34] sm:$0xf] %v313
      %346 = vst [vmem:[%s172 + $0x38] sm:$0xf] %v314
      %347 = vst [vmem:[%s172 + $0x3c] sm:$0xf] %v315
      %s348 = smul.u32 16, %s14
      %p349 = scmp.lt.s32.totalorder %s348, 63
      %s350 = scalar_select %p349, %s348, 63
      %s351 = smul.addr %s350, 4
      %s352 = scalar_lea.vmem %s3, %s351
      // Predicated region
      $region33: #{bottleneck_forward.6} parent=31 // pred_check
        %p353 = pneg %p100
      $region34: #{bottleneck_forward.6} parent=31 // pred_check_branch
        %355 = sbr.rel (%p353) target = $region36
      $region35: #{bottleneck_forward.6} parent=31 // pred_region
        %s356 = smul.u32 16, %s14
      $region36: #{bottleneck_forward.6} parent=31 // pred_fallthru
        _
    $region32: #{bottleneck_forward.6} parent=5 // pred_fallthru
      _
    %p357 = scmp.le.s32.totalorder 2, %s9
    // Predicated region
    $region37: #{bottleneck_forward.6} parent=5 // pred_check
      %p358 = pneg %p357
    $region38: #{bottleneck_forward.6} parent=5 // pred_check_branch
      %360 = sbr.rel (%p358) target = $region40
    $region39: #{bottleneck_forward.6} parent=5 // pred_region
      %s361 = ssub.s32 %s9, 2
      // Predicated region
      $region41: #{bottleneck_forward.6} parent=39 // pred_check
        %p362 = pneg %p106
      $region42: #{bottleneck_forward.6} parent=39 // pred_check_branch
        %364 = sbr.rel (%p362) target = $region44
      $region43: #{bottleneck_forward.6} parent=39 // pred_region
        %s365 = smul.u32 16, %s15
        %p366 = scmp.lt.s32.totalorder %s365, 63
        %s367 = scalar_select %p366, %s365, 63
        %s368 = smul.addr %s367, 4
        %s369 = scalar_lea.vmem %s3, %s368
      $region44: #{bottleneck_forward.6} parent=39 // pred_fallthru
        _
    $region40: #{bottleneck_forward.6} parent=5 // pred_fallthru
      _
  $region6: #{bottleneck_forward.6} parent=0 // loop_footer
    %s13 = sadd.s32 1, %s9
  $region7: #{bottleneck_forward.6} parent=0 // loop_footer_branch
    %8 = sbr.rel target = $region3
  $region8: #{bottleneck_forward.6} parent=0 // loop_exit
    _

// kernel: bottleneck_forward.5
$region0: #{bottleneck_forward.5}
  #allocation0 [shape = 'u32[]', space=smem, size = 0x4, offset = 0x4, fixed_abs, tag = 'smem constant byte address 0x4 - core index']
  #allocation1 [shape = 'u32[144,128]{1,0:T(1,128)}', space=vmem, size = 0x12000, scoped, tag = 'internal scratch']
  %s0 = inlined_call_operand.vmem [shape: bf16[512,128], index: 0, kind: input, shape index: {}]
  %s1 = inlined_call_operand.vmem [shape: bf16[128,128], index: 1, kind: input, shape index: {}]
  %s2 = inlined_call_operand.vmem [shape: bf16[512,128], index: 2, kind: output, shape index: {0}]
  %s3 = inlined_call_operand.vmem [shape: f32[4,1,128], index: 3, kind: output, shape index: {1}]
  %s4 = inlined_call_operand.vmem [shape: f32[4,1,128], index: 4, kind: output, shape index: {2}]
  %5 = xla_tuple %s2, %s3, %s4
  %s6 = sld [smem:[#allocation0]]
  $region57: #{bottleneck_forward.5} parent=0
    _
  %s8 = ssub.s32 1, %s6
  %s9 = scalar_select 0, %s8, %s6
  loop: start=0, step=1, limit=6
  $region2: #{bottleneck_forward.5} parent=0 // loop_pre_header
    _
  $region3: #{bottleneck_forward.5} parent=0 // loop_header
    %s11 = sphi 0, %s15
    %p12 = scmp.ge.s32.totalorder %s11, 6
    %s21 = sphi 0, %s23
    %s24 = sphi 0, %s21
    %s25 = sphi 0, %s24
    %s41 = sphi 0, %s25
    %s45 = sphi 0, %s45
    %s47 = sphi 0, %s45
    %s48 = sphi 0, %s47
    %s62 = sphi 0, %s48
    %s68 = sphi 0, %s70
    %s71 = sphi 0, %s68
    %s72 = sphi 0, %s71
    %s88 = sphi 0, %s72
    %s94 = sphi 0, %s96
    %s97 = sphi 0, %s94
    %s98 = sphi 0, %s97
    %s114 = sphi 0, %s98
    %s120 = sphi 0, %s122
    %s123 = sphi 0, %s120
    %s124 = sphi 0, %s123
    %s140 = sphi 0, %s124
  $region4: #{bottleneck_forward.5} parent=0 // loop_header_branch
    %14 = sbr.rel (%p12) target = $region8
  $region5: #{bottleneck_forward.5} parent=0 // loop_body
    %s16 = ssub.s32 %s11, 1
    %s17 = ssub.s32 %s11, 2
    %s18 = sadd.s32 %s11, 1
    %s19 = ssub.s32 %s11, %s18
    %p20 = scmp.eq.s32.totalorder %s19, 0
    %s22 = sadd.s32 %s21, 1
    %s23 = scalar_select %p20, %s21, %s22
    %p26 = pneg %p20
    %p27 = scmp.eq.s32.totalorder %s11, 3
    %p28 = por %p26, %p27
    %p29 = scmp.ne.s32.totalorder %s21, %s24
    %p30 = scmp.eq.s32.totalorder %s11, 0
    %p31 = por %p29, %p30
    %p32 = scmp.ne.s32.totalorder %s21, %s24
    %p33 = scmp.eq.s32.totalorder %s16, 3
    %p34 = por %p32, %p33
    %p35 = scmp.ne.s32.totalorder %s24, %s25
    %p36 = scmp.eq.s32.totalorder %s16, 0
    %p37 = por %p35, %p36
    %p38 = scmp.ne.s32.totalorder %s24, %s25
    %p39 = scmp.eq.s32.totalorder %s17, 3
    %p40 = por %p38, %p39
    %p42 = scmp.ne.s32.totalorder %s25, %s41
    %p43 = scmp.eq.s32.totalorder %s17, 0
    %p44 = por %p42, %p43
    %s46 = sadd.s32 %s45, 1
    %p49 = scmp.eq.s32.totalorder %s11, 3
    %p50 = scmp.ne.s32.totalorder %s45, %s47
    %p51 = scmp.eq.s32.totalorder %s11, 0
    %p52 = por %p50, %p51
    %p53 = scmp.ne.s32.totalorder %s45, %s47
    %p54 = scmp.eq.s32.totalorder %s16, 3
    %p55 = por %p53, %p54
    %p56 = scmp.ne.s32.totalorder %s47, %s48
    %p57 = scmp.eq.s32.totalorder %s16, 0
    %p58 = por %p56, %p57
    %p59 = scmp.ne.s32.totalorder %s47, %s48
    %p60 = scmp.eq.s32.totalorder %s17, 3
    %p61 = por %p59, %p60
    %p63 = scmp.ne.s32.totalorder %s48, %s62
    %p64 = scmp.eq.s32.totalorder %s17, 0
    %p65 = por %p63, %p64
    %s66 = ssub.s32 %s11, %s18
    %p67 = scmp.eq.s32.totalorder %s66, 0
    %s69 = sadd.s32 %s68, 1
    %s70 = scalar_select %p67, %s68, %s69
    %p73 = pneg %p67
    %p74 = scmp.eq.s32.totalorder %s11, 3
    %p75 = por %p73, %p74
    %p76 = scmp.ne.s32.totalorder %s68, %s71
    %p77 = scmp.eq.s32.totalorder %s11, 0
    %p78 = por %p76, %p77
    %p79 = scmp.ne.s32.totalorder %s68, %s71
    %p80 = scmp.eq.s32.totalorder %s16, 3
    %p81 = por %p79, %p80
    %p82 = scmp.ne.s32.totalorder %s71, %s72
    %p83 = scmp.eq.s32.totalorder %s16, 0
    %p84 = por %p82, %p83
    %p85 = scmp.ne.s32.totalorder %s71, %s72
    %p86 = scmp.eq.s32.totalorder %s17, 3
    %p87 = por %p85, %p86
    %p89 = scmp.ne.s32.totalorder %s72, %s88
    %p90 = scmp.eq.s32.totalorder %s17, 0
    %p91 = por %p89, %p90
    %s92 = ssub.s32 %s11, %s18
    %p93 = scmp.eq.s32.totalorder %s92, 0
    %s95 = sadd.s32 %s94, 1
    %s96 = scalar_select %p93, %s94, %s95
    %p99 = pneg %p93
    %p100 = scmp.eq.s32.totalorder %s11, 3
    %p101 = por %p99, %p100
    %p102 = scmp.ne.s32.totalorder %s94, %s97
    %p103 = scmp.eq.s32.totalorder %s11, 0
    %p104 = por %p102, %p103
    %p105 = scmp.ne.s32.totalorder %s94, %s97
    %p106 = scmp.eq.s32.totalorder %s16, 3
    %p107 = por %p105, %p106
    %p108 = scmp.ne.s32.totalorder %s97, %s98
    %p109 = scmp.eq.s32.totalorder %s16, 0
    %p110 = por %p108, %p109
    %p111 = scmp.ne.s32.totalorder %s97, %s98
    %p112 = scmp.eq.s32.totalorder %s17, 3
    %p113 = por %p111, %p112
    %p115 = scmp.ne.s32.totalorder %s98, %s114
    %p116 = scmp.eq.s32.totalorder %s17, 0
    %p117 = por %p115, %p116
    %s118 = ssub.s32 %s11, %s18
    %p119 = scmp.eq.s32.totalorder %s118, 0
    %s121 = sadd.s32 %s120, 1
    %s122 = scalar_select %p119, %s120, %s121
    %p125 = pneg %p119
    %p126 = scmp.eq.s32.totalorder %s11, 3
    %p127 = por %p125, %p126
    %p128 = scmp.ne.s32.totalorder %s120, %s123
    %p129 = scmp.eq.s32.totalorder %s11, 0
    %p130 = por %p128, %p129
    %p131 = scmp.ne.s32.totalorder %s120, %s123
    %p132 = scmp.eq.s32.totalorder %s16, 3
    %p133 = por %p131, %p132
    %p134 = scmp.ne.s32.totalorder %s123, %s124
    %p135 = scmp.eq.s32.totalorder %s16, 0
    %p136 = por %p134, %p135
    %p137 = scmp.ne.s32.totalorder %s123, %s124
    %p138 = scmp.eq.s32.totalorder %s17, 3
    %p139 = por %p137, %p138
    %p141 = scmp.ne.s32.totalorder %s124, %s140
    %p142 = scmp.eq.s32.totalorder %s17, 0
    %p143 = por %p141, %p142
    %p144 = scmp.le.s32.totalorder 1, %s11
    %p145 = scmp.lt.s32.totalorder %s11, 5
    %p146 = pnand %p144, %p145
    %p147 = pneg %p146
    // Predicated region
    $region9: #{bottleneck_forward.5} parent=5 // pred_check
      _
    $region10: #{bottleneck_forward.5} parent=5 // pred_check_branch
      %149 = sbr.rel (%p146) target = $region12
    $region11: #{bottleneck_forward.5} parent=5 // pred_region
      %s150 = ssub.s32 %s11, 1
      // Predicated region
      $region13: #{bottleneck_forward.5} parent=11 // pred_check
        %p151 = pneg %p58
      $region14: #{bottleneck_forward.5} parent=11 // pred_check_branch
        %153 = sbr.rel (%p151) target = $region16
      $region15: #{bottleneck_forward.5} parent=11 // pred_region
        _
      $region16: #{bottleneck_forward.5} parent=11 // pred_fallthru
        _
    $region12: #{bottleneck_forward.5} parent=5 // pred_fallthru
      _
    %p154 = scmp.lt.s32.totalorder %s11, 4
    // Predicated region
    $region17: #{bottleneck_forward.5} parent=5 // pred_check
      %p155 = pneg %p154
    $region18: #{bottleneck_forward.5} parent=5 // pred_check_branch
      %157 = sbr.rel (%p155) target = $region20
    $region19: #{bottleneck_forward.5} parent=5 // pred_region
      // Predicated region
      $region21: #{bottleneck_forward.5} parent=19 // pred_check
        %p158 = pneg %p31
      $region22: #{bottleneck_forward.5} parent=19 // pred_check_branch
        %160 = sbr.rel (%p158) target = $region24
      $region23: #{bottleneck_forward.5} parent=19 // pred_region
        %s161 = smul.u32 16, %s11
        %p162 = scmp.lt.s32.totalorder %s161, 63
        %s163 = scalar_select %p162, %s161, 63
        %s164 = smul.addr %s163, 4
        %s165 = scalar_lea.vmem %s0, %s164
        %s166 = smul.u32 16, %s11
      $region24: #{bottleneck_forward.5} parent=19 // pred_fallthru
        _
    $region20: #{bottleneck_forward.5} parent=5 // pred_fallthru
      _
    %p167 = scmp.le.s32.totalorder 1, %s11
    %p168 = scmp.lt.s32.totalorder %s11, 5
    %p169 = pnand %p167, %p168
    %p170 = pneg %p169
    // Predicated region
    $region25: #{bottleneck_forward.5} parent=5 // pred_check
      _
    $region26: #{bottleneck_forward.5} parent=5 // pred_check_branch
      %172 = sbr.rel (%p169) target = $region28
    $region27: #{bottleneck_forward.5} parent=5 // pred_region
      %s173 = ssub.s32 %s11, 1
      %s174 = smul.u32 16, %s16
      %p175 = scmp.lt.s32.totalorder %s174, 63
      %s176 = scalar_select %p175, %s174, 63
      %s177 = smul.addr %s176, 4
      %s178 = scalar_lea.vmem %s0, %s177
      %p179 = pneg %p37
      %p180 = pneg %p34
      %p181 = pneg %p58
      %p182 = pneg %p55
      %p183 = pneg %p84
      %p184 = pneg %p81
      %s185 = smul.u32 16, %s16
      %p186 = scmp.lt.s32.totalorder %s185, 63
      %s187 = scalar_select %p186, %s185, 63
      %s188 = smul.addr %s187, 4
      %s189 = scalar_lea.vmem %s2, %s188
      %p190 = pneg %p110
      %p191 = pneg %p107
      %p192 = scmp.lt.s32.totalorder %s16, 3
      %s193 = scalar_select %p192, %s16, 3
      %s194 = scalar_lea.vmem %s3, %s193
      %p195 = pneg %p136
      %p196 = pneg %p133
      %p197 = scmp.lt.s32.totalorder %s16, 3
      %s198 = scalar_select %p197, %s16, 3
      %s199 = scalar_lea.vmem %s4, %s198
      %s200 = smul.u32 16, %s16
      %p201 = scmp.lt.s32.totalorder %s200, 63
      %s202 = scalar_select %p201, %s200, 63
      %s203 = smul.addr %s202, 4
      %s204 = scalar_lea.vmem %s0, %s203
      %s205 = smul.u32 16, %s16
      %s206 = smul.u32 16, %s16
      %p207 = scmp.lt.s32.totalorder %s206, 63
      %s208 = scalar_select %p207, %s206, 63
      %s209 = smul.addr %s208, 4
      %s210 = scalar_lea.vmem %s2, %s209
      %s211 = smul.u32 16, %s16
      %p212 = scmp.lt.s32.totalorder %s16, 3
      %s213 = scalar_select %p212, %s16, 3
      %s214 = scalar_lea.vmem %s3, %s213
      %p215 = scmp.lt.s32.totalorder %s16, 3
      %s216 = scalar_select %p215, %s16, 3
      %s217 = scalar_lea.vmem %s4, %s216
      %v219 = vld [vmem:[%s204] sm:$0xf]
      %v220 = vld [vmem:[%s204 + $0x4] sm:$0xf]
      %v221 = vld [vmem:[%s204 + $0x8] sm:$0xf]
      %v222 = vld [vmem:[%s204 + $0xc] sm:$0xf]
      %v223 = vld [vmem:[%s204 + $0x10] sm:$0xf]
      %v224 = vld [vmem:[%s204 + $0x14] sm:$0xf]
      %v225 = vld [vmem:[%s204 + $0x18] sm:$0xf]
      %v226 = vld [vmem:[%s204 + $0x1c] sm:$0xf]
      %v227 = vld [vmem:[%s204 + $0x20] sm:$0xf]
      %v228 = vld [vmem:[%s204 + $0x24] sm:$0xf]
      %v229 = vld [vmem:[%s204 + $0x28] sm:$0xf]
      %v230 = vld [vmem:[%s204 + $0x2c] sm:$0xf]
      %v231 = vld [vmem:[%s204 + $0x30] sm:$0xf]
      %v232 = vld [vmem:[%s204 + $0x34] sm:$0xf]
      %v233 = vld [vmem:[%s204 + $0x38] sm:$0xf]
      %v234 = vld [vmem:[%s204 + $0x3c] sm:$0xf]
      %v235 = vld [vmem:[%s1] sm:$0xf]
      %v236 = vld [vmem:[%s1 + $0x4] sm:$0xf]
      %v237 = vld [vmem:[%s1 + $0x8] sm:$0xf]
      %v238 = vld [vmem:[%s1 + $0xc] sm:$0xf]
      %v239 = vld [vmem:[%s1 + $0x10] sm:$0xf]
      %v240 = vld [vmem:[%s1 + $0x14] sm:$0xf]
      %v241 = vld [vmem:[%s1 + $0x18] sm:$0xf]
      %v242 = vld [vmem:[%s1 + $0x1c] sm:$0xf]
      %v243 = vld [vmem:[%s1 + $0x20] sm:$0xf]
      %v244 = vld [vmem:[%s1 + $0x24] sm:$0xf]
      %v245 = vld [vmem:[%s1 + $0x28] sm:$0xf]
      %v246 = vld [vmem:[%s1 + $0x2c] sm:$0xf]
      %v247 = vld [vmem:[%s1 + $0x30] sm:$0xf]
      %v248 = vld [vmem:[%s1 + $0x34] sm:$0xf]
      %v249 = vld [vmem:[%s1 + $0x38] sm:$0xf]
      %v250 = vld [vmem:[%s1 + $0x3c] sm:$0xf]
      %v267 = vunpack.c.l.b16 %v219
      %v268 = vunpack.c.l.b16 %v220
      %v269 = vunpack.c.l.b16 %v221
      %v270 = vunpack.c.l.b16 %v222
      %v271 = vunpack.c.l.b16 %v223
      %v272 = vunpack.c.l.b16 %v224
      %v273 = vunpack.c.l.b16 %v225
      %v274 = vunpack.c.l.b16 %v226
      %v275 = vunpack.c.l.b16 %v227
      %v276 = vunpack.c.l.b16 %v228
      %v277 = vunpack.c.l.b16 %v229
      %v278 = vunpack.c.l.b16 %v230
      %v279 = vunpack.c.l.b16 %v231
      %v280 = vunpack.c.l.b16 %v232
      %v281 = vunpack.c.l.b16 %v233
      %v282 = vunpack.c.l.b16 %v234
      %v283 = vpack.c.b16 %v268, %v267
      %v284 = vpack.c.b16 %v270, %v269
      %v285 = vpack.c.b16 %v272, %v271
      %v286 = vpack.c.b16 %v274, %v273
      %v287 = vpack.c.b16 %v276, %v275
      %v288 = vpack.c.b16 %v278, %v277
      %v289 = vpack.c.b16 %v280, %v279
      %v290 = vpack.c.b16 %v282, %v281
      %v315 = vunpack.c.l.b16 %v235
      %v316 = vunpack.c.l.b16 %v236
      %v317 = vunpack.c.l.b16 %v237
      %v318 = vunpack.c.l.b16 %v238
      %v319 = vunpack.c.l.b16 %v239
      %v320 = vunpack.c.l.b16 %v240
      %v321 = vunpack.c.l.b16 %v241
      %v322 = vunpack.c.l.b16 %v242
      %v323 = vunpack.c.l.b16 %v243
      %v324 = vunpack.c.l.b16 %v244
      %v325 = vunpack.c.l.b16 %v245
      %v326 = vunpack.c.l.b16 %v246
      %v327 = vunpack.c.l.b16 %v247
      %v328 = vunpack.c.l.b16 %v248
      %v329 = vunpack.c.l.b16 %v249
      %v330 = vunpack.c.l.b16 %v250
      %v331 = vpack.c.b16 %v316, %v315
      %v332 = vpack.c.b16 %v318, %v317
      %v333 = vpack.c.b16 %v320, %v319
      %v334 = vpack.c.b16 %v322, %v321
      %v335 = vpack.c.b16 %v324, %v323
      %v336 = vpack.c.b16 %v326, %v325
      %v337 = vpack.c.b16 %v328, %v327
      %v338 = vpack.c.b16 %v330, %v329
      %347 = vmatprep.subr.bf16.mxu0 0
      %348 = vmatpush1.bf16.msra.mxu0 %v338
      %349 = vmatprep.subr.bf16.mxu0 0
      %350 = vmatpush1.bf16.msra.mxu0 %v337
      %351 = vmatprep.subr.bf16.mxu0 0
      %352 = vmatpush1.bf16.msra.mxu0 %v336
      %353 = vmatprep.subr.bf16.mxu0 0
      %354 = vmatpush1.bf16.msra.mxu0 %v335
      %355 = vmatprep.subr.bf16.mxu0 0
      %356 = vmatpush1.bf16.msra.mxu0 %v334
      %357 = vmatprep.subr.bf16.mxu0 0
      %358 = vmatpush1.bf16.msra.mxu0 %v333
      %359 = vmatprep.subr.bf16.mxu0 0
      %360 = vmatpush1.bf16.msra.mxu0 %v332
      %361 = vmatprep.subr.bf16.mxu0 0
      %362 = vmatpush1.bf16.msra.mxu0 %v331
      %363 = vmatprep.subr.bf16.mxu0 0
      %364 = vmatpush2.bf16.msra.mxu0 0
      %365 = vmatprep.subr.bf16.mxu0 0
      %366 = vmatpush2.bf16.msra.mxu0 0
      %367 = vmatprep.subr.bf16.mxu0 0
      %368 = vmatpush2.bf16.msra.mxu0 0
      %369 = vmatprep.subr.bf16.mxu0 0
      %370 = vmatpush2.bf16.msra.mxu0 0
      %371 = vmatprep.subr.bf16.mxu0 0
      %372 = vmatpush2.bf16.msra.mxu0 0
      %373 = vmatprep.subr.bf16.mxu0 0
      %374 = vmatpush2.bf16.msra.mxu0 0
      %375 = vmatprep.subr.bf16.mxu0 0
      %376 = vmatpush2.bf16.msra.mxu0 0
      %377 = vmatprep.subr.bf16.mxu0 0
      %378 = vmatpush2.bf16.msra.mxu0 0
      %379 = vmatprep.mubr.bf16.mxu0 0
      %380 = vmatmul.mubr.bf16.gmra.mxu0 %v283
      %v381 = vpop.f32.mrf.mxu0
      %v382 = vadd.f32 0.0, %v381
      %v383 = vpop.f32.mrf.mxu0
      %v384 = vpop.f32.mrf.mxu0
      %v385 = vadd.f32 0.0, %v384
      %v386 = vpop.f32.mrf.mxu0
      %387 = vmatprep.mubr.bf16.mxu0 0
      %388 = vmatmul.mubr.bf16.gmra.mxu0 %v284
      %v389 = vpop.f32.mrf.mxu0
      %v390 = vadd.f32 0.0, %v389
      %v391 = vpop.f32.mrf.mxu0
      %v392 = vpop.f32.mrf.mxu0
      %v393 = vadd.f32 0.0, %v392
      %v394 = vpop.f32.mrf.mxu0
      %395 = vmatprep.mubr.bf16.mxu0 0
      %396 = vmatmul.mubr.bf16.gmra.mxu0 %v285
      %v397 = vpop.f32.mrf.mxu0
      %v398 = vadd.f32 0.0, %v397
      %v399 = vpop.f32.mrf.mxu0
      %v400 = vpop.f32.mrf.mxu0
      %v401 = vadd.f32 0.0, %v400
      %v402 = vpop.f32.mrf.mxu0
      %403 = vmatprep.mubr.bf16.mxu0 0
      %404 = vmatmul.mubr.bf16.gmra.mxu0 %v286
      %v405 = vpop.f32.mrf.mxu0
      %v406 = vadd.f32 0.0, %v405
      %v407 = vpop.f32.mrf.mxu0
      %v408 = vpop.f32.mrf.mxu0
      %v409 = vadd.f32 0.0, %v408
      %v410 = vpop.f32.mrf.mxu0
      %411 = vmatprep.mubr.bf16.mxu0 0
      %412 = vmatmul.mubr.bf16.gmra.mxu0 %v287
      %v413 = vpop.f32.mrf.mxu0
      %v414 = vadd.f32 0.0, %v413
      %v415 = vpop.f32.mrf.mxu0
      %v416 = vpop.f32.mrf.mxu0
      %v417 = vadd.f32 0.0, %v416
      %v418 = vpop.f32.mrf.mxu0
      %419 = vmatprep.mubr.bf16.mxu0 0
      %420 = vmatmul.mubr.bf16.gmra.mxu0 %v288
      %v421 = vpop.f32.mrf.mxu0
      %v422 = vadd.f32 0.0, %v421
      %v423 = vpop.f32.mrf.mxu0
      %v424 = vpop.f32.mrf.mxu0
      %v425 = vadd.f32 0.0, %v424
      %v426 = vpop.f32.mrf.mxu0
      %427 = vmatprep.mubr.bf16.mxu0 0
      %428 = vmatmul.mubr.bf16.gmra.mxu0 %v289
      %v429 = vpop.f32.mrf.mxu0
      %v430 = vadd.f32 0.0, %v429
      %v431 = vpop.f32.mrf.mxu0
      %v432 = vpop.f32.mrf.mxu0
      %v433 = vadd.f32 0.0, %v432
      %v434 = vpop.f32.mrf.mxu0
      %435 = vmatprep.mubr.bf16.mxu0 0
      %436 = vmatmul.mubr.bf16.gmra.mxu0 %v290
      %v437 = vpop.f32.mrf.mxu0
      %v438 = vadd.f32 0.0, %v437
      %v439 = vpop.f32.mrf.mxu0
      %v440 = vpop.f32.mrf.mxu0
      %v441 = vadd.f32 0.0, %v440
      %v442 = vpop.f32.mrf.mxu0
      %443 = vdwg.mxu0
      %v444 = vpack.c.bf16 %v385, %v382
      %v445 = vpack.c.bf16 %v393, %v390
      %v446 = vpack.c.bf16 %v401, %v398
      %v447 = vpack.c.bf16 %v409, %v406
      %v448 = vpack.c.bf16 %v417, %v414
      %v449 = vpack.c.bf16 %v425, %v422
      %v450 = vpack.c.bf16 %v433, %v430
      %v451 = vpack.c.bf16 %v441, %v438
      %v460 = vunpack.c.l.b16 %v444
      %v461 = vunpack.c.h.b16 %v444
      %v462 = vunpack.c.l.b16 %v445
      %v463 = vunpack.c.h.b16 %v445
      %v464 = vunpack.c.l.b16 %v446
      %v465 = vunpack.c.h.b16 %v446
      %v466 = vunpack.c.l.b16 %v447
      %v467 = vunpack.c.h.b16 %v447
      %v468 = vunpack.c.l.b16 %v448
      %v469 = vunpack.c.h.b16 %v448
      %v470 = vunpack.c.l.b16 %v449
      %v471 = vunpack.c.h.b16 %v449
      %v472 = vunpack.c.l.b16 %v450
      %v473 = vunpack.c.h.b16 %v450
      %v474 = vunpack.c.l.b16 %v451
      %v475 = vunpack.c.h.b16 %v451
      %v476 = vpack.c.b16 %v460, %v460
      %v477 = vpack.c.b16 %v461, %v461
      %v478 = vpack.c.b16 %v462, %v462
      %v479 = vpack.c.b16 %v463, %v463
      %v480 = vpack.c.b16 %v464, %v464
      %v481 = vpack.c.b16 %v465, %v465
      %v482 = vpack.c.b16 %v466, %v466
      %v483 = vpack.c.b16 %v467, %v467
      %v484 = vpack.c.b16 %v468, %v468
      %v485 = vpack.c.b16 %v469, %v469
      %v486 = vpack.c.b16 %v470, %v470
      %v487 = vpack.c.b16 %v471, %v471
      %v488 = vpack.c.b16 %v472, %v472
      %v489 = vpack.c.b16 %v473, %v473
      %v490 = vpack.c.b16 %v474, %v474
      %v491 = vpack.c.b16 %v475, %v475
      %508 = vst [vmem:[%s210] sm:$0xf] %v476
      %509 = vst [vmem:[%s210 + $0x4] sm:$0xf] %v477
      %510 = vst [vmem:[%s210 + $0x8] sm:$0xf] %v478
      %511 = vst [vmem:[%s210 + $0xc] sm:$0xf] %v479
      %512 = vst [vmem:[%s210 + $0x10] sm:$0xf] %v480
      %513 = vst [vmem:[%s210 + $0x14] sm:$0xf] %v481
      %514 = vst [vmem:[%s210 + $0x18] sm:$0xf] %v482
      %515 = vst [vmem:[%s210 + $0x1c] sm:$0xf] %v483
      %516 = vst [vmem:[%s210 + $0x20] sm:$0xf] %v484
      %517 = vst [vmem:[%s210 + $0x24] sm:$0xf] %v485
      %518 = vst [vmem:[%s210 + $0x28] sm:$0xf] %v486
      %519 = vst [vmem:[%s210 + $0x2c] sm:$0xf] %v487
      %520 = vst [vmem:[%s210 + $0x30] sm:$0xf] %v488
      %521 = vst [vmem:[%s210 + $0x34] sm:$0xf] %v489
      %522 = vst [vmem:[%s210 + $0x38] sm:$0xf] %v490
      %523 = vst [vmem:[%s210 + $0x3c] sm:$0xf] %v491
      %v524 = vunpack.c.l.bf16 %v444
      %v525 = vunpack.c.h.bf16 %v444
      %v526 = vunpack.c.l.bf16 %v445
      %v527 = vunpack.c.h.bf16 %v445
      %v528 = vunpack.c.l.bf16 %v446
      %v529 = vunpack.c.h.bf16 %v446
      %v530 = vunpack.c.l.bf16 %v447
      %v531 = vunpack.c.h.bf16 %v447
      %v532 = vunpack.c.l.bf16 %v448
      %v533 = vunpack.c.h.bf16 %v448
      %v534 = vunpack.c.l.bf16 %v449
      %v535 = vunpack.c.h.bf16 %v449
      %v536 = vunpack.c.l.bf16 %v450
      %v537 = vunpack.c.h.bf16 %v450
      %v538 = vunpack.c.l.bf16 %v451
      %v539 = vunpack.c.h.bf16 %v451
      %v540 = vadd.f32 %v524, %v525
      %v541 = vadd.f32 %v540, %v526
      %v542 = vadd.f32 %v541, %v527
      %v543 = vadd.f32 %v542, %v528
      %v544 = vadd.f32 %v543, %v529
      %v545 = vadd.f32 %v544, %v530
      %v546 = vadd.f32 %v545, %v531
      %v547 = vadd.f32 %v546, %v532
      %v548 = vadd.f32 %v547, %v533
      %v549 = vadd.f32 %v548, %v534
      %v550 = vadd.f32 %v549, %v535
      %v551 = vadd.f32 %v550, %v536
      %v552 = vadd.f32 %v551, %v537
      %v553 = vadd.f32 %v552, %v538
      %v554 = vadd.f32 %v553, %v539
      %v555 = vrot.slane %v554, 4
      %v556 = vadd.f32 %v554, %v555
      %v557 = vrot.slane %v556, 2
      %v558 = vadd.f32 %v556, %v557
      %v559 = vrot.slane %v558, 1
      %v560 = vadd.f32 %v558, %v559
      %561 = vst [vmem:[%s214] sm:$0x1] %v560
      %v562 = vmul.f32 %v524, %v524
      %v563 = vmul.f32 %v525, %v525
      %v564 = vmul.f32 %v526, %v526
      %v565 = vmul.f32 %v527, %v527
      %v566 = vmul.f32 %v528, %v528
      %v567 = vmul.f32 %v529, %v529
      %v568 = vmul.f32 %v530, %v530
      %v569 = vmul.f32 %v531, %v531
      %v570 = vmul.f32 %v532, %v532
      %v571 = vmul.f32 %v533, %v533
      %v572 = vmul.f32 %v534, %v534
      %v573 = vmul.f32 %v535, %v535
      %v574 = vmul.f32 %v536, %v536
      %v575 = vmul.f32 %v537, %v537
      %v576 = vmul.f32 %v538, %v538
      %v577 = vmul.f32 %v539, %v539
      %v578 = vadd.f32 %v562, %v563
      %v579 = vadd.f32 %v578, %v564
      %v580 = vadd.f32 %v579, %v565
      %v581 = vadd.f32 %v580, %v566
      %v582 = vadd.f32 %v581, %v567
      %v583 = vadd.f32 %v582, %v568
      %v584 = vadd.f32 %v583, %v569
      %v585 = vadd.f32 %v584, %v570
      %v586 = vadd.f32 %v585, %v571
      %v587 = vadd.f32 %v586, %v572
      %v588 = vadd.f32 %v587, %v573
      %v589 = vadd.f32 %v588, %v574
      %v590 = vadd.f32 %v589, %v575
      %v591 = vadd.f32 %v590, %v576
      %v592 = vadd.f32 %v591, %v577
      %v593 = vrot.slane %v592, 4
      %v594 = vadd.f32 %v592, %v593
      %v595 = vrot.slane %v594, 2
      %v596 = vadd.f32 %v594, %v595
      %v597 = vrot.slane %v596, 1
      %v598 = vadd.f32 %v596, %v597
      %599 = vst [vmem:[%s217] sm:$0x1] %v598
      %s600 = smul.u32 16, %s16
      %p601 = scmp.lt.s32.totalorder %s600, 63
      %s602 = scalar_select %p601, %s600, 63
      %s603 = smul.addr %s602, 4
      %s604 = scalar_lea.vmem %s2, %s603
      %p605 = scmp.lt.s32.totalorder %s16, 3
      %s606 = scalar_select %p605, %s16, 3
      %s607 = scalar_lea.vmem %s3, %s606
      %p608 = scmp.lt.s32.totalorder %s16, 3
      %s609 = scalar_select %p608, %s16, 3
      %s610 = scalar_lea.vmem %s4, %s609
      // Predicated region
      $region29: #{bottleneck_forward.5} parent=27 // pred_check
        %p611 = pneg %p81
      $region30: #{bottleneck_forward.5} parent=27 // pred_check_branch
        %613 = sbr.rel (%p611) target = $region32
      $region31: #{bottleneck_forward.5} parent=27 // pred_region
        %s614 = smul.u32 16, %s16
      $region32: #{bottleneck_forward.5} parent=27 // pred_fallthru
        _
      // Predicated region
      $region33: #{bottleneck_forward.5} parent=27 // pred_check
        %p615 = pneg %p107
      $region34: #{bottleneck_forward.5} parent=27 // pred_check_branch
        %617 = sbr.rel (%p615) target = $region36
      $region35: #{bottleneck_forward.5} parent=27 // pred_region
        _
      $region36: #{bottleneck_forward.5} parent=27 // pred_fallthru
        _
      // Predicated region
      $region37: #{bottleneck_forward.5} parent=27 // pred_check
        %p618 = pneg %p133
      $region38: #{bottleneck_forward.5} parent=27 // pred_check_branch
        %620 = sbr.rel (%p618) target = $region40
      $region39: #{bottleneck_forward.5} parent=27 // pred_region
        _
      $region40: #{bottleneck_forward.5} parent=27 // pred_fallthru
        _
    $region28: #{bottleneck_forward.5} parent=5 // pred_fallthru
      _
    %p621 = scmp.le.s32.totalorder 2, %s11
    // Predicated region
    $region41: #{bottleneck_forward.5} parent=5 // pred_check
      %p622 = pneg %p621
    $region42: #{bottleneck_forward.5} parent=5 // pred_check_branch
      %624 = sbr.rel (%p622) target = $region44
    $region43: #{bottleneck_forward.5} parent=5 // pred_region
      %s625 = ssub.s32 %s11, 2
      // Predicated region
      $region45: #{bottleneck_forward.5} parent=43 // pred_check
        %p626 = pneg %p87
      $region46: #{bottleneck_forward.5} parent=43 // pred_check_branch
        %628 = sbr.rel (%p626) target = $region48
      $region47: #{bottleneck_forward.5} parent=43 // pred_region
        %s629 = smul.u32 16, %s17
        %p630 = scmp.lt.s32.totalorder %s629, 63
        %s631 = scalar_select %p630, %s629, 63
        %s632 = smul.addr %s631, 4
        %s633 = scalar_lea.vmem %s2, %s632
      $region48: #{bottleneck_forward.5} parent=43 // pred_fallthru
        _
      // Predicated region
      $region49: #{bottleneck_forward.5} parent=43 // pred_check
        %p634 = pneg %p113
      $region50: #{bottleneck_forward.5} parent=43 // pred_check_branch
        %636 = sbr.rel (%p634) target = $region52
      $region51: #{bottleneck_forward.5} parent=43 // pred_region
        %p637 = scmp.lt.s32.totalorder %s17, 3
        %s638 = scalar_select %p637, %s17, 3
        %s639 = scalar_lea.vmem %s3, %s638
      $region52: #{bottleneck_forward.5} parent=43 // pred_fallthru
        _
      // Predicated region
      $region53: #{bottleneck_forward.5} parent=43 // pred_check
        %p640 = pneg %p139
      $region54: #{bottleneck_forward.5} parent=43 // pred_check_branch
        %642 = sbr.rel (%p640) target = $region56
      $region55: #{bottleneck_forward.5} parent=43 // pred_region
        %p643 = scmp.lt.s32.totalorder %s17, 3
        %s644 = scalar_select %p643, %s17, 3
        %s645 = scalar_lea.vmem %s4, %s644
      $region56: #{bottleneck_forward.5} parent=43 // pred_fallthru
        _
    $region44: #{bottleneck_forward.5} parent=5 // pred_fallthru
      _
  $region6: #{bottleneck_forward.5} parent=0 // loop_footer
    %s15 = sadd.s32 1, %s11
  $region7: #{bottleneck_forward.5} parent=0 // loop_footer_branch
    %10 = sbr.rel target = $region3
  $region8: #{bottleneck_forward.5} parent=0 // loop_exit
    _

// kernel: bottleneck_forward.7
$region0: #{bottleneck_forward.7}
  #allocation0 [shape = 'u32[]', space=smem, size = 0x4, offset = 0x4, fixed_abs, tag = 'smem constant byte address 0x4 - core index']
  #allocation1 [shape = 'u32[144,128]{1,0:T(1,128)}', space=vmem, size = 0x12000, scoped, tag = 'internal scratch']
  %s0 = inlined_call_operand.vmem [shape: bf16[2,72,128], index: 0, kind: input, shape index: {}]
  %s1 = inlined_call_operand.vmem [shape: bf16[2,72,128], index: 1, kind: input, shape index: {}]
  %s2 = inlined_call_operand.vmem [shape: bf16[2,72,128], index: 2, kind: input, shape index: {}]
  %s3 = inlined_call_operand.vmem [shape: bf16[2,72,128], index: 3, kind: input, shape index: {}]
  %s4 = inlined_call_operand.vmem [shape: bf16[2,72,128], index: 4, kind: input, shape index: {}]
  %s5 = inlined_call_operand.vmem [shape: bf16[2,72,128], index: 5, kind: input, shape index: {}]
  %s6 = inlined_call_operand.vmem [shape: bf16[9,128,128], index: 6, kind: input, shape index: {}]
  %s7 = inlined_call_operand.vmem [shape: bf16[2,64,128], index: 7, kind: output, shape index: {0}]
  %s8 = inlined_call_operand.vmem [shape: f32[2,2,1,128], index: 8, kind: output, shape index: {1}]
  %s9 = inlined_call_operand.vmem [shape: f32[2,2,1,128], index: 9, kind: output, shape index: {2}]
  %10 = xla_tuple %s7, %s8, %s9
  %s11 = sld [smem:[#allocation0]]
  $region77: #{bottleneck_forward.7} parent=0
    _
  %s13 = ssub.s32 1, %s11
  %s14 = scalar_select 0, %s13, %s11
  loop: start=0, step=1, limit=6
  $region2: #{bottleneck_forward.7} parent=0 // loop_pre_header
    _
  $region3: #{bottleneck_forward.7} parent=0 // loop_header
    %s16 = sphi 0, %s20
    %p17 = scmp.ge.s32.totalorder %s16, 6
    %s23 = sphi 0, %s35
    %s24 = sphi 0, %s31
    %s25 = sphi 0, %s23
    %s26 = sphi 0, %s24
    %s27 = sphi 0, %s25
    %s28 = sphi 0, %s26
    %s38 = sphi 0, %s40
    %s41 = sphi 0, %s38
    %s42 = sphi 0, %s41
    %s58 = sphi 0, %s42
    %s64 = sphi 0, %s66
    %s67 = sphi 0, %s64
    %s68 = sphi 0, %s67
    %s84 = sphi 0, %s68
    %s90 = sphi 0, %s92
    %s93 = sphi 0, %s90
    %s94 = sphi 0, %s93
    %s110 = sphi 0, %s94
    %s116 = sphi 0, %s118
    %s119 = sphi 0, %s116
    %s120 = sphi 0, %s119
    %s136 = sphi 0, %s120
    %s142 = sphi 0, %s144
    %s145 = sphi 0, %s142
    %s146 = sphi 0, %s145
    %s162 = sphi 0, %s146
    %s168 = sphi 0, %s170
    %s171 = sphi 0, %s168
    %s172 = sphi 0, %s171
    %s188 = sphi 0, %s172
    %s192 = sphi 0, %s192
    %s194 = sphi 0, %s192
    %s195 = sphi 0, %s194
    %s209 = sphi 0, %s195
    %s217 = sphi 0, %s219
    %s220 = sphi 0, %s217
    %s221 = sphi 0, %s220
    %s237 = sphi 0, %s221
    %s245 = sphi 0, %s247
    %s248 = sphi 0, %s245
    %s249 = sphi 0, %s248
    %s265 = sphi 0, %s249
    %s273 = sphi 0, %s275
    %s276 = sphi 0, %s273
    %s277 = sphi 0, %s276
    %s293 = sphi 0, %s277
  $region4: #{bottleneck_forward.7} parent=0 // loop_header_branch
    %19 = sbr.rel (%p17) target = $region8
  $region5: #{bottleneck_forward.7} parent=0 // loop_body
    %s21 = ssub.s32 %s16, 1
    %s22 = ssub.s32 %s16, 2
    %s29 = sadd.s32 1, %s24
    %p30 = scmp.ge.s32.totalorder %s29, 2
    %s31 = scalar_select %p30, 0, %s29
    %s32 = sadd.s32 1, %s23
    %s33 = scalar_select %p30, %s32, %s23
    %p34 = scmp.ge.s32.totalorder %s33, 2
    %s35 = scalar_select %p34, 0, %s33
    %s36 = ssub.s32 %s23, %s35
    %p37 = scmp.eq.s32.totalorder %s36, 0
    %s39 = sadd.s32 %s38, 1
    %s40 = scalar_select %p37, %s38, %s39
    %p43 = pneg %p37
    %p44 = scmp.eq.s32.totalorder %s16, 3
    %p45 = por %p43, %p44
    %p46 = scmp.ne.s32.totalorder %s38, %s41
    %p47 = scmp.eq.s32.totalorder %s16, 0
    %p48 = por %p46, %p47
    %p49 = scmp.ne.s32.totalorder %s38, %s41
    %p50 = scmp.eq.s32.totalorder %s21, 3
    %p51 = por %p49, %p50
    %p52 = scmp.ne.s32.totalorder %s41, %s42
    %p53 = scmp.eq.s32.totalorder %s21, 0
    %p54 = por %p52, %p53
    %p55 = scmp.ne.s32.totalorder %s41, %s42
    %p56 = scmp.eq.s32.totalorder %s22, 3
    %p57 = por %p55, %p56
    %p59 = scmp.ne.s32.totalorder %s42, %s58
    %p60 = scmp.eq.s32.totalorder %s22, 0
    %p61 = por %p59, %p60
    %s62 = ssub.s32 %s23, %s35
    %p63 = scmp.eq.s32.totalorder %s62, 0
    %s65 = sadd.s32 %s64, 1
    %s66 = scalar_select %p63, %s64, %s65
    %p69 = pneg %p63
    %p70 = scmp.eq.s32.totalorder %s16, 3
    %p71 = por %p69, %p70
    %p72 = scmp.ne.s32.totalorder %s64, %s67
    %p73 = scmp.eq.s32.totalorder %s16, 0
    %p74 = por %p72, %p73
    %p75 = scmp.ne.s32.totalorder %s64, %s67
    %p76 = scmp.eq.s32.totalorder %s21, 3
    %p77 = por %p75, %p76
    %p78 = scmp.ne.s32.totalorder %s67, %s68
    %p79 = scmp.eq.s32.totalorder %s21, 0
    %p80 = por %p78, %p79
    %p81 = scmp.ne.s32.totalorder %s67, %s68
    %p82 = scmp.eq.s32.totalorder %s22, 3
    %p83 = por %p81, %p82
    %p85 = scmp.ne.s32.totalorder %s68, %s84
    %p86 = scmp.eq.s32.totalorder %s22, 0
    %p87 = por %p85, %p86
    %s88 = ssub.s32 %s23, %s35
    %p89 = scmp.eq.s32.totalorder %s88, 0
    %s91 = sadd.s32 %s90, 1
    %s92 = scalar_select %p89, %s90, %s91
    %p95 = pneg %p89
    %p96 = scmp.eq.s32.totalorder %s16, 3
    %p97 = por %p95, %p96
    %p98 = scmp.ne.s32.totalorder %s90, %s93
    %p99 = scmp.eq.s32.totalorder %s16, 0
    %p100 = por %p98, %p99
    %p101 = scmp.ne.s32.totalorder %s90, %s93
    %p102 = scmp.eq.s32.totalorder %s21, 3
    %p103 = por %p101, %p102
    %p104 = scmp.ne.s32.totalorder %s93, %s94
    %p105 = scmp.eq.s32.totalorder %s21, 0
    %p106 = por %p104, %p105
    %p107 = scmp.ne.s32.totalorder %s93, %s94
    %p108 = scmp.eq.s32.totalorder %s22, 3
    %p109 = por %p107, %p108
    %p111 = scmp.ne.s32.totalorder %s94, %s110
    %p112 = scmp.eq.s32.totalorder %s22, 0
    %p113 = por %p111, %p112
    %s114 = ssub.s32 %s23, %s35
    %p115 = scmp.eq.s32.totalorder %s114, 0
    %s117 = sadd.s32 %s116, 1
    %s118 = scalar_select %p115, %s116, %s117
    %p121 = pneg %p115
    %p122 = scmp.eq.s32.totalorder %s16, 3
    %p123 = por %p121, %p122
    %p124 = scmp.ne.s32.totalorder %s116, %s119
    %p125 = scmp.eq.s32.totalorder %s16, 0
    %p126 = por %p124, %p125
    %p127 = scmp.ne.s32.totalorder %s116, %s119
    %p128 = scmp.eq.s32.totalorder %s21, 3
    %p129 = por %p127, %p128
    %p130 = scmp.ne.s32.totalorder %s119, %s120
    %p131 = scmp.eq.s32.totalorder %s21, 0
    %p132 = por %p130, %p131
    %p133 = scmp.ne.s32.totalorder %s119, %s120
    %p134 = scmp.eq.s32.totalorder %s22, 3
    %p135 = por %p133, %p134
    %p137 = scmp.ne.s32.totalorder %s120, %s136
    %p138 = scmp.eq.s32.totalorder %s22, 0
    %p139 = por %p137, %p138
    %s140 = ssub.s32 %s23, %s35
    %p141 = scmp.eq.s32.totalorder %s140, 0
    %s143 = sadd.s32 %s142, 1
    %s144 = scalar_select %p141, %s142, %s143
    %p147 = pneg %p141
    %p148 = scmp.eq.s32.totalorder %s16, 3
    %p149 = por %p147, %p148
    %p150 = scmp.ne.s32.totalorder %s142, %s145
    %p151 = scmp.eq.s32.totalorder %s16, 0
    %p152 = por %p150, %p151
    %p153 = scmp.ne.s32.totalorder %s142, %s145
    %p154 = scmp.eq.s32.totalorder %s21, 3
    %p155 = por %p153, %p154
    %p156 = scmp.ne.s32.totalorder %s145, %s146
    %p157 = scmp.eq.s32.totalorder %s21, 0
    %p158 = por %p156, %p157
    %p159 = scmp.ne.s32.totalorder %s145, %s146
    %p160 = scmp.eq.s32.totalorder %s22, 3
    %p161 = por %p159, %p160
    %p163 = scmp.ne.s32.totalorder %s146, %s162
    %p164 = scmp.eq.s32.totalorder %s22, 0
    %p165 = por %p163, %p164
    %s166 = ssub.s32 %s23, %s35
    %p167 = scmp.eq.s32.totalorder %s166, 0
    %s169 = sadd.s32 %s168, 1
    %s170 = scalar_select %p167, %s168, %s169
    %p173 = pneg %p167
    %p174 = scmp.eq.s32.totalorder %s16, 3
    %p175 = por %p173, %p174
    %p176 = scmp.ne.s32.totalorder %s168, %s171
    %p177 = scmp.eq.s32.totalorder %s16, 0
    %p178 = por %p176, %p177
    %p179 = scmp.ne.s32.totalorder %s168, %s171
    %p180 = scmp.eq.s32.totalorder %s21, 3
    %p181 = por %p179, %p180
    %p182 = scmp.ne.s32.totalorder %s171, %s172
    %p183 = scmp.eq.s32.totalorder %s21, 0
    %p184 = por %p182, %p183
    %p185 = scmp.ne.s32.totalorder %s171, %s172
    %p186 = scmp.eq.s32.totalorder %s22, 3
    %p187 = por %p185, %p186
    %p189 = scmp.ne.s32.totalorder %s172, %s188
    %p190 = scmp.eq.s32.totalorder %s22, 0
    %p191 = por %p189, %p190
    %s193 = sadd.s32 %s192, 1
    %p196 = scmp.eq.s32.totalorder %s16, 3
    %p197 = scmp.ne.s32.totalorder %s192, %s194
    %p198 = scmp.eq.s32.totalorder %s16, 0
    %p199 = por %p197, %p198
    %p200 = scmp.ne.s32.totalorder %s192, %s194
    %p201 = scmp.eq.s32.totalorder %s21, 3
    %p202 = por %p200, %p201
    %p203 = scmp.ne.s32.totalorder %s194, %s195
    %p204 = scmp.eq.s32.totalorder %s21, 0
    %p205 = por %p203, %p204
    %p206 = scmp.ne.s32.totalorder %s194, %s195
    %p207 = scmp.eq.s32.totalorder %s22, 3
    %p208 = por %p206, %p207
    %p210 = scmp.ne.s32.totalorder %s195, %s209
    %p211 = scmp.eq.s32.totalorder %s22, 0
    %p212 = por %p210, %p211
    %s213 = ssub.s32 %s23, %s35
    %s214 = ssub.s32 %s24, %s31
    %s215 = sor.u32 %s213, %s214
    %p216 = scmp.eq.s32.totalorder %s215, 0
    %s218 = sadd.s32 %s217, 1
    %s219 = scalar_select %p216, %s217, %s218
    %p222 = pneg %p216
    %p223 = scmp.eq.s32.totalorder %s16, 3
    %p224 = por %p222, %p223
    %p225 = scmp.ne.s32.totalorder %s217, %s220
    %p226 = scmp.eq.s32.totalorder %s16, 0
    %p227 = por %p225, %p226
    %p228 = scmp.ne.s32.totalorder %s217, %s220
    %p229 = scmp.eq.s32.totalorder %s21, 3
    %p230 = por %p228, %p229
    %p231 = scmp.ne.s32.totalorder %s220, %s221
    %p232 = scmp.eq.s32.totalorder %s21, 0
    %p233 = por %p231, %p232
    %p234 = scmp.ne.s32.totalorder %s220, %s221
    %p235 = scmp.eq.s32.totalorder %s22, 3
    %p236 = por %p234, %p235
    %p238 = scmp.ne.s32.totalorder %s221, %s237
    %p239 = scmp.eq.s32.totalorder %s22, 0
    %p240 = por %p238, %p239
    %s241 = ssub.s32 %s23, %s35
    %s242 = ssub.s32 %s24, %s31
    %s243 = sor.u32 %s241, %s242
    %p244 = scmp.eq.s32.totalorder %s243, 0
    %s246 = sadd.s32 %s245, 1
    %s247 = scalar_select %p244, %s245, %s246
    %p250 = pneg %p244
    %p251 = scmp.eq.s32.totalorder %s16, 3
    %p252 = por %p250, %p251
    %p253 = scmp.ne.s32.totalorder %s245, %s248
    %p254 = scmp.eq.s32.totalorder %s16, 0
    %p255 = por %p253, %p254
    %p256 = scmp.ne.s32.totalorder %s245, %s248
    %p257 = scmp.eq.s32.totalorder %s21, 3
    %p258 = por %p256, %p257
    %p259 = scmp.ne.s32.totalorder %s248, %s249
    %p260 = scmp.eq.s32.totalorder %s21, 0
    %p261 = por %p259, %p260
    %p262 = scmp.ne.s32.totalorder %s248, %s249
    %p263 = scmp.eq.s32.totalorder %s22, 3
    %p264 = por %p262, %p263
    %p266 = scmp.ne.s32.totalorder %s249, %s265
    %p267 = scmp.eq.s32.totalorder %s22, 0
    %p268 = por %p266, %p267
    %s269 = ssub.s32 %s23, %s35
    %s270 = ssub.s32 %s24, %s31
    %s271 = sor.u32 %s269, %s270
    %p272 = scmp.eq.s32.totalorder %s271, 0
    %s274 = sadd.s32 %s273, 1
    %s275 = scalar_select %p272, %s273, %s274
    %p278 = pneg %p272
    %p279 = scmp.eq.s32.totalorder %s16, 3
    %p280 = por %p278, %p279
    %p281 = scmp.ne.s32.totalorder %s273, %s276
    %p282 = scmp.eq.s32.totalorder %s16, 0
    %p283 = por %p281, %p282
    %p284 = scmp.ne.s32.totalorder %s273, %s276
    %p285 = scmp.eq.s32.totalorder %s21, 3
    %p286 = por %p284, %p285
    %p287 = scmp.ne.s32.totalorder %s276, %s277
    %p288 = scmp.eq.s32.totalorder %s21, 0
    %p289 = por %p287, %p288
    %p290 = scmp.ne.s32.totalorder %s276, %s277
    %p291 = scmp.eq.s32.totalorder %s22, 3
    %p292 = por %p290, %p291
    %p294 = scmp.ne.s32.totalorder %s277, %s293
    %p295 = scmp.eq.s32.totalorder %s22, 0
    %p296 = por %p294, %p295
    %p297 = scmp.le.s32.totalorder 1, %s16
    %p298 = scmp.lt.s32.totalorder %s16, 5
    %p299 = pnand %p297, %p298
    %p300 = pneg %p299
    // Predicated region
    $region9: #{bottleneck_forward.7} parent=5 // pred_check
      _
    $region10: #{bottleneck_forward.7} parent=5 // pred_check_branch
      %302 = sbr.rel (%p299) target = $region12
    $region11: #{bottleneck_forward.7} parent=5 // pred_region
      %s303 = ssub.s32 %s16, 1
      // Predicated region
      $region13: #{bottleneck_forward.7} parent=11 // pred_check
        %p304 = pneg %p205
      $region14: #{bottleneck_forward.7} parent=11 // pred_check_branch
        %306 = sbr.rel (%p304) target = $region16
      $region15: #{bottleneck_forward.7} parent=11 // pred_region
        _
      $region16: #{bottleneck_forward.7} parent=11 // pred_fallthru
        _
    $region12: #{bottleneck_forward.7} parent=5 // pred_fallthru
      _
    %p307 = scmp.lt.s32.totalorder %s16, 4
    // Predicated region
    $region17: #{bottleneck_forward.7} parent=5 // pred_check
      %p308 = pneg %p307
    $region18: #{bottleneck_forward.7} parent=5 // pred_check_branch
      %310 = sbr.rel (%p308) target = $region20
    $region19: #{bottleneck_forward.7} parent=5 // pred_region
      // Predicated region
      $region21: #{bottleneck_forward.7} parent=19 // pred_check
        %p311 = pneg %p48
      $region22: #{bottleneck_forward.7} parent=19 // pred_check_branch
        %313 = sbr.rel (%p311) target = $region24
      $region23: #{bottleneck_forward.7} parent=19 // pred_region
        %p314 = scmp.lt.s32.totalorder %s23, 1
        %s315 = scalar_select %p314, %s23, 1
        %s316 = smul.addr %s315, 9
        %s317 = smul.addr %s316, 4
        %s318 = scalar_lea.vmem %s0, %s317
      $region24: #{bottleneck_forward.7} parent=19 // pred_fallthru
        _
      // Predicated region
      $region25: #{bottleneck_forward.7} parent=19 // pred_check
        %p319 = pneg %p74
      $region26: #{bottleneck_forward.7} parent=19 // pred_check_branch
        %321 = sbr.rel (%p319) target = $region28
      $region27: #{bottleneck_forward.7} parent=19 // pred_region
        %p322 = scmp.lt.s32.totalorder %s23, 1
        %s323 = scalar_select %p322, %s23, 1
        %s324 = smul.addr %s323, 9
        %s325 = smul.addr %s324, 4
        %s326 = scalar_lea.vmem %s1, %s325
      $region28: #{bottleneck_forward.7} parent=19 // pred_fallthru
        _
      // Predicated region
      $region29: #{bottleneck_forward.7} parent=19 // pred_check
        %p327 = pneg %p100
      $region30: #{bottleneck_forward.7} parent=19 // pred_check_branch
        %329 = sbr.rel (%p327) target = $region32
      $region31: #{bottleneck_forward.7} parent=19 // pred_region
        %p330 = scmp.lt.s32.totalorder %s23, 1
        %s331 = scalar_select %p330, %s23, 1
        %s332 = smul.addr %s331, 9
        %s333 = smul.addr %s332, 4
        %s334 = scalar_lea.vmem %s2, %s333
      $region32: #{bottleneck_forward.7} parent=19 // pred_fallthru
        _
      // Predicated region
      $region33: #{bottleneck_forward.7} parent=19 // pred_check
        %p335 = pneg %p126
      $region34: #{bottleneck_forward.7} parent=19 // pred_check_branch
        %337 = sbr.rel (%p335) target = $region36
      $region35: #{bottleneck_forward.7} parent=19 // pred_region
        %p338 = scmp.lt.s32.totalorder %s23, 1
        %s339 = scalar_select %p338, %s23, 1
        %s340 = smul.addr %s339, 9
        %s341 = smul.addr %s340, 4
        %s342 = scalar_lea.vmem %s3, %s341
      $region36: #{bottleneck_forward.7} parent=19 // pred_fallthru
        _
      // Predicated region
      $region37: #{bottleneck_forward.7} parent=19 // pred_check
        %p343 = pneg %p152
      $region38: #{bottleneck_forward.7} parent=19 // pred_check_branch
        %345 = sbr.rel (%p343) target = $region40
      $region39: #{bottleneck_forward.7} parent=19 // pred_region
        %p346 = scmp.lt.s32.totalorder %s23, 1
        %s347 = scalar_select %p346, %s23, 1
        %s348 = smul.addr %s347, 9
        %s349 = smul.addr %s348, 4
        %s350 = scalar_lea.vmem %s4, %s349
      $region40: #{bottleneck_forward.7} parent=19 // pred_fallthru
        _
      // Predicated region
      $region41: #{bottleneck_forward.7} parent=19 // pred_check
        %p351 = pneg %p178
      $region42: #{bottleneck_forward.7} parent=19 // pred_check_branch
        %353 = sbr.rel (%p351) target = $region44
      $region43: #{bottleneck_forward.7} parent=19 // pred_region
        %p354 = scmp.lt.s32.totalorder %s23, 1
        %s355 = scalar_select %p354, %s23, 1
        %s356 = smul.addr %s355, 9
        %s357 = smul.addr %s356, 4
        %s358 = scalar_lea.vmem %s5, %s357
      $region44: #{bottleneck_forward.7} parent=19 // pred_fallthru
        _
    $region20: #{bottleneck_forward.7} parent=5 // pred_fallthru
      _
    %p359 = scmp.le.s32.totalorder 1, %s16
    %p360 = scmp.lt.s32.totalorder %s16, 5
    %p361 = pnand %p359, %p360
    %p362 = pneg %p361
    // Predicated region
    $region45: #{bottleneck_forward.7} parent=5 // pred_check
      _
    $region46: #{bottleneck_forward.7} parent=5 // pred_check_branch
      %364 = sbr.rel (%p361) target = $region48
    $region47: #{bottleneck_forward.7} parent=5 // pred_region
      %s365 = ssub.s32 %s16, 1
      %p366 = scmp.lt.s32.totalorder %s25, 1
      %s367 = scalar_select %p366, %s25, 1
      %s368 = smul.addr %s367, 9
      %s369 = smul.addr %s368, 4
      %s370 = scalar_lea.vmem %s0, %s369
      %p371 = pneg %p54
      %p372 = pneg %p51
      %p373 = scmp.lt.s32.totalorder %s25, 1
      %s374 = scalar_select %p373, %s25, 1
      %s375 = smul.addr %s374, 9
      %s376 = smul.addr %s375, 4
      %s377 = scalar_lea.vmem %s1, %s376
      %p378 = pneg %p80
      %p379 = pneg %p77
      %p380 = scmp.lt.s32.totalorder %s25, 1
      %s381 = scalar_select %p380, %s25, 1
      %s382 = smul.addr %s381, 9
      %s383 = smul.addr %s382, 4
      %s384 = scalar_lea.vmem %s2, %s383
      %p385 = pneg %p106
      %p386 = pneg %p103
      %p387 = scmp.lt.s32.totalorder %s25, 1
      %s388 = scalar_select %p387, %s25, 1
      %s389 = smul.addr %s388, 9
      %s390 = smul.addr %s389, 4
      %s391 = scalar_lea.vmem %s3, %s390
      %p392 = pneg %p132
      %p393 = pneg %p129
      %p394 = scmp.lt.s32.totalorder %s25, 1
      %s395 = scalar_select %p394, %s25, 1
      %s396 = smul.addr %s395, 9
      %s397 = smul.addr %s396, 4
      %s398 = scalar_lea.vmem %s4, %s397
      %p399 = pneg %p158
      %p400 = pneg %p155
      %p401 = scmp.lt.s32.totalorder %s25, 1
      %s402 = scalar_select %p401, %s25, 1
      %s403 = smul.addr %s402, 9
      %s404 = smul.addr %s403, 4
      %s405 = scalar_lea.vmem %s5, %s404
      %p406 = pneg %p184
      %p407 = pneg %p181
      %p408 = pneg %p205
      %p409 = pneg %p202
      %p410 = pneg %p233
      %p411 = pneg %p230
      %s412 = smul.u32 4, %s26
      %p413 = scmp.lt.s32.totalorder %s25, 1
      %s414 = scalar_select %p413, %s25, 1
      %p415 = scmp.lt.s32.totalorder %s412, 7
      %s416 = scalar_select %p415, %s412, 7
      %s417 = smul.addr %s414, 8
      %s418 = sadd.s32 %s416, %s417
      %s419 = smul.addr %s418, 4
      %s420 = scalar_lea.vmem %s7, %s419
      %p421 = pneg %p261
      %p422 = pneg %p258
      %p423 = scmp.lt.s32.totalorder %s25, 1
      %s424 = scalar_select %p423, %s25, 1
      %p425 = scmp.lt.s32.totalorder %s26, 1
      %s426 = scalar_select %p425, %s26, 1
      %s427 = smul.addr %s424, 2
      %s428 = sadd.s32 %s426, %s427
      %s429 = scalar_lea.vmem %s8, %s428
      %p430 = pneg %p289
      %p431 = pneg %p286
      %p432 = scmp.lt.s32.totalorder %s25, 1
      %s433 = scalar_select %p432, %s25, 1
      %p434 = scmp.lt.s32.totalorder %s26, 1
      %s435 = scalar_select %p434, %s26, 1
      %s436 = smul.addr %s433, 2
      %s437 = sadd.s32 %s435, %s436
      %s438 = scalar_lea.vmem %s9, %s437
      %p439 = scmp.lt.s32.totalorder %s25, 1
      %s440 = scalar_select %p439, %s25, 1
      %s441 = smul.addr %s440, 9
      %s442 = smul.addr %s441, 4
      %s443 = scalar_lea.vmem %s0, %s442
      %p444 = scmp.lt.s32.totalorder %s25, 1
      %s445 = scalar_select %p444, %s25, 1
      %s446 = smul.addr %s445, 9
      %s447 = smul.addr %s446, 4
      %s448 = scalar_lea.vmem %s1, %s447
      %p449 = scmp.lt.s32.totalorder %s25, 1
      %s450 = scalar_select %p449, %s25, 1
      %s451 = smul.addr %s450, 9
      %s452 = smul.addr %s451, 4
      %s453 = scalar_lea.vmem %s2, %s452
      %p454 = scmp.lt.s32.totalorder %s25, 1
      %s455 = scalar_select %p454, %s25, 1
      %s456 = smul.addr %s455, 9
      %s457 = smul.addr %s456, 4
      %s458 = scalar_lea.vmem %s3, %s457
      %p459 = scmp.lt.s32.totalorder %s25, 1
      %s460 = scalar_select %p459, %s25, 1
      %s461 = smul.addr %s460, 9
      %s462 = smul.addr %s461, 4
      %s463 = scalar_lea.vmem %s4, %s462
      %p464 = scmp.lt.s32.totalorder %s25, 1
      %s465 = scalar_select %p464, %s25, 1
      %s466 = smul.addr %s465, 9
      %s467 = smul.addr %s466, 4
      %s468 = scalar_lea.vmem %s5, %s467
      %s469 = smul.u32 4, %s26
      %p470 = scmp.lt.s32.totalorder %s25, 1
      %s471 = scalar_select %p470, %s25, 1
      %p472 = scmp.lt.s32.totalorder %s469, 7
      %s473 = scalar_select %p472, %s469, 7
      %s474 = smul.addr %s471, 8
      %s475 = sadd.s32 %s473, %s474
      %s476 = smul.addr %s475, 4
      %s477 = scalar_lea.vmem %s7, %s476
      %s478 = smul.u32 4, %s26
      %p479 = scmp.lt.s32.totalorder %s25, 1
      %s480 = scalar_select %p479, %s25, 1
      %p481 = scmp.lt.s32.totalorder %s26, 1
      %s482 = scalar_select %p481, %s26, 1
      %s483 = smul.addr %s480, 2
      %s484 = sadd.s32 %s482, %s483
      %s485 = scalar_lea.vmem %s8, %s484
      %p486 = scmp.lt.s32.totalorder %s25, 1
      %s487 = scalar_select %p486, %s25, 1
      %p488 = scmp.lt.s32.totalorder %s26, 1
      %s489 = scalar_select %p488, %s26, 1
      %s490 = smul.addr %s487, 2
      %s491 = sadd.s32 %s489, %s490
      %s492 = scalar_lea.vmem %s9, %s491
      %s494 = smul.u32 %s26, 32
      %s495 = sshra.s32 %s494, 3
      %s496 = sand.u32 %s494, 7
      %s497 = smul.addr %s495, 4
      %s498 = scalar_lea.vmem %s443, %s497
      %v499 = vld [vmem:[%s498] sm:$0xf]
      %v500 = vld [vmem:[%s498 + $0x4] sm:$0xf]
      %v501 = vld [vmem:[%s498 + $0x8] sm:$0xf]
      %v502 = vld [vmem:[%s498 + $0xc] sm:$0xf]
      %v503 = vld [vmem:[%s6] sm:$0xf]
      %v504 = vld [vmem:[%s6 + $0x4] sm:$0xf]
      %v505 = vld [vmem:[%s6 + $0x8] sm:$0xf]
      %v506 = vld [vmem:[%s6 + $0xc] sm:$0xf]
      %v507 = vld [vmem:[%s6 + $0x10] sm:$0xf]
      %v508 = vld [vmem:[%s6 + $0x14] sm:$0xf]
      %v509 = vld [vmem:[%s6 + $0x18] sm:$0xf]
      %v510 = vld [vmem:[%s6 + $0x1c] sm:$0xf]
      %v511 = vld [vmem:[%s6 + $0x20] sm:$0xf]
      %v512 = vld [vmem:[%s6 + $0x24] sm:$0xf]
      %v513 = vld [vmem:[%s6 + $0x28] sm:$0xf]
      %v514 = vld [vmem:[%s6 + $0x2c] sm:$0xf]
      %v515 = vld [vmem:[%s6 + $0x30] sm:$0xf]
      %v516 = vld [vmem:[%s6 + $0x34] sm:$0xf]
      %v517 = vld [vmem:[%s6 + $0x38] sm:$0xf]
      %v518 = vld [vmem:[%s6 + $0x3c] sm:$0xf]
      %s519 = smul.addr %s495, 4
      %s520 = scalar_lea.vmem %s448, %s519
      %v521 = vld [vmem:[%s520] sm:$0xf]
      %v522 = vld [vmem:[%s520 + $0x4] sm:$0xf]
      %v523 = vld [vmem:[%s520 + $0x8] sm:$0xf]
      %v524 = vld [vmem:[%s520 + $0xc] sm:$0xf]
      %s525 = scalar_lea.vmem %s6, 64
      %v526 = vld [vmem:[%s525] sm:$0xf]
      %v527 = vld [vmem:[%s525 + $0x4] sm:$0xf]
      %v528 = vld [vmem:[%s525 + $0x8] sm:$0xf]
      %v529 = vld [vmem:[%s525 + $0xc] sm:$0xf]
      %v530 = vld [vmem:[%s525 + $0x10] sm:$0xf]
      %v531 = vld [vmem:[%s525 + $0x14] sm:$0xf]
      %v532 = vld [vmem:[%s525 + $0x18] sm:$0xf]
      %v533 = vld [vmem:[%s525 + $0x1c] sm:$0xf]
      %v534 = vld [vmem:[%s525 + $0x20] sm:$0xf]
      %v535 = vld [vmem:[%s525 + $0x24] sm:$0xf]
      %v536 = vld [vmem:[%s525 + $0x28] sm:$0xf]
      %v537 = vld [vmem:[%s525 + $0x2c] sm:$0xf]
      %v538 = vld [vmem:[%s525 + $0x30] sm:$0xf]
      %v539 = vld [vmem:[%s525 + $0x34] sm:$0xf]
      %v540 = vld [vmem:[%s525 + $0x38] sm:$0xf]
      %v541 = vld [vmem:[%s525 + $0x3c] sm:$0xf]
      %v546 = vunpack.c.l.b16 %v521
      %v547 = vunpack.c.l.b16 %v522
      %v548 = vunpack.c.l.b16 %v523
      %v549 = vunpack.c.l.b16 %v524
      %v550 = vpack.c.b16 %v547, %v546
      %v551 = vpack.c.b16 %v549, %v548
      %v570 = vunpack.c.l.b16 %v526
      %v571 = vunpack.c.l.b16 %v527
      %v572 = vunpack.c.l.b16 %v528
      %v573 = vunpack.c.l.b16 %v529
      %v574 = vunpack.c.l.b16 %v530
      %v575 = vunpack.c.l.b16 %v531
      %v576 = vunpack.c.l.b16 %v532
      %v577 = vunpack.c.l.b16 %v533
      %v578 = vunpack.c.l.b16 %v534
      %v579 = vunpack.c.l.b16 %v535
      %v580 = vunpack.c.l.b16 %v536
      %v581 = vunpack.c.l.b16 %v537
      %v582 = vunpack.c.l.b16 %v538
      %v583 = vunpack.c.l.b16 %v539
      %v584 = vunpack.c.l.b16 %v540
      %v585 = vunpack.c.l.b16 %v541
      %v586 = vpack.c.b16 %v571, %v570
      %v587 = vpack.c.b16 %v573, %v572
      %v588 = vpack.c.b16 %v575, %v574
      %v589 = vpack.c.b16 %v577, %v576
      %v590 = vpack.c.b16 %v579, %v578
      %v591 = vpack.c.b16 %v581, %v580
      %v592 = vpack.c.b16 %v583, %v582
      %v593 = vpack.c.b16 %v585, %v584
      %602 = vmatprep.subr.bf16.mxu0 0
      %603 = vmatpush1.bf16.msra.mxu0 %v593
      %604 = vmatprep.subr.bf16.mxu0 0
      %605 = vmatpush1.bf16.msra.mxu0 %v592
      %606 = vmatprep.subr.bf16.mxu0 0
      %607 = vmatpush1.bf16.msra.mxu0 %v591
      %608 = vmatprep.subr.bf16.mxu0 0
      %609 = vmatpush1.bf16.msra.mxu0 %v590
      %610 = vmatprep.subr.bf16.mxu0 0
      %611 = vmatpush1.bf16.msra.mxu0 %v589
      %612 = vmatprep.subr.bf16.mxu0 0
      %613 = vmatpush1.bf16.msra.mxu0 %v588
      %614 = vmatprep.subr.bf16.mxu0 0
      %615 = vmatpush1.bf16.msra.mxu0 %v587
      %616 = vmatprep.subr.bf16.mxu0 0
      %617 = vmatpush1.bf16.msra.mxu0 %v586
      %618 = vmatprep.subr.bf16.mxu0 0
      %619 = vmatpush2.bf16.msra.mxu0 0
      %620 = vmatprep.subr.bf16.mxu0 0
      %621 = vmatpush2.bf16.msra.mxu0 0
      %622 = vmatprep.subr.bf16.mxu0 0
      %623 = vmatpush2.bf16.msra.mxu0 0
      %624 = vmatprep.subr.bf16.mxu0 0
      %625 = vmatpush2.bf16.msra.mxu0 0
      %626 = vmatprep.subr.bf16.mxu0 0
      %627 = vmatpush2.bf16.msra.mxu0 0
      %628 = vmatprep.subr.bf16.mxu0 0
      %629 = vmatpush2.bf16.msra.mxu0 0
      %630 = vmatprep.subr.bf16.mxu0 0
      %631 = vmatpush2.bf16.msra.mxu0 0
      %632 = vmatprep.subr.bf16.mxu0 0
      %633 = vmatpush2.bf16.msra.mxu0 0
      %634 = vmatprep.mubr.bf16.mxu0 0
      %635 = vmatmul.mubr.bf16.gmra.mxu0 %v550
      %v636 = vpop.f32.mrf.mxu0
      %v637 = vadd.f32 0.0, %v636
      %v638 = vpop.f32.mrf.mxu0
      %v639 = vpop.f32.mrf.mxu0
      %v640 = vadd.f32 0.0, %v639
      %v641 = vpop.f32.mrf.mxu0
      %642 = vmatprep.mubr.bf16.mxu0 0
      %643 = vmatmul.mubr.bf16.gmra.mxu0 %v551
      %v644 = vpop.f32.mrf.mxu0
      %v645 = vadd.f32 0.0, %v644
      %v646 = vpop.f32.mrf.mxu0
      %v647 = vpop.f32.mrf.mxu0
      %v648 = vadd.f32 0.0, %v647
      %v649 = vpop.f32.mrf.mxu0
      %650 = vdwg.mxu0
      %v655 = vunpack.c.l.b16 %v499
      %v656 = vunpack.c.l.b16 %v500
      %v657 = vunpack.c.l.b16 %v501
      %v658 = vunpack.c.l.b16 %v502
      %v659 = vpack.c.b16 %v656, %v655
      %v660 = vpack.c.b16 %v658, %v657
      %v679 = vunpack.c.l.b16 %v503
      %v680 = vunpack.c.l.b16 %v504
      %v681 = vunpack.c.l.b16 %v505
      %v682 = vunpack.c.l.b16 %v506
      %v683 = vunpack.c.l.b16 %v507
      %v684 = vunpack.c.l.b16 %v508
      %v685 = vunpack.c.l.b16 %v509
      %v686 = vunpack.c.l.b16 %v510
      %v687 = vunpack.c.l.b16 %v511
      %v688 = vunpack.c.l.b16 %v512
      %v689 = vunpack.c.l.b16 %v513
      %v690 = vunpack.c.l.b16 %v514
      %v691 = vunpack.c.l.b16 %v515
      %v692 = vunpack.c.l.b16 %v516
      %v693 = vunpack.c.l.b16 %v517
      %v694 = vunpack.c.l.b16 %v518
      %v695 = vpack.c.b16 %v680, %v679
      %v696 = vpack.c.b16 %v682, %v681
      %v697 = vpack.c.b16 %v684, %v683
      %v698 = vpack.c.b16 %v686, %v685
      %v699 = vpack.c.b16 %v688, %v687
      %v700 = vpack.c.b16 %v690, %v689
      %v701 = vpack.c.b16 %v692, %v691
      %v702 = vpack.c.b16 %v694, %v693
      %711 = vmatprep.subr.bf16.mxu0 0
      %712 = vmatpush1.bf16.msra.mxu0 %v702
      %713 = vmatprep.subr.bf16.mxu0 0
      %714 = vmatpush1.bf16.msra.mxu0 %v701
      %715 = vmatprep.subr.bf16.mxu0 0
      %716 = vmatpush1.bf16.msra.mxu0 %v700
      %717 = vmatprep.subr.bf16.mxu0 0
      %718 = vmatpush1.bf16.msra.mxu0 %v699
      %719 = vmatprep.subr.bf16.mxu0 0
      %720 = vmatpush1.bf16.msra.mxu0 %v698
      %721 = vmatprep.subr.bf16.mxu0 0
      %722 = vmatpush1.bf16.msra.mxu0 %v697
      %723 = vmatprep.subr.bf16.mxu0 0
      %724 = vmatpush1.bf16.msra.mxu0 %v696
      %725 = vmatprep.subr.bf16.mxu0 0
      %726 = vmatpush1.bf16.msra.mxu0 %v695
      %727 = vmatprep.subr.bf16.mxu0 0
      %728 = vmatpush2.bf16.msra.mxu0 0
      %729 = vmatprep.subr.bf16.mxu0 0
      %730 = vmatpush2.bf16.msra.mxu0 0
      %731 = vmatprep.subr.bf16.mxu0 0
      %732 = vmatpush2.bf16.msra.mxu0 0
      %733 = vmatprep.subr.bf16.mxu0 0
      %734 = vmatpush2.bf16.msra.mxu0 0
      %735 = vmatprep.subr.bf16.mxu0 0
      %736 = vmatpush2.bf16.msra.mxu0 0
      %737 = vmatprep.subr.bf16.mxu0 0
      %738 = vmatpush2.bf16.msra.mxu0 0
      %739 = vmatprep.subr.bf16.mxu0 0
      %740 = vmatpush2.bf16.msra.mxu0 0
      %741 = vmatprep.subr.bf16.mxu0 0
      %742 = vmatpush2.bf16.msra.mxu0 0
      %743 = vmatprep.mubr.bf16.mxu0 0
      %744 = vmatmul.mubr.bf16.gmra.mxu0 %v659
      %v745 = vpop.f32.mrf.mxu0
      %v746 = vadd.f32 %v637, %v745
      %v747 = vpop.f32.mrf.mxu0
      %v748 = vpop.f32.mrf.mxu0
      %v749 = vadd.f32 %v640, %v748
      %v750 = vpop.f32.mrf.mxu0
      %751 = vmatprep.mubr.bf16.mxu0 0
      %752 = vmatmul.mubr.bf16.gmra.mxu0 %v660
      %v753 = vpop.f32.mrf.mxu0
      %v754 = vadd.f32 %v645, %v753
      %v755 = vpop.f32.mrf.mxu0
      %v756 = vpop.f32.mrf.mxu0
      %v757 = vadd.f32 %v648, %v756
      %v758 = vpop.f32.mrf.mxu0
      %759 = vdwg.mxu0
      %s760 = smul.addr %s495, 4
      %s761 = scalar_lea.vmem %s453, %s760
      %v762 = vld [vmem:[%s761] sm:$0xf]
      %v763 = vld [vmem:[%s761 + $0x4] sm:$0xf]
      %v764 = vld [vmem:[%s761 + $0x8] sm:$0xf]
      %v765 = vld [vmem:[%s761 + $0xc] sm:$0xf]
      %s766 = scalar_lea.vmem %s6, 128
      %v767 = vld [vmem:[%s766] sm:$0xf]
      %v768 = vld [vmem:[%s766 + $0x4] sm:$0xf]
      %v769 = vld [vmem:[%s766 + $0x8] sm:$0xf]
      %v770 = vld [vmem:[%s766 + $0xc] sm:$0xf]
      %v771 = vld [vmem:[%s766 + $0x10] sm:$0xf]
      %v772 = vld [vmem:[%s766 + $0x14] sm:$0xf]
      %v773 = vld [vmem:[%s766 + $0x18] sm:$0xf]
      %v774 = vld [vmem:[%s766 + $0x1c] sm:$0xf]
      %v775 = vld [vmem:[%s766 + $0x20] sm:$0xf]
      %v776 = vld [vmem:[%s766 + $0x24] sm:$0xf]
      %v777 = vld [vmem:[%s766 + $0x28] sm:$0xf]
      %v778 = vld [vmem:[%s766 + $0x2c] sm:$0xf]
      %v779 = vld [vmem:[%s766 + $0x30] sm:$0xf]
      %v780 = vld [vmem:[%s766 + $0x34] sm:$0xf]
      %v781 = vld [vmem:[%s766 + $0x38] sm:$0xf]
      %v782 = vld [vmem:[%s766 + $0x3c] sm:$0xf]
      %v787 = vunpack.c.l.b16 %v762
      %v788 = vunpack.c.l.b16 %v763
      %v789 = vunpack.c.l.b16 %v764
      %v790 = vunpack.c.l.b16 %v765
      %v791 = vpack.c.b16 %v788, %v787
      %v792 = vpack.c.b16 %v790, %v789
      %v811 = vunpack.c.l.b16 %v767
      %v812 = vunpack.c.l.b16 %v768
      %v813 = vunpack.c.l.b16 %v769
      %v814 = vunpack.c.l.b16 %v770
      %v815 = vunpack.c.l.b16 %v771
      %v816 = vunpack.c.l.b16 %v772
      %v817 = vunpack.c.l.b16 %v773
      %v818 = vunpack.c.l.b16 %v774
      %v819 = vunpack.c.l.b16 %v775
      %v820 = vunpack.c.l.b16 %v776
      %v821 = vunpack.c.l.b16 %v777
      %v822 = vunpack.c.l.b16 %v778
      %v823 = vunpack.c.l.b16 %v779
      %v824 = vunpack.c.l.b16 %v780
      %v825 = vunpack.c.l.b16 %v781
      %v826 = vunpack.c.l.b16 %v782
      %v827 = vpack.c.b16 %v812, %v811
      %v828 = vpack.c.b16 %v814, %v813
      %v829 = vpack.c.b16 %v816, %v815
      %v830 = vpack.c.b16 %v818, %v817
      %v831 = vpack.c.b16 %v820, %v819
      %v832 = vpack.c.b16 %v822, %v821
      %v833 = vpack.c.b16 %v824, %v823
      %v834 = vpack.c.b16 %v826, %v825
      %843 = vmatprep.subr.bf16.mxu0 0
      %844 = vmatpush1.bf16.msra.mxu0 %v834
      %845 = vmatprep.subr.bf16.mxu0 0
      %846 = vmatpush1.bf16.msra.mxu0 %v833
      %847 = vmatprep.subr.bf16.mxu0 0
      %848 = vmatpush1.bf16.msra.mxu0 %v832
      %849 = vmatprep.subr.bf16.mxu0 0
      %850 = vmatpush1.bf16.msra.mxu0 %v831
      %851 = vmatprep.subr.bf16.mxu0 0
      %852 = vmatpush1.bf16.msra.mxu0 %v830
      %853 = vmatprep.subr.bf16.mxu0 0
      %854 = vmatpush1.bf16.msra.mxu0 %v829
      %855 = vmatprep.subr.bf16.mxu0 0
      %856 = vmatpush1.bf16.msra.mxu0 %v828
      %857 = vmatprep.subr.bf16.mxu0 0
      %858 = vmatpush1.bf16.msra.mxu0 %v827
      %859 = vmatprep.subr.bf16.mxu0 0
      %860 = vmatpush2.bf16.msra.mxu0 0
      %861 = vmatprep.subr.bf16.mxu0 0
      %862 = vmatpush2.bf16.msra.mxu0 0
      %863 = vmatprep.subr.bf16.mxu0 0
      %864 = vmatpush2.bf16.msra.mxu0 0
      %865 = vmatprep.subr.bf16.mxu0 0
      %866 = vmatpush2.bf16.msra.mxu0 0
      %867 = vmatprep.subr.bf16.mxu0 0
      %868 = vmatpush2.bf16.msra.mxu0 0
      %869 = vmatprep.subr.bf16.mxu0 0
      %870 = vmatpush2.bf16.msra.mxu0 0
      %871 = vmatprep.subr.bf16.mxu0 0
      %872 = vmatpush2.bf16.msra.mxu0 0
      %873 = vmatprep.subr.bf16.mxu0 0
      %874 = vmatpush2.bf16.msra.mxu0 0
      %875 = vmatprep.mubr.bf16.mxu0 0
      %876 = vmatmul.mubr.bf16.gmra.mxu0 %v791
      %v877 = vpop.f32.mrf.mxu0
      %v878 = vadd.f32 0.0, %v877
      %v879 = vpop.f32.mrf.mxu0
      %v880 = vpop.f32.mrf.mxu0
      %v881 = vadd.f32 0.0, %v880
      %v882 = vpop.f32.mrf.mxu0
      %883 = vmatprep.mubr.bf16.mxu0 0
      %884 = vmatmul.mubr.bf16.gmra.mxu0 %v792
      %v885 = vpop.f32.mrf.mxu0
      %v886 = vadd.f32 0.0, %v885
      %v887 = vpop.f32.mrf.mxu0
      %v888 = vpop.f32.mrf.mxu0
      %v889 = vadd.f32 0.0, %v888
      %v890 = vpop.f32.mrf.mxu0
      %891 = vdwg.mxu0
      %v892 = vadd.f32 %v746, %v878
      %v893 = vadd.f32 %v749, %v881
      %v894 = vadd.f32 %v754, %v886
      %v895 = vadd.f32 %v757, %v889
      %s896 = smul.addr %s495, 4
      %s897 = scalar_lea.vmem %s458, %s896
      %v898 = vld [vmem:[%s897] sm:$0xf]
      %v899 = vld [vmem:[%s897 + $0x4] sm:$0xf]
      %v900 = vld [vmem:[%s897 + $0x8] sm:$0xf]
      %v901 = vld [vmem:[%s897 + $0xc] sm:$0xf]
      %s902 = scalar_lea.vmem %s6, 192
      %v903 = vld [vmem:[%s902] sm:$0xf]
      %v904 = vld [vmem:[%s902 + $0x4] sm:$0xf]
      %v905 = vld [vmem:[%s902 + $0x8] sm:$0xf]
      %v906 = vld [vmem:[%s902 + $0xc] sm:$0xf]
      %v907 = vld [vmem:[%s902 + $0x10] sm:$0xf]
      %v908 = vld [vmem:[%s902 + $0x14] sm:$0xf]
      %v909 = vld [vmem:[%s902 + $0x18] sm:$0xf]
      %v910 = vld [vmem:[%s902 + $0x1c] sm:$0xf]
      %v911 = vld [vmem:[%s902 + $0x20] sm:$0xf]
      %v912 = vld [vmem:[%s902 + $0x24] sm:$0xf]
      %v913 = vld [vmem:[%s902 + $0x28] sm:$0xf]
      %v914 = vld [vmem:[%s902 + $0x2c] sm:$0xf]
      %v915 = vld [vmem:[%s902 + $0x30] sm:$0xf]
      %v916 = vld [vmem:[%s902 + $0x34] sm:$0xf]
      %v917 = vld [vmem:[%s902 + $0x38] sm:$0xf]
      %v918 = vld [vmem:[%s902 + $0x3c] sm:$0xf]
      %v923 = vunpack.c.l.b16 %v898
      %v924 = vunpack.c.l.b16 %v899
      %v925 = vunpack.c.l.b16 %v900
      %v926 = vunpack.c.l.b16 %v901
      %v927 = vpack.c.b16 %v924, %v923
      %v928 = vpack.c.b16 %v926, %v925
      %v947 = vunpack.c.l.b16 %v903
      %v948 = vunpack.c.l.b16 %v904
      %v949 = vunpack.c.l.b16 %v905
      %v950 = vunpack.c.l.b16 %v906
      %v951 = vunpack.c.l.b16 %v907
      %v952 = vunpack.c.l.b16 %v908
      %v953 = vunpack.c.l.b16 %v909
      %v954 = vunpack.c.l.b16 %v910
      %v955 = vunpack.c.l.b16 %v911
      %v956 = vunpack.c.l.b16 %v912
      %v957 = vunpack.c.l.b16 %v913
      %v958 = vunpack.c.l.b16 %v914
      %v959 = vunpack.c.l.b16 %v915
      %v960 = vunpack.c.l.b16 %v916
      %v961 = vunpack.c.l.b16 %v917
      %v962 = vunpack.c.l.b16 %v918
      %v963 = vpack.c.b16 %v948, %v947
      %v964 = vpack.c.b16 %v950, %v949
      %v965 = vpack.c.b16 %v952, %v951
      %v966 = vpack.c.b16 %v954, %v953
      %v967 = vpack.c.b16 %v956, %v955
      %v968 = vpack.c.b16 %v958, %v957
      %v969 = vpack.c.b16 %v960, %v959
      %v970 = vpack.c.b16 %v962, %v961
      %979 = vmatprep.subr.bf16.mxu0 0
      %980 = vmatpush1.bf16.msra.mxu0 %v970
      %981 = vmatprep.subr.bf16.mxu0 0
      %982 = vmatpush1.bf16.msra.mxu0 %v969
      %983 = vmatprep.subr.bf16.mxu0 0
      %984 = vmatpush1.bf16.msra.mxu0 %v968
      %985 = vmatprep.subr.bf16.mxu0 0
      %986 = vmatpush1.bf16.msra.mxu0 %v967
      %987 = vmatprep.subr.bf16.mxu0 0
      %988 = vmatpush1.bf16.msra.mxu0 %v966
      %989 = vmatprep.subr.bf16.mxu0 0
      %990 = vmatpush1.bf16.msra.mxu0 %v965
      %991 = vmatprep.subr.bf16.mxu0 0
      %992 = vmatpush1.bf16.msra.mxu0 %v964
      %993 = vmatprep.subr.bf16.mxu0 0
      %994 = vmatpush1.bf16.msra.mxu0 %v963
      %995 = vmatprep.subr.bf16.mxu0 0
      %996 = vmatpush2.bf16.msra.mxu0 0
      %997 = vmatprep.subr.bf16.mxu0 0
      %998 = vmatpush2.bf16.msra.mxu0 0
      %999 = vmatprep.subr.bf16.mxu0 0
      %1000 = vmatpush2.bf16.msra.mxu0 0
      %1001 = vmatprep.subr.bf16.mxu0 0
      %1002 = vmatpush2.bf16.msra.mxu0 0
      %1003 = vmatprep.subr.bf16.mxu0 0
      %1004 = vmatpush2.bf16.msra.mxu0 0
      %1005 = vmatprep.subr.bf16.mxu0 0
      %1006 = vmatpush2.bf16.msra.mxu0 0
      %1007 = vmatprep.subr.bf16.mxu0 0
      %1008 = vmatpush2.bf16.msra.mxu0 0
      %1009 = vmatprep.subr.bf16.mxu0 0
      %1010 = vmatpush2.bf16.msra.mxu0 0
      %1011 = vmatprep.mubr.bf16.mxu0 0
      %1012 = vmatmul.mubr.bf16.gmra.mxu0 %v927
      %v1013 = vpop.f32.mrf.mxu0
      %v1014 = vadd.f32 0.0, %v1013
      %v1015 = vpop.f32.mrf.mxu0
      %v1016 = vpop.f32.mrf.mxu0
      %v1017 = vadd.f32 0.0, %v1016
      %v1018 = vpop.f32.mrf.mxu0
      %1019 = vmatprep.mubr.bf16.mxu0 0
      %1020 = vmatmul.mubr.bf16.gmra.mxu0 %v928
      %v1021 = vpop.f32.mrf.mxu0
      %v1022 = vadd.f32 0.0, %v1021
      %v1023 = vpop.f32.mrf.mxu0
      %v1024 = vpop.f32.mrf.mxu0
      %v1025 = vadd.f32 0.0, %v1024
      %v1026 = vpop.f32.mrf.mxu0
      %1027 = vdwg.mxu0
      %v1028 = vadd.f32 %v892, %v1014
      %v1029 = vadd.f32 %v893, %v1017
      %v1030 = vadd.f32 %v894, %v1022
      %v1031 = vadd.f32 %v895, %v1025
      %s1032 = smul.addr %s495, 4
      %s1033 = scalar_lea.vmem %s463, %s1032
      %v1034 = vld [vmem:[%s1033] sm:$0xf]
      %v1035 = vld [vmem:[%s1033 + $0x4] sm:$0xf]
      %v1036 = vld [vmem:[%s1033 + $0x8] sm:$0xf]
      %v1037 = vld [vmem:[%s1033 + $0xc] sm:$0xf]
      %s1038 = scalar_lea.vmem %s6, 256
      %v1039 = vld [vmem:[%s1038] sm:$0xf]
      %v1040 = vld [vmem:[%s1038 + $0x4] sm:$0xf]
      %v1041 = vld [vmem:[%s1038 + $0x8] sm:$0xf]
      %v1042 = vld [vmem:[%s1038 + $0xc] sm:$0xf]
      %v1043 = vld [vmem:[%s1038 + $0x10] sm:$0xf]
      %v1044 = vld [vmem:[%s1038 + $0x14] sm:$0xf]
      %v1045 = vld [vmem:[%s1038 + $0x18] sm:$0xf]
      %v1046 = vld [vmem:[%s1038 + $0x1c] sm:$0xf]
      %v1047 = vld [vmem:[%s1038 + $0x20] sm:$0xf]
      %v1048 = vld [vmem:[%s1038 + $0x24] sm:$0xf]
      %v1049 = vld [vmem:[%s1038 + $0x28] sm:$0xf]
      %v1050 = vld [vmem:[%s1038 + $0x2c] sm:$0xf]
      %v1051 = vld [vmem:[%s1038 + $0x30] sm:$0xf]
      %v1052 = vld [vmem:[%s1038 + $0x34] sm:$0xf]
      %v1053 = vld [vmem:[%s1038 + $0x38] sm:$0xf]
      %v1054 = vld [vmem:[%s1038 + $0x3c] sm:$0xf]
      %v1059 = vunpack.c.l.b16 %v1034
      %v1060 = vunpack.c.l.b16 %v1035
      %v1061 = vunpack.c.l.b16 %v1036
      %v1062 = vunpack.c.l.b16 %v1037
      %v1063 = vpack.c.b16 %v1060, %v1059
      %v1064 = vpack.c.b16 %v1062, %v1061
      %v1083 = vunpack.c.l.b16 %v1039
      %v1084 = vunpack.c.l.b16 %v1040
      %v1085 = vunpack.c.l.b16 %v1041
      %v1086 = vunpack.c.l.b16 %v1042
      %v1087 = vunpack.c.l.b16 %v1043
      %v1088 = vunpack.c.l.b16 %v1044
      %v1089 = vunpack.c.l.b16 %v1045
      %v1090 = vunpack.c.l.b16 %v1046
      %v1091 = vunpack.c.l.b16 %v1047
      %v1092 = vunpack.c.l.b16 %v1048
      %v1093 = vunpack.c.l.b16 %v1049
      %v1094 = vunpack.c.l.b16 %v1050
      %v1095 = vunpack.c.l.b16 %v1051
      %v1096 = vunpack.c.l.b16 %v1052
      %v1097 = vunpack.c.l.b16 %v1053
      %v1098 = vunpack.c.l.b16 %v1054
      %v1099 = vpack.c.b16 %v1084, %v1083
      %v1100 = vpack.c.b16 %v1086, %v1085
      %v1101 = vpack.c.b16 %v1088, %v1087
      %v1102 = vpack.c.b16 %v1090, %v1089
      %v1103 = vpack.c.b16 %v1092, %v1091
      %v1104 = vpack.c.b16 %v1094, %v1093
      %v1105 = vpack.c.b16 %v1096, %v1095
      %v1106 = vpack.c.b16 %v1098, %v1097
      %1115 = vmatprep.subr.bf16.mxu0 0
      %1116 = vmatpush1.bf16.msra.mxu0 %v1106
      %1117 = vmatprep.subr.bf16.mxu0 0
      %1118 = vmatpush1.bf16.msra.mxu0 %v1105
      %1119 = vmatprep.subr.bf16.mxu0 0
      %1120 = vmatpush1.bf16.msra.mxu0 %v1104
      %1121 = vmatprep.subr.bf16.mxu0 0
      %1122 = vmatpush1.bf16.msra.mxu0 %v1103
      %1123 = vmatprep.subr.bf16.mxu0 0
      %1124 = vmatpush1.bf16.msra.mxu0 %v1102
      %1125 = vmatprep.subr.bf16.mxu0 0
      %1126 = vmatpush1.bf16.msra.mxu0 %v1101
      %1127 = vmatprep.subr.bf16.mxu0 0
      %1128 = vmatpush1.bf16.msra.mxu0 %v1100
      %1129 = vmatprep.subr.bf16.mxu0 0
      %1130 = vmatpush1.bf16.msra.mxu0 %v1099
      %1131 = vmatprep.subr.bf16.mxu0 0
      %1132 = vmatpush2.bf16.msra.mxu0 0
      %1133 = vmatprep.subr.bf16.mxu0 0
      %1134 = vmatpush2.bf16.msra.mxu0 0
      %1135 = vmatprep.subr.bf16.mxu0 0
      %1136 = vmatpush2.bf16.msra.mxu0 0
      %1137 = vmatprep.subr.bf16.mxu0 0
      %1138 = vmatpush2.bf16.msra.mxu0 0
      %1139 = vmatprep.subr.bf16.mxu0 0
      %1140 = vmatpush2.bf16.msra.mxu0 0
      %1141 = vmatprep.subr.bf16.mxu0 0
      %1142 = vmatpush2.bf16.msra.mxu0 0
      %1143 = vmatprep.subr.bf16.mxu0 0
      %1144 = vmatpush2.bf16.msra.mxu0 0
      %1145 = vmatprep.subr.bf16.mxu0 0
      %1146 = vmatpush2.bf16.msra.mxu0 0
      %1147 = vmatprep.mubr.bf16.mxu0 0
      %1148 = vmatmul.mubr.bf16.gmra.mxu0 %v1063
      %v1149 = vpop.f32.mrf.mxu0
      %v1150 = vadd.f32 0.0, %v1149
      %v1151 = vpop.f32.mrf.mxu0
      %v1152 = vpop.f32.mrf.mxu0
      %v1153 = vadd.f32 0.0, %v1152
      %v1154 = vpop.f32.mrf.mxu0
      %1155 = vmatprep.mubr.bf16.mxu0 0
      %1156 = vmatmul.mubr.bf16.gmra.mxu0 %v1064
      %v1157 = vpop.f32.mrf.mxu0
      %v1158 = vadd.f32 0.0, %v1157
      %v1159 = vpop.f32.mrf.mxu0
      %v1160 = vpop.f32.mrf.mxu0
      %v1161 = vadd.f32 0.0, %v1160
      %v1162 = vpop.f32.mrf.mxu0
      %1163 = vdwg.mxu0
      %v1164 = vadd.f32 %v1028, %v1150
      %v1165 = vadd.f32 %v1029, %v1153
      %v1166 = vadd.f32 %v1030, %v1158
      %v1167 = vadd.f32 %v1031, %v1161
      %s1168 = smul.addr %s495, 4
      %s1169 = scalar_lea.vmem %s468, %s1168
      %v1170 = vld [vmem:[%s1169] sm:$0xf]
      %v1171 = vld [vmem:[%s1169 + $0x4] sm:$0xf]
      %v1172 = vld [vmem:[%s1169 + $0x8] sm:$0xf]
      %v1173 = vld [vmem:[%s1169 + $0xc] sm:$0xf]
      %s1174 = scalar_lea.vmem %s6, 320
      %v1175 = vld [vmem:[%s1174] sm:$0xf]
      %v1176 = vld [vmem:[%s1174 + $0x4] sm:$0xf]
      %v1177 = vld [vmem:[%s1174 + $0x8] sm:$0xf]
      %v1178 = vld [vmem:[%s1174 + $0xc] sm:$0xf]
      %v1179 = vld [vmem:[%s1174 + $0x10] sm:$0xf]
      %v1180 = vld [vmem:[%s1174 + $0x14] sm:$0xf]
      %v1181 = vld [vmem:[%s1174 + $0x18] sm:$0xf]
      %v1182 = vld [vmem:[%s1174 + $0x1c] sm:$0xf]
      %v1183 = vld [vmem:[%s1174 + $0x20] sm:$0xf]
      %v1184 = vld [vmem:[%s1174 + $0x24] sm:$0xf]
      %v1185 = vld [vmem:[%s1174 + $0x28] sm:$0xf]
      %v1186 = vld [vmem:[%s1174 + $0x2c] sm:$0xf]
      %v1187 = vld [vmem:[%s1174 + $0x30] sm:$0xf]
      %v1188 = vld [vmem:[%s1174 + $0x34] sm:$0xf]
      %v1189 = vld [vmem:[%s1174 + $0x38] sm:$0xf]
      %v1190 = vld [vmem:[%s1174 + $0x3c] sm:$0xf]
      %v1195 = vunpack.c.l.b16 %v1170
      %v1196 = vunpack.c.l.b16 %v1171
      %v1197 = vunpack.c.l.b16 %v1172
      %v1198 = vunpack.c.l.b16 %v1173
      %v1199 = vpack.c.b16 %v1196, %v1195
      %v1200 = vpack.c.b16 %v1198, %v1197
      %v1219 = vunpack.c.l.b16 %v1175
      %v1220 = vunpack.c.l.b16 %v1176
      %v1221 = vunpack.c.l.b16 %v1177
      %v1222 = vunpack.c.l.b16 %v1178
      %v1223 = vunpack.c.l.b16 %v1179
      %v1224 = vunpack.c.l.b16 %v1180
      %v1225 = vunpack.c.l.b16 %v1181
      %v1226 = vunpack.c.l.b16 %v1182
      %v1227 = vunpack.c.l.b16 %v1183
      %v1228 = vunpack.c.l.b16 %v1184
      %v1229 = vunpack.c.l.b16 %v1185
      %v1230 = vunpack.c.l.b16 %v1186
      %v1231 = vunpack.c.l.b16 %v1187
      %v1232 = vunpack.c.l.b16 %v1188
      %v1233 = vunpack.c.l.b16 %v1189
      %v1234 = vunpack.c.l.b16 %v1190
      %v1235 = vpack.c.b16 %v1220, %v1219
      %v1236 = vpack.c.b16 %v1222, %v1221
      %v1237 = vpack.c.b16 %v1224, %v1223
      %v1238 = vpack.c.b16 %v1226, %v1225
      %v1239 = vpack.c.b16 %v1228, %v1227
      %v1240 = vpack.c.b16 %v1230, %v1229
      %v1241 = vpack.c.b16 %v1232, %v1231
      %v1242 = vpack.c.b16 %v1234, %v1233
      %1251 = vmatprep.subr.bf16.mxu0 0
      %1252 = vmatpush1.bf16.msra.mxu0 %v1242
      %1253 = vmatprep.subr.bf16.mxu0 0
      %1254 = vmatpush1.bf16.msra.mxu0 %v1241
      %1255 = vmatprep.subr.bf16.mxu0 0
      %1256 = vmatpush1.bf16.msra.mxu0 %v1240
      %1257 = vmatprep.subr.bf16.mxu0 0
      %1258 = vmatpush1.bf16.msra.mxu0 %v1239
      %1259 = vmatprep.subr.bf16.mxu0 0
      %1260 = vmatpush1.bf16.msra.mxu0 %v1238
      %1261 = vmatprep.subr.bf16.mxu0 0
      %1262 = vmatpush1.bf16.msra.mxu0 %v1237
      %1263 = vmatprep.subr.bf16.mxu0 0
      %1264 = vmatpush1.bf16.msra.mxu0 %v1236
      %1265 = vmatprep.subr.bf16.mxu0 0
      %1266 = vmatpush1.bf16.msra.mxu0 %v1235
      %1267 = vmatprep.subr.bf16.mxu0 0
      %1268 = vmatpush2.bf16.msra.mxu0 0
      %1269 = vmatprep.subr.bf16.mxu0 0
      %1270 = vmatpush2.bf16.msra.mxu0 0
      %1271 = vmatprep.subr.bf16.mxu0 0
      %1272 = vmatpush2.bf16.msra.mxu0 0
      %1273 = vmatprep.subr.bf16.mxu0 0
      %1274 = vmatpush2.bf16.msra.mxu0 0
      %1275 = vmatprep.subr.bf16.mxu0 0
      %1276 = vmatpush2.bf16.msra.mxu0 0
      %1277 = vmatprep.subr.bf16.mxu0 0
      %1278 = vmatpush2.bf16.msra.mxu0 0
      %1279 = vmatprep.subr.bf16.mxu0 0
      %1280 = vmatpush2.bf16.msra.mxu0 0
      %1281 = vmatprep.subr.bf16.mxu0 0
      %1282 = vmatpush2.bf16.msra.mxu0 0
      %1283 = vmatprep.mubr.bf16.mxu0 0
      %1284 = vmatmul.mubr.bf16.gmra.mxu0 %v1199
      %v1285 = vpop.f32.mrf.mxu0
      %v1286 = vadd.f32 0.0, %v1285
      %v1287 = vpop.f32.mrf.mxu0
      %v1288 = vpop.f32.mrf.mxu0
      %v1289 = vadd.f32 0.0, %v1288
      %v1290 = vpop.f32.mrf.mxu0
      %1291 = vmatprep.mubr.bf16.mxu0 0
      %1292 = vmatmul.mubr.bf16.gmra.mxu0 %v1200
      %v1293 = vpop.f32.mrf.mxu0
      %v1294 = vadd.f32 0.0, %v1293
      %v1295 = vpop.f32.mrf.mxu0
      %v1296 = vpop.f32.mrf.mxu0
      %v1297 = vadd.f32 0.0, %v1296
      %v1298 = vpop.f32.mrf.mxu0
      %1299 = vdwg.mxu0
      %v1300 = vadd.f32 %v1164, %v1286
      %v1301 = vadd.f32 %v1165, %v1289
      %v1302 = vadd.f32 %v1166, %v1294
      %v1303 = vadd.f32 %v1167, %v1297
      %s1304 = smul.u32 %s26, 4
      %s1305 = sadd.s32 %s1304, 1
      %s1306 = smul.u32 %s1305, 8
      %s1307 = sshra.s32 %s1306, 3
      %s1308 = sand.u32 %s1306, 7
      %s1309 = smul.addr %s1307, 4
      %s1310 = scalar_lea.vmem %s443, %s1309
      %v1311 = vld [vmem:[%s1310] sm:$0xf]
      %v1312 = vld [vmem:[%s1310 + $0x4] sm:$0xf]
      %v1313 = vld [vmem:[%s1310 + $0x8] sm:$0xf]
      %v1314 = vld [vmem:[%s1310 + $0xc] sm:$0xf]
      %s1315 = scalar_lea.vmem %s6, 384
      %v1316 = vld [vmem:[%s1315] sm:$0xf]
      %v1317 = vld [vmem:[%s1315 + $0x4] sm:$0xf]
      %v1318 = vld [vmem:[%s1315 + $0x8] sm:$0xf]
      %v1319 = vld [vmem:[%s1315 + $0xc] sm:$0xf]
      %v1320 = vld [vmem:[%s1315 + $0x10] sm:$0xf]
      %v1321 = vld [vmem:[%s1315 + $0x14] sm:$0xf]
      %v1322 = vld [vmem:[%s1315 + $0x18] sm:$0xf]
      %v1323 = vld [vmem:[%s1315 + $0x1c] sm:$0xf]
      %v1324 = vld [vmem:[%s1315 + $0x20] sm:$0xf]
      %v1325 = vld [vmem:[%s1315 + $0x24] sm:$0xf]
      %v1326 = vld [vmem:[%s1315 + $0x28] sm:$0xf]
      %v1327 = vld [vmem:[%s1315 + $0x2c] sm:$0xf]
      %v1328 = vld [vmem:[%s1315 + $0x30] sm:$0xf]
      %v1329 = vld [vmem:[%s1315 + $0x34] sm:$0xf]
      %v1330 = vld [vmem:[%s1315 + $0x38] sm:$0xf]
      %v1331 = vld [vmem:[%s1315 + $0x3c] sm:$0xf]
      %v1336 = vunpack.c.l.b16 %v1311
      %v1337 = vunpack.c.l.b16 %v1312
      %v1338 = vunpack.c.l.b16 %v1313
      %v1339 = vunpack.c.l.b16 %v1314
      %v1340 = vpack.c.b16 %v1337, %v1336
      %v1341 = vpack.c.b16 %v1339, %v1338
      %v1360 = vunpack.c.l.b16 %v1316
      %v1361 = vunpack.c.l.b16 %v1317
      %v1362 = vunpack.c.l.b16 %v1318
      %v1363 = vunpack.c.l.b16 %v1319
      %v1364 = vunpack.c.l.b16 %v1320
      %v1365 = vunpack.c.l.b16 %v1321
      %v1366 = vunpack.c.l.b16 %v1322
      %v1367 = vunpack.c.l.b16 %v1323
      %v1368 = vunpack.c.l.b16 %v1324
      %v1369 = vunpack.c.l.b16 %v1325
      %v1370 = vunpack.c.l.b16 %v1326
      %v1371 = vunpack.c.l.b16 %v1327
      %v1372 = vunpack.c.l.b16 %v1328
      %v1373 = vunpack.c.l.b16 %v1329
      %v1374 = vunpack.c.l.b16 %v1330
      %v1375 = vunpack.c.l.b16 %v1331
      %v1376 = vpack.c.b16 %v1361, %v1360
      %v1377 = vpack.c.b16 %v1363, %v1362
      %v1378 = vpack.c.b16 %v1365, %v1364
      %v1379 = vpack.c.b16 %v1367, %v1366
      %v1380 = vpack.c.b16 %v1369, %v1368
      %v1381 = vpack.c.b16 %v1371, %v1370
      %v1382 = vpack.c.b16 %v1373, %v1372
      %v1383 = vpack.c.b16 %v1375, %v1374
      %1392 = vmatprep.subr.bf16.mxu0 0
      %1393 = vmatpush1.bf16.msra.mxu0 %v1383
      %1394 = vmatprep.subr.bf16.mxu0 0
      %1395 = vmatpush1.bf16.msra.mxu0 %v1382
      %1396 = vmatprep.subr.bf16.mxu0 0
      %1397 = vmatpush1.bf16.msra.mxu0 %v1381
      %1398 = vmatprep.subr.bf16.mxu0 0
      %1399 = vmatpush1.bf16.msra.mxu0 %v1380
      %1400 = vmatprep.subr.bf16.mxu0 0
      %1401 = vmatpush1.bf16.msra.mxu0 %v1379
      %1402 = vmatprep.subr.bf16.mxu0 0
      %1403 = vmatpush1.bf16.msra.mxu0 %v1378
      %1404 = vmatprep.subr.bf16.mxu0 0
      %1405 = vmatpush1.bf16.msra.mxu0 %v1377
      %1406 = vmatprep.subr.bf16.mxu0 0
      %1407 = vmatpush1.bf16.msra.mxu0 %v1376
      %1408 = vmatprep.subr.bf16.mxu0 0
      %1409 = vmatpush2.bf16.msra.mxu0 0
      %1410 = vmatprep.subr.bf16.mxu0 0
      %1411 = vmatpush2.bf16.msra.mxu0 0
      %1412 = vmatprep.subr.bf16.mxu0 0
      %1413 = vmatpush2.bf16.msra.mxu0 0
      %1414 = vmatprep.subr.bf16.mxu0 0
      %1415 = vmatpush2.bf16.msra.mxu0 0
      %1416 = vmatprep.subr.bf16.mxu0 0
      %1417 = vmatpush2.bf16.msra.mxu0 0
      %1418 = vmatprep.subr.bf16.mxu0 0
      %1419 = vmatpush2.bf16.msra.mxu0 0
      %1420 = vmatprep.subr.bf16.mxu0 0
      %1421 = vmatpush2.bf16.msra.mxu0 0
      %1422 = vmatprep.subr.bf16.mxu0 0
      %1423 = vmatpush2.bf16.msra.mxu0 0
      %1424 = vmatprep.mubr.bf16.mxu0 0
      %1425 = vmatmul.mubr.bf16.gmra.mxu0 %v1340
      %v1426 = vpop.f32.mrf.mxu0
      %v1427 = vadd.f32 0.0, %v1426
      %v1428 = vpop.f32.mrf.mxu0
      %v1429 = vpop.f32.mrf.mxu0
      %v1430 = vadd.f32 0.0, %v1429
      %v1431 = vpop.f32.mrf.mxu0
      %1432 = vmatprep.mubr.bf16.mxu0 0
      %1433 = vmatmul.mubr.bf16.gmra.mxu0 %v1341
      %v1434 = vpop.f32.mrf.mxu0
      %v1435 = vadd.f32 0.0, %v1434
      %v1436 = vpop.f32.mrf.mxu0
      %v1437 = vpop.f32.mrf.mxu0
      %v1438 = vadd.f32 0.0, %v1437
      %v1439 = vpop.f32.mrf.mxu0
      %1440 = vdwg.mxu0
      %v1441 = vadd.f32 %v1300, %v1427
      %v1442 = vadd.f32 %v1301, %v1430
      %v1443 = vadd.f32 %v1302, %v1435
      %v1444 = vadd.f32 %v1303, %v1438
      %s1445 = smul.addr %s1307, 4
      %s1446 = scalar_lea.vmem %s448, %s1445
      %v1447 = vld [vmem:[%s1446] sm:$0xf]
      %v1448 = vld [vmem:[%s1446 + $0x4] sm:$0xf]
      %v1449 = vld [vmem:[%s1446 + $0x8] sm:$0xf]
      %v1450 = vld [vmem:[%s1446 + $0xc] sm:$0xf]
      %s1451 = scalar_lea.vmem %s6, 448
      %v1452 = vld [vmem:[%s1451] sm:$0xf]
      %v1453 = vld [vmem:[%s1451 + $0x4] sm:$0xf]
      %v1454 = vld [vmem:[%s1451 + $0x8] sm:$0xf]
      %v1455 = vld [vmem:[%s1451 + $0xc] sm:$0xf]
      %v1456 = vld [vmem:[%s1451 + $0x10] sm:$0xf]
      %v1457 = vld [vmem:[%s1451 + $0x14] sm:$0xf]
      %v1458 = vld [vmem:[%s1451 + $0x18] sm:$0xf]
      %v1459 = vld [vmem:[%s1451 + $0x1c] sm:$0xf]
      %v1460 = vld [vmem:[%s1451 + $0x20] sm:$0xf]
      %v1461 = vld [vmem:[%s1451 + $0x24] sm:$0xf]
      %v1462 = vld [vmem:[%s1451 + $0x28] sm:$0xf]
      %v1463 = vld [vmem:[%s1451 + $0x2c] sm:$0xf]
      %v1464 = vld [vmem:[%s1451 + $0x30] sm:$0xf]
      %v1465 = vld [vmem:[%s1451 + $0x34] sm:$0xf]
      %v1466 = vld [vmem:[%s1451 + $0x38] sm:$0xf]
      %v1467 = vld [vmem:[%s1451 + $0x3c] sm:$0xf]
      %v1472 = vunpack.c.l.b16 %v1447
      %v1473 = vunpack.c.l.b16 %v1448
      %v1474 = vunpack.c.l.b16 %v1449
      %v1475 = vunpack.c.l.b16 %v1450
      %v1476 = vpack.c.b16 %v1473, %v1472
      %v1477 = vpack.c.b16 %v1475, %v1474
      %v1496 = vunpack.c.l.b16 %v1452
      %v1497 = vunpack.c.l.b16 %v1453
      %v1498 = vunpack.c.l.b16 %v1454
      %v1499 = vunpack.c.l.b16 %v1455
      %v1500 = vunpack.c.l.b16 %v1456
      %v1501 = vunpack.c.l.b16 %v1457
      %v1502 = vunpack.c.l.b16 %v1458
      %v1503 = vunpack.c.l.b16 %v1459
      %v1504 = vunpack.c.l.b16 %v1460
      %v1505 = vunpack.c.l.b16 %v1461
      %v1506 = vunpack.c.l.b16 %v1462
      %v1507 = vunpack.c.l.b16 %v1463
      %v1508 = vunpack.c.l.b16 %v1464
      %v1509 = vunpack.c.l.b16 %v1465
      %v1510 = vunpack.c.l.b16 %v1466
      %v1511 = vunpack.c.l.b16 %v1467
      %v1512 = vpack.c.b16 %v1497, %v1496
      %v1513 = vpack.c.b16 %v1499, %v1498
      %v1514 = vpack.c.b16 %v1501, %v1500
      %v1515 = vpack.c.b16 %v1503, %v1502
      %v1516 = vpack.c.b16 %v1505, %v1504
      %v1517 = vpack.c.b16 %v1507, %v1506
      %v1518 = vpack.c.b16 %v1509, %v1508
      %v1519 = vpack.c.b16 %v1511, %v1510
      %1528 = vmatprep.subr.bf16.mxu0 0
      %1529 = vmatpush1.bf16.msra.mxu0 %v1519
      %1530 = vmatprep.subr.bf16.mxu0 0
      %1531 = vmatpush1.bf16.msra.mxu0 %v1518
      %1532 = vmatprep.subr.bf16.mxu0 0
      %1533 = vmatpush1.bf16.msra.mxu0 %v1517
      %1534 = vmatprep.subr.bf16.mxu0 0
      %1535 = vmatpush1.bf16.msra.mxu0 %v1516
      %1536 = vmatprep.subr.bf16.mxu0 0
      %1537 = vmatpush1.bf16.msra.mxu0 %v1515
      %1538 = vmatprep.subr.bf16.mxu0 0
      %1539 = vmatpush1.bf16.msra.mxu0 %v1514
      %1540 = vmatprep.subr.bf16.mxu0 0
      %1541 = vmatpush1.bf16.msra.mxu0 %v1513
      %1542 = vmatprep.subr.bf16.mxu0 0
      %1543 = vmatpush1.bf16.msra.mxu0 %v1512
      %1544 = vmatprep.subr.bf16.mxu0 0
      %1545 = vmatpush2.bf16.msra.mxu0 0
      %1546 = vmatprep.subr.bf16.mxu0 0
      %1547 = vmatpush2.bf16.msra.mxu0 0
      %1548 = vmatprep.subr.bf16.mxu0 0
      %1549 = vmatpush2.bf16.msra.mxu0 0
      %1550 = vmatprep.subr.bf16.mxu0 0
      %1551 = vmatpush2.bf16.msra.mxu0 0
      %1552 = vmatprep.subr.bf16.mxu0 0
      %1553 = vmatpush2.bf16.msra.mxu0 0
      %1554 = vmatprep.subr.bf16.mxu0 0
      %1555 = vmatpush2.bf16.msra.mxu0 0
      %1556 = vmatprep.subr.bf16.mxu0 0
      %1557 = vmatpush2.bf16.msra.mxu0 0
      %1558 = vmatprep.subr.bf16.mxu0 0
      %1559 = vmatpush2.bf16.msra.mxu0 0
      %1560 = vmatprep.mubr.bf16.mxu0 0
      %1561 = vmatmul.mubr.bf16.gmra.mxu0 %v1476
      %v1562 = vpop.f32.mrf.mxu0
      %v1563 = vadd.f32 0.0, %v1562
      %v1564 = vpop.f32.mrf.mxu0
      %v1565 = vpop.f32.mrf.mxu0
      %v1566 = vadd.f32 0.0, %v1565
      %v1567 = vpop.f32.mrf.mxu0
      %1568 = vmatprep.mubr.bf16.mxu0 0
      %1569 = vmatmul.mubr.bf16.gmra.mxu0 %v1477
      %v1570 = vpop.f32.mrf.mxu0
      %v1571 = vadd.f32 0.0, %v1570
      %v1572 = vpop.f32.mrf.mxu0
      %v1573 = vpop.f32.mrf.mxu0
      %v1574 = vadd.f32 0.0, %v1573
      %v1575 = vpop.f32.mrf.mxu0
      %1576 = vdwg.mxu0
      %v1577 = vadd.f32 %v1441, %v1563
      %v1578 = vadd.f32 %v1442, %v1566
      %v1579 = vadd.f32 %v1443, %v1571
      %v1580 = vadd.f32 %v1444, %v1574
      %s1581 = smul.addr %s1307, 4
      %s1582 = scalar_lea.vmem %s453, %s1581
      %v1583 = vld [vmem:[%s1582] sm:$0xf]
      %v1584 = vld [vmem:[%s1582 + $0x4] sm:$0xf]
      %v1585 = vld [vmem:[%s1582 + $0x8] sm:$0xf]
      %v1586 = vld [vmem:[%s1582 + $0xc] sm:$0xf]
      %s1587 = scalar_lea.vmem %s6, 512
      %v1588 = vld [vmem:[%s1587] sm:$0xf]
      %v1589 = vld [vmem:[%s1587 + $0x4] sm:$0xf]
      %v1590 = vld [vmem:[%s1587 + $0x8] sm:$0xf]
      %v1591 = vld [vmem:[%s1587 + $0xc] sm:$0xf]
      %v1592 = vld [vmem:[%s1587 + $0x10] sm:$0xf]
      %v1593 = vld [vmem:[%s1587 + $0x14] sm:$0xf]
      %v1594 = vld [vmem:[%s1587 + $0x18] sm:$0xf]
      %v1595 = vld [vmem:[%s1587 + $0x1c] sm:$0xf]
      %v1596 = vld [vmem:[%s1587 + $0x20] sm:$0xf]
      %v1597 = vld [vmem:[%s1587 + $0x24] sm:$0xf]
      %v1598 = vld [vmem:[%s1587 + $0x28] sm:$0xf]
      %v1599 = vld [vmem:[%s1587 + $0x2c] sm:$0xf]
      %v1600 = vld [vmem:[%s1587 + $0x30] sm:$0xf]
      %v1601 = vld [vmem:[%s1587 + $0x34] sm:$0xf]
      %v1602 = vld [vmem:[%s1587 + $0x38] sm:$0xf]
      %v1603 = vld [vmem:[%s1587 + $0x3c] sm:$0xf]
      %v1608 = vunpack.c.l.b16 %v1583
      %v1609 = vunpack.c.l.b16 %v1584
      %v1610 = vunpack.c.l.b16 %v1585
      %v1611 = vunpack.c.l.b16 %v1586
      %v1612 = vpack.c.b16 %v1609, %v1608
      %v1613 = vpack.c.b16 %v1611, %v1610
      %v1632 = vunpack.c.l.b16 %v1588
      %v1633 = vunpack.c.l.b16 %v1589
      %v1634 = vunpack.c.l.b16 %v1590
      %v1635 = vunpack.c.l.b16 %v1591
      %v1636 = vunpack.c.l.b16 %v1592
      %v1637 = vunpack.c.l.b16 %v1593
      %v1638 = vunpack.c.l.b16 %v1594
      %v1639 = vunpack.c.l.b16 %v1595
      %v1640 = vunpack.c.l.b16 %v1596
      %v1641 = vunpack.c.l.b16 %v1597
      %v1642 = vunpack.c.l.b16 %v1598
      %v1643 = vunpack.c.l.b16 %v1599
      %v1644 = vunpack.c.l.b16 %v1600
      %v1645 = vunpack.c.l.b16 %v1601
      %v1646 = vunpack.c.l.b16 %v1602
      %v1647 = vunpack.c.l.b16 %v1603
      %v1648 = vpack.c.b16 %v1633, %v1632
      %v1649 = vpack.c.b16 %v1635, %v1634
      %v1650 = vpack.c.b16 %v1637, %v1636
      %v1651 = vpack.c.b16 %v1639, %v1638
      %v1652 = vpack.c.b16 %v1641, %v1640
      %v1653 = vpack.c.b16 %v1643, %v1642
      %v1654 = vpack.c.b16 %v1645, %v1644
      %v1655 = vpack.c.b16 %v1647, %v1646
      %1664 = vmatprep.subr.bf16.mxu0 0
      %1665 = vmatpush1.bf16.msra.mxu0 %v1655
      %1666 = vmatprep.subr.bf16.mxu0 0
      %1667 = vmatpush1.bf16.msra.mxu0 %v1654
      %1668 = vmatprep.subr.bf16.mxu0 0
      %1669 = vmatpush1.bf16.msra.mxu0 %v1653
      %1670 = vmatprep.subr.bf16.mxu0 0
      %1671 = vmatpush1.bf16.msra.mxu0 %v1652
      %1672 = vmatprep.subr.bf16.mxu0 0
      %1673 = vmatpush1.bf16.msra.mxu0 %v1651
      %1674 = vmatprep.subr.bf16.mxu0 0
      %1675 = vmatpush1.bf16.msra.mxu0 %v1650
      %1676 = vmatprep.subr.bf16.mxu0 0
      %1677 = vmatpush1.bf16.msra.mxu0 %v1649
      %1678 = vmatprep.subr.bf16.mxu0 0
      %1679 = vmatpush1.bf16.msra.mxu0 %v1648
      %1680 = vmatprep.subr.bf16.mxu0 0
      %1681 = vmatpush2.bf16.msra.mxu0 0
      %1682 = vmatprep.subr.bf16.mxu0 0
      %1683 = vmatpush2.bf16.msra.mxu0 0
      %1684 = vmatprep.subr.bf16.mxu0 0
      %1685 = vmatpush2.bf16.msra.mxu0 0
      %1686 = vmatprep.subr.bf16.mxu0 0
      %1687 = vmatpush2.bf16.msra.mxu0 0
      %1688 = vmatprep.subr.bf16.mxu0 0
      %1689 = vmatpush2.bf16.msra.mxu0 0
      %1690 = vmatprep.subr.bf16.mxu0 0
      %1691 = vmatpush2.bf16.msra.mxu0 0
      %1692 = vmatprep.subr.bf16.mxu0 0
      %1693 = vmatpush2.bf16.msra.mxu0 0
      %1694 = vmatprep.subr.bf16.mxu0 0
      %1695 = vmatpush2.bf16.msra.mxu0 0
      %1696 = vmatprep.mubr.bf16.mxu0 0
      %1697 = vmatmul.mubr.bf16.gmra.mxu0 %v1612
      %v1698 = vpop.f32.mrf.mxu0
      %v1699 = vadd.f32 0.0, %v1698
      %v1700 = vpop.f32.mrf.mxu0
      %v1701 = vpop.f32.mrf.mxu0
      %v1702 = vadd.f32 0.0, %v1701
      %v1703 = vpop.f32.mrf.mxu0
      %1704 = vmatprep.mubr.bf16.mxu0 0
      %1705 = vmatmul.mubr.bf16.gmra.mxu0 %v1613
      %v1706 = vpop.f32.mrf.mxu0
      %v1707 = vadd.f32 0.0, %v1706
      %v1708 = vpop.f32.mrf.mxu0
      %v1709 = vpop.f32.mrf.mxu0
      %v1710 = vadd.f32 0.0, %v1709
      %v1711 = vpop.f32.mrf.mxu0
      %1712 = vdwg.mxu0
      %v1713 = vadd.f32 %v1577, %v1699
      %v1714 = vadd.f32 %v1578, %v1702
      %v1715 = vadd.f32 %v1579, %v1707
      %v1716 = vadd.f32 %v1580, %v1710
      %v1717 = vpack.c.bf16 %v1714, %v1713
      %v1718 = vpack.c.bf16 %v1716, %v1715
      %v1721 = vunpack.c.l.b16 %v1717
      %v1722 = vunpack.c.h.b16 %v1717
      %v1723 = vunpack.c.l.b16 %v1718
      %v1724 = vunpack.c.h.b16 %v1718
      %v1725 = vpack.c.b16 %v1721, %v1721
      %v1726 = vpack.c.b16 %v1722, %v1722
      %v1727 = vpack.c.b16 %v1723, %v1723
      %v1728 = vpack.c.b16 %v1724, %v1724
      %1733 = vst [vmem:[%s477] sm:$0xf] %v1725
      %1734 = vst [vmem:[%s477 + $0x4] sm:$0xf] %v1726
      %1735 = vst [vmem:[%s477 + $0x8] sm:$0xf] %v1727
      %1736 = vst [vmem:[%s477 + $0xc] sm:$0xf] %v1728
      %v1737 = vunpack.c.l.bf16 %v1717
      %v1738 = vunpack.c.h.bf16 %v1717
      %v1739 = vunpack.c.l.bf16 %v1718
      %v1740 = vunpack.c.h.bf16 %v1718
      %v1741 = vadd.f32 %v1737, %v1738
      %v1742 = vadd.f32 %v1741, %v1739
      %v1743 = vadd.f32 %v1742, %v1740
      %v1744 = vrot.slane %v1743, 4
      %v1745 = vadd.f32 %v1743, %v1744
      %v1746 = vrot.slane %v1745, 2
      %v1747 = vadd.f32 %v1745, %v1746
      %v1748 = vrot.slane %v1747, 1
      %v1749 = vadd.f32 %v1747, %v1748
      %1750 = vst [vmem:[%s485] sm:$0x1] %v1749
      %v1751 = vmul.f32 %v1737, %v1737
      %v1752 = vmul.f32 %v1738, %v1738
      %v1753 = vmul.f32 %v1739, %v1739
      %v1754 = vmul.f32 %v1740, %v1740
      %v1755 = vadd.f32 %v1751, %v1752
      %v1756 = vadd.f32 %v1755, %v1753
      %v1757 = vadd.f32 %v1756, %v1754
      %v1758 = vrot.slane %v1757, 4
      %v1759 = vadd.f32 %v1757, %v1758
      %v1760 = vrot.slane %v1759, 2
      %v1761 = vadd.f32 %v1759, %v1760
      %v1762 = vrot.slane %v1761, 1
      %v1763 = vadd.f32 %v1761, %v1762
      %1764 = vst [vmem:[%s492] sm:$0x1] %v1763
      %s1765 = smul.u32 4, %s26
      %p1766 = scmp.lt.s32.totalorder %s25, 1
      %s1767 = scalar_select %p1766, %s25, 1
      %p1768 = scmp.lt.s32.totalorder %s1765, 7
      %s1769 = scalar_select %p1768, %s1765, 7
      %s1770 = smul.addr %s1767, 8
      %s1771 = sadd.s32 %s1769, %s1770
      %s1772 = smul.addr %s1771, 4
      %s1773 = scalar_lea.vmem %s7, %s1772
      %p1774 = scmp.lt.s32.totalorder %s25, 1
      %s1775 = scalar_select %p1774, %s25, 1
      %p1776 = scmp.lt.s32.totalorder %s26, 1
      %s1777 = scalar_select %p1776, %s26, 1
      %s1778 = smul.addr %s1775, 2
      %s1779 = sadd.s32 %s1777, %s1778
      %s1780 = scalar_lea.vmem %s8, %s1779
      %p1781 = scmp.lt.s32.totalorder %s25, 1
      %s1782 = scalar_select %p1781, %s25, 1
      %p1783 = scmp.lt.s32.totalorder %s26, 1
      %s1784 = scalar_select %p1783, %s26, 1
      %s1785 = smul.addr %s1782, 2
      %s1786 = sadd.s32 %s1784, %s1785
      %s1787 = scalar_lea.vmem %s9, %s1786
      // Predicated region
      $region49: #{bottleneck_forward.7} parent=47 // pred_check
        %p1788 = pneg %p230
      $region50: #{bottleneck_forward.7} parent=47 // pred_check_branch
        %1790 = sbr.rel (%p1788) target = $region52
      $region51: #{bottleneck_forward.7} parent=47 // pred_region
        %s1791 = smul.u32 4, %s26
      $region52: #{bottleneck_forward.7} parent=47 // pred_fallthru
        _
      // Predicated region
      $region53: #{bottleneck_forward.7} parent=47 // pred_check
        %p1792 = pneg %p258
      $region54: #{bottleneck_forward.7} parent=47 // pred_check_branch
        %1794 = sbr.rel (%p1792) target = $region56
      $region55: #{bottleneck_forward.7} parent=47 // pred_region
        _
      $region56: #{bottleneck_forward.7} parent=47 // pred_fallthru
        _
      // Predicated region
      $region57: #{bottleneck_forward.7} parent=47 // pred_check
        %p1795 = pneg %p286
      $region58: #{bottleneck_forward.7} parent=47 // pred_check_branch
        %1797 = sbr.rel (%p1795) target = $region60
      $region59: #{bottleneck_forward.7} parent=47 // pred_region
        _
      $region60: #{bottleneck_forward.7} parent=47 // pred_fallthru
        _
    $region48: #{bottleneck_forward.7} parent=5 // pred_fallthru
      _
    %p1798 = scmp.le.s32.totalorder 2, %s16
    // Predicated region
    $region61: #{bottleneck_forward.7} parent=5 // pred_check
      %p1799 = pneg %p1798
    $region62: #{bottleneck_forward.7} parent=5 // pred_check_branch
      %1801 = sbr.rel (%p1799) target = $region64
    $region63: #{bottleneck_forward.7} parent=5 // pred_region
      %s1802 = ssub.s32 %s16, 2
      // Predicated region
      $region65: #{bottleneck_forward.7} parent=63 // pred_check
        %p1803 = pneg %p236
      $region66: #{bottleneck_forward.7} parent=63 // pred_check_branch
        %1805 = sbr.rel (%p1803) target = $region68
      $region67: #{bottleneck_forward.7} parent=63 // pred_region
        %s1806 = smul.u32 4, %s28
        %p1807 = scmp.lt.s32.totalorder %s27, 1
        %s1808 = scalar_select %p1807, %s27, 1
        %p1809 = scmp.lt.s32.totalorder %s1806, 7
        %s1810 = scalar_select %p1809, %s1806, 7
        %s1811 = smul.addr %s1808, 8
        %s1812 = sadd.s32 %s1810, %s1811
        %s1813 = smul.addr %s1812, 4
        %s1814 = scalar_lea.vmem %s7, %s1813
      $region68: #{bottleneck_forward.7} parent=63 // pred_fallthru
        _
      // Predicated region
      $region69: #{bottleneck_forward.7} parent=63 // pred_check
        %p1815 = pneg %p264
      $region70: #{bottleneck_forward.7} parent=63 // pred_check_branch
        %1817 = sbr.rel (%p1815) target = $region72
      $region71: #{bottleneck_forward.7} parent=63 // pred_region
        %p1818 = scmp.lt.s32.totalorder %s27, 1
        %s1819 = scalar_select %p1818, %s27, 1
        %p1820 = scmp.lt.s32.totalorder %s28, 1
        %s1821 = scalar_select %p1820, %s28, 1
        %s1822 = smul.addr %s1819, 2
        %s1823 = sadd.s32 %s1821, %s1822
        %s1824 = scalar_lea.vmem %s8, %s1823
      $region72: #{bottleneck_forward.7} parent=63 // pred_fallthru
        _
      // Predicated region
      $region73: #{bottleneck_forward.7} parent=63 // pred_check
        %p1825 = pneg %p292
      $region74: #{bottleneck_forward.7} parent=63 // pred_check_branch
        %1827 = sbr.rel (%p1825) target = $region76
      $region75: #{bottleneck_forward.7} parent=63 // pred_region
        %p1828 = scmp.lt.s32.totalorder %s27, 1
        %s1829 = scalar_select %p1828, %s27, 1
        %p1830 = scmp.lt.s32.totalorder %s28, 1
        %s1831 = scalar_select %p1830, %s28, 1
        %s1832 = smul.addr %s1829, 2
        %s1833 = sadd.s32 %s1831, %s1832
        %s1834 = scalar_lea.vmem %s9, %s1833
      $region76: #{bottleneck_forward.7} parent=63 // pred_fallthru
        _
    $region64: #{bottleneck_forward.7} parent=5 // pred_fallthru
      _
  $region6: #{bottleneck_forward.7} parent=0 // loop_footer
    %s20 = sadd.s32 1, %s16
  $region7: #{bottleneck_forward.7} parent=0 // loop_footer_branch
    %15 = sbr.rel target = $region3
  $region8: #{bottleneck_forward.7} parent=0 // loop_exit
    _

// kernel: bottleneck_forward.8
$region0: #{bottleneck_forward.8}
  #allocation0 [shape = 'u32[]', space=smem, size = 0x4, offset = 0x4, fixed_abs, tag = 'smem constant byte address 0x4 - core index']
  #allocation1 [shape = 'u32[144,128]{1,0:T(1,128)}', space=vmem, size = 0x12000, scoped, tag = 'internal scratch']
  %s0 = inlined_call_operand.vmem [shape: bf16[128,128], index: 0, kind: input, shape index: {}]
  %s1 = inlined_call_operand.vmem [shape: f32[1,128], index: 1, kind: input, shape index: {}]
  %s2 = inlined_call_operand.vmem [shape: f32[1,128], index: 2, kind: input, shape index: {}]
  %s3 = inlined_call_operand.vmem [shape: bf16[128,128], index: 3, kind: input, shape index: {}]
  %s4 = inlined_call_operand.vmem [shape: f32[2,1,128], index: 4, kind: output, shape index: {0}]
  %s5 = inlined_call_operand.vmem [shape: f32[2,1,128], index: 5, kind: output, shape index: {1}]
  %6 = xla_tuple %s4, %s5
  %s7 = sld [smem:[#allocation0]]
  $region57: #{bottleneck_forward.8} parent=0
    _
  %s9 = ssub.s32 1, %s7
  %s10 = scalar_select 0, %s9, %s7
  loop: start=0, step=1, limit=4
  $region2: #{bottleneck_forward.8} parent=0 // loop_pre_header
    _
  $region3: #{bottleneck_forward.8} parent=0 // loop_header
    %s12 = sphi 0, %s16
    %p13 = scmp.ge.s32.totalorder %s12, 4
    %s22 = sphi 0, %s24
    %s25 = sphi 0, %s22
    %s26 = sphi 0, %s25
    %s42 = sphi 0, %s26
    %s46 = sphi 0, %s46
    %s48 = sphi 0, %s46
    %s49 = sphi 0, %s48
    %s63 = sphi 0, %s49
    %s67 = sphi 0, %s67
    %s69 = sphi 0, %s67
    %s70 = sphi 0, %s69
    %s84 = sphi 0, %s70
    %s88 = sphi 0, %s88
    %s90 = sphi 0, %s88
    %s91 = sphi 0, %s90
    %s105 = sphi 0, %s91
    %s111 = sphi 0, %s113
    %s114 = sphi 0, %s111
    %s115 = sphi 0, %s114
    %s131 = sphi 0, %s115
    %s137 = sphi 0, %s139
    %s140 = sphi 0, %s137
    %s141 = sphi 0, %s140
    %s157 = sphi 0, %s141
  $region4: #{bottleneck_forward.8} parent=0 // loop_header_branch
    %15 = sbr.rel (%p13) target = $region8
  $region5: #{bottleneck_forward.8} parent=0 // loop_body
    %s17 = ssub.s32 %s12, 1
    %s18 = ssub.s32 %s12, 2
    %s19 = sadd.s32 %s12, 1
    %s20 = ssub.s32 %s12, %s19
    %p21 = scmp.eq.s32.totalorder %s20, 0
    %s23 = sadd.s32 %s22, 1
    %s24 = scalar_select %p21, %s22, %s23
    %p27 = pneg %p21
    %p28 = scmp.eq.s32.totalorder %s12, 1
    %p29 = por %p27, %p28
    %p30 = scmp.ne.s32.totalorder %s22, %s25
    %p31 = scmp.eq.s32.totalorder %s12, 0
    %p32 = por %p30, %p31
    %p33 = scmp.ne.s32.totalorder %s22, %s25
    %p34 = scmp.eq.s32.totalorder %s17, 1
    %p35 = por %p33, %p34
    %p36 = scmp.ne.s32.totalorder %s25, %s26
    %p37 = scmp.eq.s32.totalorder %s17, 0
    %p38 = por %p36, %p37
    %p39 = scmp.ne.s32.totalorder %s25, %s26
    %p40 = scmp.eq.s32.totalorder %s18, 1
    %p41 = por %p39, %p40
    %p43 = scmp.ne.s32.totalorder %s26, %s42
    %p44 = scmp.eq.s32.totalorder %s18, 0
    %p45 = por %p43, %p44
    %s47 = sadd.s32 %s46, 1
    %p50 = scmp.eq.s32.totalorder %s12, 1
    %p51 = scmp.ne.s32.totalorder %s46, %s48
    %p52 = scmp.eq.s32.totalorder %s12, 0
    %p53 = por %p51, %p52
    %p54 = scmp.ne.s32.totalorder %s46, %s48
    %p55 = scmp.eq.s32.totalorder %s17, 1
    %p56 = por %p54, %p55
    %p57 = scmp.ne.s32.totalorder %s48, %s49
    %p58 = scmp.eq.s32.totalorder %s17, 0
    %p59 = por %p57, %p58
    %p60 = scmp.ne.s32.totalorder %s48, %s49
    %p61 = scmp.eq.s32.totalorder %s18, 1
    %p62 = por %p60, %p61
    %p64 = scmp.ne.s32.totalorder %s49, %s63
    %p65 = scmp.eq.s32.totalorder %s18, 0
    %p66 = por %p64, %p65
    %s68 = sadd.s32 %s67, 1
    %p71 = scmp.eq.s32.totalorder %s12, 1
    %p72 = scmp.ne.s32.totalorder %s67, %s69
    %p73 = scmp.eq.s32.totalorder %s12, 0
    %p74 = por %p72, %p73
    %p75 = scmp.ne.s32.totalorder %s67, %s69
    %p76 = scmp.eq.s32.totalorder %s17, 1
    %p77 = por %p75, %p76
    %p78 = scmp.ne.s32.totalorder %s69, %s70
    %p79 = scmp.eq.s32.totalorder %s17, 0
    %p80 = por %p78, %p79
    %p81 = scmp.ne.s32.totalorder %s69, %s70
    %p82 = scmp.eq.s32.totalorder %s18, 1
    %p83 = por %p81, %p82
    %p85 = scmp.ne.s32.totalorder %s70, %s84
    %p86 = scmp.eq.s32.totalorder %s18, 0
    %p87 = por %p85, %p86
    %s89 = sadd.s32 %s88, 1
    %p92 = scmp.eq.s32.totalorder %s12, 1
    %p93 = scmp.ne.s32.totalorder %s88, %s90
    %p94 = scmp.eq.s32.totalorder %s12, 0
    %p95 = por %p93, %p94
    %p96 = scmp.ne.s32.totalorder %s88, %s90
    %p97 = scmp.eq.s32.totalorder %s17, 1
    %p98 = por %p96, %p97
    %p99 = scmp.ne.s32.totalorder %s90, %s91
    %p100 = scmp.eq.s32.totalorder %s17, 0
    %p101 = por %p99, %p100
    %p102 = scmp.ne.s32.totalorder %s90, %s91
    %p103 = scmp.eq.s32.totalorder %s18, 1
    %p104 = por %p102, %p103
    %p106 = scmp.ne.s32.totalorder %s91, %s105
    %p107 = scmp.eq.s32.totalorder %s18, 0
    %p108 = por %p106, %p107
    %s109 = ssub.s32 %s12, %s19
    %p110 = scmp.eq.s32.totalorder %s109, 0
    %s112 = sadd.s32 %s111, 1
    %s113 = scalar_select %p110, %s111, %s112
    %p116 = pneg %p110
    %p117 = scmp.eq.s32.totalorder %s12, 1
    %p118 = por %p116, %p117
    %p119 = scmp.ne.s32.totalorder %s111, %s114
    %p120 = scmp.eq.s32.totalorder %s12, 0
    %p121 = por %p119, %p120
    %p122 = scmp.ne.s32.totalorder %s111, %s114
    %p123 = scmp.eq.s32.totalorder %s17, 1
    %p124 = por %p122, %p123
    %p125 = scmp.ne.s32.totalorder %s114, %s115
    %p126 = scmp.eq.s32.totalorder %s17, 0
    %p127 = por %p125, %p126
    %p128 = scmp.ne.s32.totalorder %s114, %s115
    %p129 = scmp.eq.s32.totalorder %s18, 1
    %p130 = por %p128, %p129
    %p132 = scmp.ne.s32.totalorder %s115, %s131
    %p133 = scmp.eq.s32.totalorder %s18, 0
    %p134 = por %p132, %p133
    %s135 = ssub.s32 %s12, %s19
    %p136 = scmp.eq.s32.totalorder %s135, 0
    %s138 = sadd.s32 %s137, 1
    %s139 = scalar_select %p136, %s137, %s138
    %p142 = pneg %p136
    %p143 = scmp.eq.s32.totalorder %s12, 1
    %p144 = por %p142, %p143
    %p145 = scmp.ne.s32.totalorder %s137, %s140
    %p146 = scmp.eq.s32.totalorder %s12, 0
    %p147 = por %p145, %p146
    %p148 = scmp.ne.s32.totalorder %s137, %s140
    %p149 = scmp.eq.s32.totalorder %s17, 1
    %p150 = por %p148, %p149
    %p151 = scmp.ne.s32.totalorder %s140, %s141
    %p152 = scmp.eq.s32.totalorder %s17, 0
    %p153 = por %p151, %p152
    %p154 = scmp.ne.s32.totalorder %s140, %s141
    %p155 = scmp.eq.s32.totalorder %s18, 1
    %p156 = por %p154, %p155
    %p158 = scmp.ne.s32.totalorder %s141, %s157
    %p159 = scmp.eq.s32.totalorder %s18, 0
    %p160 = por %p158, %p159
    %p161 = scmp.le.s32.totalorder 1, %s12
    %p162 = scmp.lt.s32.totalorder %s12, 3
    %p163 = pnand %p161, %p162
    %p164 = pneg %p163
    // Predicated region
    $region9: #{bottleneck_forward.8} parent=5 // pred_check
      _
    $region10: #{bottleneck_forward.8} parent=5 // pred_check_branch
      %166 = sbr.rel (%p163) target = $region12
    $region11: #{bottleneck_forward.8} parent=5 // pred_region
      %s167 = ssub.s32 %s12, 1
      // Predicated region
      $region13: #{bottleneck_forward.8} parent=11 // pred_check
        %p168 = pneg %p59
      $region14: #{bottleneck_forward.8} parent=11 // pred_check_branch
        %170 = sbr.rel (%p168) target = $region16
      $region15: #{bottleneck_forward.8} parent=11 // pred_region
        _
      $region16: #{bottleneck_forward.8} parent=11 // pred_fallthru
        _
      // Predicated region
      $region17: #{bottleneck_forward.8} parent=11 // pred_check
        %p171 = pneg %p80
      $region18: #{bottleneck_forward.8} parent=11 // pred_check_branch
        %173 = sbr.rel (%p171) target = $region20
      $region19: #{bottleneck_forward.8} parent=11 // pred_region
        _
      $region20: #{bottleneck_forward.8} parent=11 // pred_fallthru
        _
      // Predicated region
      $region21: #{bottleneck_forward.8} parent=11 // pred_check
        %p174 = pneg %p101
      $region22: #{bottleneck_forward.8} parent=11 // pred_check_branch
        %176 = sbr.rel (%p174) target = $region24
      $region23: #{bottleneck_forward.8} parent=11 // pred_region
        _
      $region24: #{bottleneck_forward.8} parent=11 // pred_fallthru
        _
    $region12: #{bottleneck_forward.8} parent=5 // pred_fallthru
      _
    %p177 = scmp.lt.s32.totalorder %s12, 2
    // Predicated region
    $region25: #{bottleneck_forward.8} parent=5 // pred_check
      %p178 = pneg %p177
    $region26: #{bottleneck_forward.8} parent=5 // pred_check_branch
      %180 = sbr.rel (%p178) target = $region28
    $region27: #{bottleneck_forward.8} parent=5 // pred_region
      // Predicated region
      $region29: #{bottleneck_forward.8} parent=27 // pred_check
        %p181 = pneg %p32
      $region30: #{bottleneck_forward.8} parent=27 // pred_check_branch
        %183 = sbr.rel (%p181) target = $region32
      $region31: #{bottleneck_forward.8} parent=27 // pred_region
        %s184 = smul.u32 8, %s12
        %p185 = scmp.lt.s32.totalorder %s184, 15
        %s186 = scalar_select %p185, %s184, 15
        %s187 = smul.addr %s186, 4
        %s188 = scalar_lea.vmem %s0, %s187
        %s189 = smul.u32 8, %s12
      $region32: #{bottleneck_forward.8} parent=27 // pred_fallthru
        _
    $region28: #{bottleneck_forward.8} parent=5 // pred_fallthru
      _
    %p190 = scmp.le.s32.totalorder 1, %s12
    %p191 = scmp.lt.s32.totalorder %s12, 3
    %p192 = pnand %p190, %p191
    %p193 = pneg %p192
    // Predicated region
    $region33: #{bottleneck_forward.8} parent=5 // pred_check
      _
    $region34: #{bottleneck_forward.8} parent=5 // pred_check_branch
      %195 = sbr.rel (%p192) target = $region36
    $region35: #{bottleneck_forward.8} parent=5 // pred_region
      %s196 = ssub.s32 %s12, 1
      %s197 = smul.u32 8, %s17
      %p198 = scmp.lt.s32.totalorder %s197, 15
      %s199 = scalar_select %p198, %s197, 15
      %s200 = smul.addr %s199, 4
      %s201 = scalar_lea.vmem %s0, %s200
      %p202 = pneg %p38
      %p203 = pneg %p35
      %p204 = pneg %p59
      %p205 = pneg %p56
      %p206 = pneg %p80
      %p207 = pneg %p77
      %p208 = pneg %p101
      %p209 = pneg %p98
      %p210 = pneg %p127
      %p211 = pneg %p124
      %p212 = scmp.lt.s32.totalorder %s17, 1
      %s213 = scalar_select %p212, %s17, 1
      %s214 = scalar_lea.vmem %s4, %s213
      %p215 = pneg %p153
      %p216 = pneg %p150
      %p217 = scmp.lt.s32.totalorder %s17, 1
      %s218 = scalar_select %p217, %s17, 1
      %s219 = scalar_lea.vmem %s5, %s218
      %s220 = smul.u32 8, %s17
      %p221 = scmp.lt.s32.totalorder %s220, 15
      %s222 = scalar_select %p221, %s220, 15
      %s223 = smul.addr %s222, 4
      %s224 = scalar_lea.vmem %s0, %s223
      %s225 = smul.u32 8, %s17
      %p226 = scmp.lt.s32.totalorder %s17, 1
      %s227 = scalar_select %p226, %s17, 1
      %s228 = scalar_lea.vmem %s4, %s227
      %p229 = scmp.lt.s32.totalorder %s17, 1
      %s230 = scalar_select %p229, %s17, 1
      %s231 = scalar_lea.vmem %s5, %s230
      %v233 = vld [vmem:[%s224] sm:$0xf]
      %v234 = vld [vmem:[%s224 + $0x4] sm:$0xf]
      %v235 = vld [vmem:[%s224 + $0x8] sm:$0xf]
      %v236 = vld [vmem:[%s224 + $0xc] sm:$0xf]
      %v237 = vld [vmem:[%s224 + $0x10] sm:$0xf]
      %v238 = vld [vmem:[%s224 + $0x14] sm:$0xf]
      %v239 = vld [vmem:[%s224 + $0x18] sm:$0xf]
      %v240 = vld [vmem:[%s224 + $0x1c] sm:$0xf]
      %v241 = vunpack.c.l.bf16 %v233
      %v242 = vunpack.c.l.bf16 %v234
      %v243 = vunpack.c.l.bf16 %v235
      %v244 = vunpack.c.l.bf16 %v236
      %v245 = vunpack.c.l.bf16 %v237
      %v246 = vunpack.c.l.bf16 %v238
      %v247 = vunpack.c.l.bf16 %v239
      %v248 = vunpack.c.l.bf16 %v240
      %v249 = vld [vmem:[%s1] sm:$0x1]
      %v251 = vlaneseq
      %v252 = vshrl.u32 %v251, 7
      %v253 = vsub.s32 0, %v252
      %v254 = vrot.slane %v249, %v253
      %v256 = vmul.f32 %v241, %v254
      %v257 = vmul.f32 %v242, %v254
      %v258 = vmul.f32 %v243, %v254
      %v259 = vmul.f32 %v244, %v254
      %v260 = vmul.f32 %v245, %v254
      %v261 = vmul.f32 %v246, %v254
      %v262 = vmul.f32 %v247, %v254
      %v263 = vmul.f32 %v248, %v254
      %v264 = vld [vmem:[%s2] sm:$0x1]
      %v266 = vlaneseq
      %v267 = vshrl.u32 %v266, 7
      %v268 = vsub.s32 0, %v267
      %v269 = vrot.slane %v264, %v268
      %v271 = vadd.f32 %v256, %v269
      %v272 = vadd.f32 %v257, %v269
      %v273 = vadd.f32 %v258, %v269
      %v274 = vadd.f32 %v259, %v269
      %v275 = vadd.f32 %v260, %v269
      %v276 = vadd.f32 %v261, %v269
      %v277 = vadd.f32 %v262, %v269
      %v278 = vadd.f32 %v263, %v269
      %v279 = vmax.f32 %v271, 0.0
      %v280 = vmax.f32 %v272, 0.0
      %v281 = vmax.f32 %v273, 0.0
      %v282 = vmax.f32 %v274, 0.0
      %v283 = vmax.f32 %v275, 0.0
      %v284 = vmax.f32 %v276, 0.0
      %v285 = vmax.f32 %v277, 0.0
      %v286 = vmax.f32 %v278, 0.0
      %v287 = vpack.c.bf16 %v280, %v279
      %v288 = vpack.c.bf16 %v282, %v281
      %v289 = vpack.c.bf16 %v284, %v283
      %v290 = vpack.c.bf16 %v286, %v285
      %v291 = vld [vmem:[%s3] sm:$0xf]
      %v292 = vld [vmem:[%s3 + $0x4] sm:$0xf]
      %v293 = vld [vmem:[%s3 + $0x8] sm:$0xf]
      %v294 = vld [vmem:[%s3 + $0xc] sm:$0xf]
      %v295 = vld [vmem:[%s3 + $0x10] sm:$0xf]
      %v296 = vld [vmem:[%s3 + $0x14] sm:$0xf]
      %v297 = vld [vmem:[%s3 + $0x18] sm:$0xf]
      %v298 = vld [vmem:[%s3 + $0x1c] sm:$0xf]
      %v299 = vld [vmem:[%s3 + $0x20] sm:$0xf]
      %v300 = vld [vmem:[%s3 + $0x24] sm:$0xf]
      %v301 = vld [vmem:[%s3 + $0x28] sm:$0xf]
      %v302 = vld [vmem:[%s3 + $0x2c] sm:$0xf]
      %v303 = vld [vmem:[%s3 + $0x30] sm:$0xf]
      %v304 = vld [vmem:[%s3 + $0x34] sm:$0xf]
      %v305 = vld [vmem:[%s3 + $0x38] sm:$0xf]
      %v306 = vld [vmem:[%s3 + $0x3c] sm:$0xf]
      %v323 = vunpack.c.l.b16 %v291
      %v324 = vunpack.c.l.b16 %v292
      %v325 = vunpack.c.l.b16 %v293
      %v326 = vunpack.c.l.b16 %v294
      %v327 = vunpack.c.l.b16 %v295
      %v328 = vunpack.c.l.b16 %v296
      %v329 = vunpack.c.l.b16 %v297
      %v330 = vunpack.c.l.b16 %v298
      %v331 = vunpack.c.l.b16 %v299
      %v332 = vunpack.c.l.b16 %v300
      %v333 = vunpack.c.l.b16 %v301
      %v334 = vunpack.c.l.b16 %v302
      %v335 = vunpack.c.l.b16 %v303
      %v336 = vunpack.c.l.b16 %v304
      %v337 = vunpack.c.l.b16 %v305
      %v338 = vunpack.c.l.b16 %v306
      %v339 = vpack.c.b16 %v324, %v323
      %v340 = vpack.c.b16 %v326, %v325
      %v341 = vpack.c.b16 %v328, %v327
      %v342 = vpack.c.b16 %v330, %v329
      %v343 = vpack.c.b16 %v332, %v331
      %v344 = vpack.c.b16 %v334, %v333
      %v345 = vpack.c.b16 %v336, %v335
      %v346 = vpack.c.b16 %v338, %v337
      %355 = vmatprep.subr.bf16.mxu0 0
      %356 = vmatpush1.bf16.msra.mxu0 %v346
      %357 = vmatprep.subr.bf16.mxu0 0
      %358 = vmatpush1.bf16.msra.mxu0 %v345
      %359 = vmatprep.subr.bf16.mxu0 0
      %360 = vmatpush1.bf16.msra.mxu0 %v344
      %361 = vmatprep.subr.bf16.mxu0 0
      %362 = vmatpush1.bf16.msra.mxu0 %v343
      %363 = vmatprep.subr.bf16.mxu0 0
      %364 = vmatpush1.bf16.msra.mxu0 %v342
      %365 = vmatprep.subr.bf16.mxu0 0
      %366 = vmatpush1.bf16.msra.mxu0 %v341
      %367 = vmatprep.subr.bf16.mxu0 0
      %368 = vmatpush1.bf16.msra.mxu0 %v340
      %369 = vmatprep.subr.bf16.mxu0 0
      %370 = vmatpush1.bf16.msra.mxu0 %v339
      %371 = vmatprep.subr.bf16.mxu0 0
      %372 = vmatpush2.bf16.msra.mxu0 0
      %373 = vmatprep.subr.bf16.mxu0 0
      %374 = vmatpush2.bf16.msra.mxu0 0
      %375 = vmatprep.subr.bf16.mxu0 0
      %376 = vmatpush2.bf16.msra.mxu0 0
      %377 = vmatprep.subr.bf16.mxu0 0
      %378 = vmatpush2.bf16.msra.mxu0 0
      %379 = vmatprep.subr.bf16.mxu0 0
      %380 = vmatpush2.bf16.msra.mxu0 0
      %381 = vmatprep.subr.bf16.mxu0 0
      %382 = vmatpush2.bf16.msra.mxu0 0
      %383 = vmatprep.subr.bf16.mxu0 0
      %384 = vmatpush2.bf16.msra.mxu0 0
      %385 = vmatprep.subr.bf16.mxu0 0
      %386 = vmatpush2.bf16.msra.mxu0 0
      %387 = vmatprep.mubr.bf16.mxu0 0
      %388 = vmatmul.mubr.bf16.gmra.mxu0 %v287
      %v389 = vpop.f32.mrf.mxu0
      %v390 = vadd.f32 0.0, %v389
      %v391 = vpop.f32.mrf.mxu0
      %v392 = vpop.f32.mrf.mxu0
      %v393 = vadd.f32 0.0, %v392
      %v394 = vpop.f32.mrf.mxu0
      %395 = vmatprep.mubr.bf16.mxu0 0
      %396 = vmatmul.mubr.bf16.gmra.mxu0 %v288
      %v397 = vpop.f32.mrf.mxu0
      %v398 = vadd.f32 0.0, %v397
      %v399 = vpop.f32.mrf.mxu0
      %v400 = vpop.f32.mrf.mxu0
      %v401 = vadd.f32 0.0, %v400
      %v402 = vpop.f32.mrf.mxu0
      %403 = vmatprep.mubr.bf16.mxu0 0
      %404 = vmatmul.mubr.bf16.gmra.mxu0 %v289
      %v405 = vpop.f32.mrf.mxu0
      %v406 = vadd.f32 0.0, %v405
      %v407 = vpop.f32.mrf.mxu0
      %v408 = vpop.f32.mrf.mxu0
      %v409 = vadd.f32 0.0, %v408
      %v410 = vpop.f32.mrf.mxu0
      %411 = vmatprep.mubr.bf16.mxu0 0
      %412 = vmatmul.mubr.bf16.gmra.mxu0 %v290
      %v413 = vpop.f32.mrf.mxu0
      %v414 = vadd.f32 0.0, %v413
      %v415 = vpop.f32.mrf.mxu0
      %v416 = vpop.f32.mrf.mxu0
      %v417 = vadd.f32 0.0, %v416
      %v418 = vpop.f32.mrf.mxu0
      %419 = vdwg.mxu0
      %v420 = vadd.f32 %v390, %v393
      %v421 = vadd.f32 %v420, %v398
      %v422 = vadd.f32 %v421, %v401
      %v423 = vadd.f32 %v422, %v406
      %v424 = vadd.f32 %v423, %v409
      %v425 = vadd.f32 %v424, %v414
      %v426 = vadd.f32 %v425, %v417
      %v427 = vrot.slane %v426, 4
      %v428 = vadd.f32 %v426, %v427
      %v429 = vrot.slane %v428, 2
      %v430 = vadd.f32 %v428, %v429
      %v431 = vrot.slane %v430, 1
      %v432 = vadd.f32 %v430, %v431
      %433 = vst [vmem:[%s228] sm:$0x1] %v432
      %v434 = vmul.f32 %v390, %v390
      %v435 = vmul.f32 %v393, %v393
      %v436 = vmul.f32 %v398, %v398
      %v437 = vmul.f32 %v401, %v401
      %v438 = vmul.f32 %v406, %v406
      %v439 = vmul.f32 %v409, %v409
      %v440 = vmul.f32 %v414, %v414
      %v441 = vmul.f32 %v417, %v417
      %v442 = vadd.f32 %v434, %v435
      %v443 = vadd.f32 %v442, %v436
      %v444 = vadd.f32 %v443, %v437
      %v445 = vadd.f32 %v444, %v438
      %v446 = vadd.f32 %v445, %v439
      %v447 = vadd.f32 %v446, %v440
      %v448 = vadd.f32 %v447, %v441
      %v449 = vrot.slane %v448, 4
      %v450 = vadd.f32 %v448, %v449
      %v451 = vrot.slane %v450, 2
      %v452 = vadd.f32 %v450, %v451
      %v453 = vrot.slane %v452, 1
      %v454 = vadd.f32 %v452, %v453
      %455 = vst [vmem:[%s231] sm:$0x1] %v454
      %p456 = scmp.lt.s32.totalorder %s17, 1
      %s457 = scalar_select %p456, %s17, 1
      %s458 = scalar_lea.vmem %s4, %s457
      %p459 = scmp.lt.s32.totalorder %s17, 1
      %s460 = scalar_select %p459, %s17, 1
      %s461 = scalar_lea.vmem %s5, %s460
      // Predicated region
      $region37: #{bottleneck_forward.8} parent=35 // pred_check
        %p462 = pneg %p124
      $region38: #{bottleneck_forward.8} parent=35 // pred_check_branch
        %464 = sbr.rel (%p462) target = $region40
      $region39: #{bottleneck_forward.8} parent=35 // pred_region
        _
      $region40: #{bottleneck_forward.8} parent=35 // pred_fallthru
        _
      // Predicated region
      $region41: #{bottleneck_forward.8} parent=35 // pred_check
        %p465 = pneg %p150
      $region42: #{bottleneck_forward.8} parent=35 // pred_check_branch
        %467 = sbr.rel (%p465) target = $region44
      $region43: #{bottleneck_forward.8} parent=35 // pred_region
        _
      $region44: #{bottleneck_forward.8} parent=35 // pred_fallthru
        _
    $region36: #{bottleneck_forward.8} parent=5 // pred_fallthru
      _
    %p468 = scmp.le.s32.totalorder 2, %s12
    // Predicated region
    $region45: #{bottleneck_forward.8} parent=5 // pred_check
      %p469 = pneg %p468
    $region46: #{bottleneck_forward.8} parent=5 // pred_check_branch
      %471 = sbr.rel (%p469) target = $region48
    $region47: #{bottleneck_forward.8} parent=5 // pred_region
      %s472 = ssub.s32 %s12, 2
      // Predicated region
      $region49: #{bottleneck_forward.8} parent=47 // pred_check
        %p473 = pneg %p130
      $region50: #{bottleneck_forward.8} parent=47 // pred_check_branch
        %475 = sbr.rel (%p473) target = $region52
      $region51: #{bottleneck_forward.8} parent=47 // pred_region
        %p476 = scmp.lt.s32.totalorder %s18, 1
        %s477 = scalar_select %p476, %s18, 1
        %s478 = scalar_lea.vmem %s4, %s477
      $region52: #{bottleneck_forward.8} parent=47 // pred_fallthru
        _
      // Predicated region
      $region53: #{bottleneck_forward.8} parent=47 // pred_check
        %p479 = pneg %p156
      $region54: #{bottleneck_forward.8} parent=47 // pred_check_branch
        %481 = sbr.rel (%p479) target = $region56
      $region55: #{bottleneck_forward.8} parent=47 // pred_region
        %p482 = scmp.lt.s32.totalorder %s18, 1
        %s483 = scalar_select %p482, %s18, 1
        %s484 = scalar_lea.vmem %s5, %s483
      $region56: #{bottleneck_forward.8} parent=47 // pred_fallthru
        _
    $region48: #{bottleneck_forward.8} parent=5 // pred_fallthru
      _
  $region6: #{bottleneck_forward.8} parent=0 // loop_footer
    %s16 = sadd.s32 1, %s12
  $region7: #{bottleneck_forward.8} parent=0 // loop_footer_branch
    %11 = sbr.rel target = $region3
  $region8: #{bottleneck_forward.8} parent=0 // loop_exit
    _

// kernel: bottleneck_forward.9
$region0: #{bottleneck_forward.9}
  #allocation0 [shape = 'u32[]', space=smem, size = 0x4, offset = 0x4, fixed_abs, tag = 'smem constant byte address 0x4 - core index']
  #allocation1 [shape = 'u32[144,128]{1,0:T(1,128)}', space=vmem, size = 0x12000, scoped, tag = 'internal scratch']
  %s0 = inlined_call_operand.vmem [shape: bf16[128,128], index: 0, kind: input, shape index: {}]
  %s1 = inlined_call_operand.vmem [shape: bf16[128,128], index: 1, kind: input, shape index: {}]
  %s2 = inlined_call_operand.vmem [shape: bf16[128,128], index: 2, kind: input, shape index: {}]
  %s3 = inlined_call_operand.vmem [shape: bf16[128,128], index: 3, kind: input, shape index: {}]
  %s4 = inlined_call_operand.vmem [shape: f32[1,128], index: 4, kind: input, shape index: {}]
  %s5 = inlined_call_operand.vmem [shape: f32[1,128], index: 5, kind: input, shape index: {}]
  %s6 = inlined_call_operand.vmem [shape: f32[1,128], index: 6, kind: input, shape index: {}]
  %s7 = inlined_call_operand.vmem [shape: f32[1,128], index: 7, kind: input, shape index: {}]
  %s8 = inlined_call_operand.vmem [shape: f32[1,128], index: 8, kind: input, shape index: {}]
  %s9 = inlined_call_operand.hbm [shape: f32[128,128], index: 9, kind: output, shape index: {}]
  %s10 = sld [smem:[#allocation0]]
  $region69: #{bottleneck_forward.9} parent=0
    _
  %s12 = ssub.s32 1, %s10
  %s13 = scalar_select 0, %s12, %s10
  $region1: #{bottleneck_forward.9} parent=0
    #allocation2 [shape = 'u8[65536]{0}', space=vmem, size = 0x10000, scoped, tag = 'output window, operand 0']
    #allocation3 [shape = 's32[2]{0}', space=sflag, size = 0x8, scoped, tag = 'scoped memory for bottleneck_forward.9']
    %14 = vsyncpa [#allocation3], 0
    %s15 = scalar_lea.sflag [#allocation3], 1
    %16 = vsyncpa %s15, 0
    loop: start=0, step=1, limit=4
    $region2: #{bottleneck_forward.9} parent=1 // loop_pre_header
      _
    $region3: #{bottleneck_forward.9} parent=1 // loop_header
      %s18 = sphi 0, %s22
      %p19 = scmp.ge.s32.totalorder %s18, 4
      %s28 = sphi 0, %s30
      %s31 = sphi 0, %s28
      %s32 = sphi 0, %s31
      %s48 = sphi 0, %s32
      %s54 = sphi 0, %s56
      %s57 = sphi 0, %s54
      %s58 = sphi 0, %s57
      %s74 = sphi 0, %s58
      %s78 = sphi 0, %s78
      %s80 = sphi 0, %s78
      %s81 = sphi 0, %s80
      %s95 = sphi 0, %s81
      %s99 = sphi 0, %s99
      %s101 = sphi 0, %s99
      %s102 = sphi 0, %s101
      %s116 = sphi 0, %s102
      %s120 = sphi 0, %s120
      %s122 = sphi 0, %s120
      %s123 = sphi 0, %s122
      %s137 = sphi 0, %s123
      %s141 = sphi 0, %s141
      %s143 = sphi 0, %s141
      %s144 = sphi 0, %s143
      %s158 = sphi 0, %s144
      %s162 = sphi 0, %s162
      %s164 = sphi 0, %s162
      %s165 = sphi 0, %s164
      %s179 = sphi 0, %s165
      %s183 = sphi 0, %s183
      %s185 = sphi 0, %s183
      %s186 = sphi 0, %s185
      %s200 = sphi 0, %s186
      %s204 = sphi 0, %s204
      %s206 = sphi 0, %s204
      %s207 = sphi 0, %s206
      %s221 = sphi 0, %s207
      %s227 = sphi 0, %s229
      %s230 = sphi 0, %s227
      %s231 = sphi 0, %s230
      %s247 = sphi 0, %s231
    $region4: #{bottleneck_forward.9} parent=1 // loop_header_branch
      %21 = sbr.rel (%p19) target = $region8
    $region5: #{bottleneck_forward.9} parent=1 // loop_body
      %s23 = ssub.s32 %s18, 1
      %s24 = ssub.s32 %s18, 2
      %s25 = sadd.s32 %s18, 1
      %s26 = ssub.s32 %s18, %s25
      %p27 = scmp.eq.s32.totalorder %s26, 0
      %s29 = sadd.s32 %s28, 1
      %s30 = scalar_select %p27, %s28, %s29
      %p33 = pneg %p27
      %p34 = scmp.eq.s32.totalorder %s18, 1
      %p35 = por %p33, %p34
      %p36 = scmp.ne.s32.totalorder %s28, %s31
      %p37 = scmp.eq.s32.totalorder %s18, 0
      %p38 = por %p36, %p37
      %p39 = scmp.ne.s32.totalorder %s28, %s31
      %p40 = scmp.eq.s32.totalorder %s23, 1
      %p41 = por %p39, %p40
      %p42 = scmp.ne.s32.totalorder %s31, %s32
      %p43 = scmp.eq.s32.totalorder %s23, 0
      %p44 = por %p42, %p43
      %p45 = scmp.ne.s32.totalorder %s31, %s32
      %p46 = scmp.eq.s32.totalorder %s24, 1
      %p47 = por %p45, %p46
      %p49 = scmp.ne.s32.totalorder %s32, %s48
      %p50 = scmp.eq.s32.totalorder %s24, 0
      %p51 = por %p49, %p50
      %s52 = ssub.s32 %s18, %s25
      %p53 = scmp.eq.s32.totalorder %s52, 0
      %s55 = sadd.s32 %s54, 1
      %s56 = scalar_select %p53, %s54, %s55
      %p59 = pneg %p53
      %p60 = scmp.eq.s32.totalorder %s18, 1
      %p61 = por %p59, %p60
      %p62 = scmp.ne.s32.totalorder %s54, %s57
      %p63 = scmp.eq.s32.totalorder %s18, 0
      %p64 = por %p62, %p63
      %p65 = scmp.ne.s32.totalorder %s54, %s57
      %p66 = scmp.eq.s32.totalorder %s23, 1
      %p67 = por %p65, %p66
      %p68 = scmp.ne.s32.totalorder %s57, %s58
      %p69 = scmp.eq.s32.totalorder %s23, 0
      %p70 = por %p68, %p69
      %p71 = scmp.ne.s32.totalorder %s57, %s58
      %p72 = scmp.eq.s32.totalorder %s24, 1
      %p73 = por %p71, %p72
      %p75 = scmp.ne.s32.totalorder %s58, %s74
      %p76 = scmp.eq.s32.totalorder %s24, 0
      %p77 = por %p75, %p76
      %s79 = sadd.s32 %s78, 1
      %p82 = scmp.eq.s32.totalorder %s18, 1
      %p83 = scmp.ne.s32.totalorder %s78, %s80
      %p84 = scmp.eq.s32.totalorder %s18, 0
      %p85 = por %p83, %p84
      %p86 = scmp.ne.s32.totalorder %s78, %s80
      %p87 = scmp.eq.s32.totalorder %s23, 1
      %p88 = por %p86, %p87
      %p89 = scmp.ne.s32.totalorder %s80, %s81
      %p90 = scmp.eq.s32.totalorder %s23, 0
      %p91 = por %p89, %p90
      %p92 = scmp.ne.s32.totalorder %s80, %s81
      %p93 = scmp.eq.s32.totalorder %s24, 1
      %p94 = por %p92, %p93
      %p96 = scmp.ne.s32.totalorder %s81, %s95
      %p97 = scmp.eq.s32.totalorder %s24, 0
      %p98 = por %p96, %p97
      %s100 = sadd.s32 %s99, 1
      %p103 = scmp.eq.s32.totalorder %s18, 1
      %p104 = scmp.ne.s32.totalorder %s99, %s101
      %p105 = scmp.eq.s32.totalorder %s18, 0
      %p106 = por %p104, %p105
      %p107 = scmp.ne.s32.totalorder %s99, %s101
      %p108 = scmp.eq.s32.totalorder %s23, 1
      %p109 = por %p107, %p108
      %p110 = scmp.ne.s32.totalorder %s101, %s102
      %p111 = scmp.eq.s32.totalorder %s23, 0
      %p112 = por %p110, %p111
      %p113 = scmp.ne.s32.totalorder %s101, %s102
      %p114 = scmp.eq.s32.totalorder %s24, 1
      %p115 = por %p113, %p114
      %p117 = scmp.ne.s32.totalorder %s102, %s116
      %p118 = scmp.eq.s32.totalorder %s24, 0
      %p119 = por %p117, %p118
      %s121 = sadd.s32 %s120, 1
      %p124 = scmp.eq.s32.totalorder %s18, 1
      %p125 = scmp.ne.s32.totalorder %s120, %s122
      %p126 = scmp.eq.s32.totalorder %s18, 0
      %p127 = por %p125, %p126
      %p128 = scmp.ne.s32.totalorder %s120, %s122
      %p129 = scmp.eq.s32.totalorder %s23, 1
      %p130 = por %p128, %p129
      %p131 = scmp.ne.s32.totalorder %s122, %s123
      %p132 = scmp.eq.s32.totalorder %s23, 0
      %p133 = por %p131, %p132
      %p134 = scmp.ne.s32.totalorder %s122, %s123
      %p135 = scmp.eq.s32.totalorder %s24, 1
      %p136 = por %p134, %p135
      %p138 = scmp.ne.s32.totalorder %s123, %s137
      %p139 = scmp.eq.s32.totalorder %s24, 0
      %p140 = por %p138, %p139
      %s142 = sadd.s32 %s141, 1
      %p145 = scmp.eq.s32.totalorder %s18, 1
      %p146 = scmp.ne.s32.totalorder %s141, %s143
      %p147 = scmp.eq.s32.totalorder %s18, 0
      %p148 = por %p146, %p147
      %p149 = scmp.ne.s32.totalorder %s141, %s143
      %p150 = scmp.eq.s32.totalorder %s23, 1
      %p151 = por %p149, %p150
      %p152 = scmp.ne.s32.totalorder %s143, %s144
      %p153 = scmp.eq.s32.totalorder %s23, 0
      %p154 = por %p152, %p153
      %p155 = scmp.ne.s32.totalorder %s143, %s144
      %p156 = scmp.eq.s32.totalorder %s24, 1
      %p157 = por %p155, %p156
      %p159 = scmp.ne.s32.totalorder %s144, %s158
      %p160 = scmp.eq.s32.totalorder %s24, 0
      %p161 = por %p159, %p160
      %s163 = sadd.s32 %s162, 1
      %p166 = scmp.eq.s32.totalorder %s18, 1
      %p167 = scmp.ne.s32.totalorder %s162, %s164
      %p168 = scmp.eq.s32.totalorder %s18, 0
      %p169 = por %p167, %p168
      %p170 = scmp.ne.s32.totalorder %s162, %s164
      %p171 = scmp.eq.s32.totalorder %s23, 1
      %p172 = por %p170, %p171
      %p173 = scmp.ne.s32.totalorder %s164, %s165
      %p174 = scmp.eq.s32.totalorder %s23, 0
      %p175 = por %p173, %p174
      %p176 = scmp.ne.s32.totalorder %s164, %s165
      %p177 = scmp.eq.s32.totalorder %s24, 1
      %p178 = por %p176, %p177
      %p180 = scmp.ne.s32.totalorder %s165, %s179
      %p181 = scmp.eq.s32.totalorder %s24, 0
      %p182 = por %p180, %p181
      %s184 = sadd.s32 %s183, 1
      %p187 = scmp.eq.s32.totalorder %s18, 1
      %p188 = scmp.ne.s32.totalorder %s183, %s185
      %p189 = scmp.eq.s32.totalorder %s18, 0
      %p190 = por %p188, %p189
      %p191 = scmp.ne.s32.totalorder %s183, %s185
      %p192 = scmp.eq.s32.totalorder %s23, 1
      %p193 = por %p191, %p192
      %p194 = scmp.ne.s32.totalorder %s185, %s186
      %p195 = scmp.eq.s32.totalorder %s23, 0
      %p196 = por %p194, %p195
      %p197 = scmp.ne.s32.totalorder %s185, %s186
      %p198 = scmp.eq.s32.totalorder %s24, 1
      %p199 = por %p197, %p198
      %p201 = scmp.ne.s32.totalorder %s186, %s200
      %p202 = scmp.eq.s32.totalorder %s24, 0
      %p203 = por %p201, %p202
      %s205 = sadd.s32 %s204, 1
      %p208 = scmp.eq.s32.totalorder %s18, 1
      %p209 = scmp.ne.s32.totalorder %s204, %s206
      %p210 = scmp.eq.s32.totalorder %s18, 0
      %p211 = por %p209, %p210
      %p212 = scmp.ne.s32.totalorder %s204, %s206
      %p213 = scmp.eq.s32.totalorder %s23, 1
      %p214 = por %p212, %p213
      %p215 = scmp.ne.s32.totalorder %s206, %s207
      %p216 = scmp.eq.s32.totalorder %s23, 0
      %p217 = por %p215, %p216
      %p218 = scmp.ne.s32.totalorder %s206, %s207
      %p219 = scmp.eq.s32.totalorder %s24, 1
      %p220 = por %p218, %p219
      %p222 = scmp.ne.s32.totalorder %s207, %s221
      %p223 = scmp.eq.s32.totalorder %s24, 0
      %p224 = por %p222, %p223
      %s225 = ssub.s32 %s18, %s25
      %p226 = scmp.eq.s32.totalorder %s225, 0
      %s228 = sadd.s32 %s227, 1
      %s229 = scalar_select %p226, %s227, %s228
      %p232 = pneg %p226
      %p233 = scmp.eq.s32.totalorder %s18, 1
      %p234 = por %p232, %p233
      %p235 = scmp.ne.s32.totalorder %s227, %s230
      %p236 = scmp.eq.s32.totalorder %s18, 0
      %p237 = por %p235, %p236
      %p238 = scmp.ne.s32.totalorder %s227, %s230
      %p239 = scmp.eq.s32.totalorder %s23, 1
      %p240 = por %p238, %p239
      %p241 = scmp.ne.s32.totalorder %s230, %s231
      %p242 = scmp.eq.s32.totalorder %s23, 0
      %p243 = por %p241, %p242
      %p244 = scmp.ne.s32.totalorder %s230, %s231
      %p245 = scmp.eq.s32.totalorder %s24, 1
      %p246 = por %p244, %p245
      %p248 = scmp.ne.s32.totalorder %s231, %s247
      %p249 = scmp.eq.s32.totalorder %s24, 0
      %p250 = por %p248, %p249
      %p251 = scmp.le.s32.totalorder 1, %s18
      %p252 = scmp.lt.s32.totalorder %s18, 3
      %p253 = pnand %p251, %p252
      %p254 = pneg %p253
      // Predicated region
      $region9: #{bottleneck_forward.9} parent=5 // pred_check
        _
      $region10: #{bottleneck_forward.9} parent=5 // pred_check_branch
        %256 = sbr.rel (%p253) target = $region12
      $region11: #{bottleneck_forward.9} parent=5 // pred_region
        %s257 = ssub.s32 %s18, 1
        // Predicated region
        $region13: #{bottleneck_forward.9} parent=11 // pred_check
          %p258 = pneg %p91
        $region14: #{bottleneck_forward.9} parent=11 // pred_check_branch
          %260 = sbr.rel (%p258) target = $region16
        $region15: #{bottleneck_forward.9} parent=11 // pred_region
          _
        $region16: #{bottleneck_forward.9} parent=11 // pred_fallthru
          _
        // Predicated region
        $region17: #{bottleneck_forward.9} parent=11 // pred_check
          %p261 = pneg %p112
        $region18: #{bottleneck_forward.9} parent=11 // pred_check_branch
          %263 = sbr.rel (%p261) target = $region20
        $region19: #{bottleneck_forward.9} parent=11 // pred_region
          _
        $region20: #{bottleneck_forward.9} parent=11 // pred_fallthru
          _
        // Predicated region
        $region21: #{bottleneck_forward.9} parent=11 // pred_check
          %p264 = pneg %p133
        $region22: #{bottleneck_forward.9} parent=11 // pred_check_branch
          %266 = sbr.rel (%p264) target = $region24
        $region23: #{bottleneck_forward.9} parent=11 // pred_region
          _
        $region24: #{bottleneck_forward.9} parent=11 // pred_fallthru
          _
        // Predicated region
        $region25: #{bottleneck_forward.9} parent=11 // pred_check
          %p267 = pneg %p154
        $region26: #{bottleneck_forward.9} parent=11 // pred_check_branch
          %269 = sbr.rel (%p267) target = $region28
        $region27: #{bottleneck_forward.9} parent=11 // pred_region
          _
        $region28: #{bottleneck_forward.9} parent=11 // pred_fallthru
          _
        // Predicated region
        $region29: #{bottleneck_forward.9} parent=11 // pred_check
          %p270 = pneg %p175
        $region30: #{bottleneck_forward.9} parent=11 // pred_check_branch
          %272 = sbr.rel (%p270) target = $region32
        $region31: #{bottleneck_forward.9} parent=11 // pred_region
          _
        $region32: #{bottleneck_forward.9} parent=11 // pred_fallthru
          _
        // Predicated region
        $region33: #{bottleneck_forward.9} parent=11 // pred_check
          %p273 = pneg %p196
        $region34: #{bottleneck_forward.9} parent=11 // pred_check_branch
          %275 = sbr.rel (%p273) target = $region36
        $region35: #{bottleneck_forward.9} parent=11 // pred_region
          _
        $region36: #{bottleneck_forward.9} parent=11 // pred_fallthru
          _
        // Predicated region
        $region37: #{bottleneck_forward.9} parent=11 // pred_check
          %p276 = pneg %p217
        $region38: #{bottleneck_forward.9} parent=11 // pred_check_branch
          %278 = sbr.rel (%p276) target = $region40
        $region39: #{bottleneck_forward.9} parent=11 // pred_region
          _
        $region40: #{bottleneck_forward.9} parent=11 // pred_fallthru
          _
      $region12: #{bottleneck_forward.9} parent=5 // pred_fallthru
        _
      %p279 = scmp.lt.s32.totalorder %s18, 2
      // Predicated region
      $region41: #{bottleneck_forward.9} parent=5 // pred_check
        %p280 = pneg %p279
      $region42: #{bottleneck_forward.9} parent=5 // pred_check_branch
        %282 = sbr.rel (%p280) target = $region44
      $region43: #{bottleneck_forward.9} parent=5 // pred_region
        // Predicated region
        $region45: #{bottleneck_forward.9} parent=43 // pred_check
          %p283 = pneg %p38
        $region46: #{bottleneck_forward.9} parent=43 // pred_check_branch
          %285 = sbr.rel (%p283) target = $region48
        $region47: #{bottleneck_forward.9} parent=43 // pred_region
          %s286 = smul.u32 8, %s18
          %p287 = scmp.lt.s32.totalorder %s286, 15
          %s288 = scalar_select %p287, %s286, 15
          %s289 = smul.addr %s288, 4
          %s290 = scalar_lea.vmem %s0, %s289
          %s291 = smul.u32 8, %s18
        $region48: #{bottleneck_forward.9} parent=43 // pred_fallthru
          _
        // Predicated region
        $region49: #{bottleneck_forward.9} parent=43 // pred_check
          %p292 = pneg %p64
        $region50: #{bottleneck_forward.9} parent=43 // pred_check_branch
          %294 = sbr.rel (%p292) target = $region52
        $region51: #{bottleneck_forward.9} parent=43 // pred_region
          %s295 = smul.u32 8, %s18
          %p296 = scmp.lt.s32.totalorder %s295, 15
          %s297 = scalar_select %p296, %s295, 15
          %s298 = smul.addr %s297, 4
          %s299 = scalar_lea.vmem %s1, %s298
          %s300 = smul.u32 8, %s18
        $region52: #{bottleneck_forward.9} parent=43 // pred_fallthru
          _
      $region44: #{bottleneck_forward.9} parent=5 // pred_fallthru
        _
      %p301 = scmp.le.s32.totalorder 1, %s18
      %p302 = scmp.lt.s32.totalorder %s18, 3
      %p303 = pnand %p301, %p302
      %p304 = pneg %p303
      // Predicated region
      $region53: #{bottleneck_forward.9} parent=5 // pred_check
        _
      $region54: #{bottleneck_forward.9} parent=5 // pred_check_branch
        %306 = sbr.rel (%p303) target = $region56
      $region55: #{bottleneck_forward.9} parent=5 // pred_region
        %s307 = ssub.s32 %s18, 1
        %s308 = smul.u32 8, %s23
        %p309 = scmp.lt.s32.totalorder %s308, 15
        %s310 = scalar_select %p309, %s308, 15
        %s311 = smul.addr %s310, 4
        %s312 = scalar_lea.vmem %s0, %s311
        %p313 = pneg %p44
        %p314 = pneg %p41
        %s315 = smul.u32 8, %s23
        %p316 = scmp.lt.s32.totalorder %s315, 15
        %s317 = scalar_select %p316, %s315, 15
        %s318 = smul.addr %s317, 4
        %s319 = scalar_lea.vmem %s1, %s318
        %p320 = pneg %p70
        %p321 = pneg %p67
        %p322 = pneg %p91
        %p323 = pneg %p88
        %p324 = pneg %p112
        %p325 = pneg %p109
        %p326 = pneg %p133
        %p327 = pneg %p130
        %p328 = pneg %p154
        %p329 = pneg %p151
        %p330 = pneg %p175
        %p331 = pneg %p172
        %p332 = pneg %p196
        %p333 = pneg %p193
        %p334 = pneg %p217
        %p335 = pneg %p214
        %p336 = pneg %p243
        %p337 = pneg %p240
        %s338 = sand.u32 %s230, 1
        %s339 = scalar_lea.sflag [#allocation3], %s338
        %s340 = sand.u32 %s230, 1
        %s341 = smul.addr %s340, 64
        %s342 = scalar_lea.vmem [#allocation2], %s341
        %s343 = smul.u32 8, %s23
        %p344 = scmp.lt.s32.totalorder %s343, 15
        %s345 = scalar_select %p344, %s343, 15
        %s346 = smul.addr %s345, 4
        %s347 = scalar_lea.vmem %s0, %s346
        %s348 = smul.u32 8, %s23
        %s349 = smul.u32 8, %s23
        %p350 = scmp.lt.s32.totalorder %s349, 15
        %s351 = scalar_select %p350, %s349, 15
        %s352 = smul.addr %s351, 4
        %s353 = scalar_lea.vmem %s1, %s352
        %s354 = smul.u32 8, %s23
        %s355 = smul.u32 8, %s23
        %v357 = vld [vmem:[%s347] sm:$0xf]
        %v358 = vld [vmem:[%s347 + $0x4] sm:$0xf]
        %v359 = vld [vmem:[%s347 + $0x8] sm:$0xf]
        %v360 = vld [vmem:[%s347 + $0xc] sm:$0xf]
        %v361 = vld [vmem:[%s347 + $0x10] sm:$0xf]
        %v362 = vld [vmem:[%s347 + $0x14] sm:$0xf]
        %v363 = vld [vmem:[%s347 + $0x18] sm:$0xf]
        %v364 = vld [vmem:[%s347 + $0x1c] sm:$0xf]
        %v365 = vunpack.c.l.bf16 %v357
        %v366 = vunpack.c.l.bf16 %v358
        %v367 = vunpack.c.l.bf16 %v359
        %v368 = vunpack.c.l.bf16 %v360
        %v369 = vunpack.c.l.bf16 %v361
        %v370 = vunpack.c.l.bf16 %v362
        %v371 = vunpack.c.l.bf16 %v363
        %v372 = vunpack.c.l.bf16 %v364
        %v373 = vld [vmem:[%s4] sm:$0x1]
        %v375 = vlaneseq
        %v376 = vshrl.u32 %v375, 7
        %v377 = vsub.s32 0, %v376
        %v378 = vrot.slane %v373, %v377
        %v380 = vmul.f32 %v365, %v378
        %v381 = vmul.f32 %v366, %v378
        %v382 = vmul.f32 %v367, %v378
        %v383 = vmul.f32 %v368, %v378
        %v384 = vmul.f32 %v369, %v378
        %v385 = vmul.f32 %v370, %v378
        %v386 = vmul.f32 %v371, %v378
        %v387 = vmul.f32 %v372, %v378
        %v388 = vld [vmem:[%s5] sm:$0x1]
        %v390 = vlaneseq
        %v391 = vshrl.u32 %v390, 7
        %v392 = vsub.s32 0, %v391
        %v393 = vrot.slane %v388, %v392
        %v395 = vadd.f32 %v380, %v393
        %v396 = vadd.f32 %v381, %v393
        %v397 = vadd.f32 %v382, %v393
        %v398 = vadd.f32 %v383, %v393
        %v399 = vadd.f32 %v384, %v393
        %v400 = vadd.f32 %v385, %v393
        %v401 = vadd.f32 %v386, %v393
        %v402 = vadd.f32 %v387, %v393
        %v403 = vmax.f32 %v395, 0.0
        %v404 = vmax.f32 %v396, 0.0
        %v405 = vmax.f32 %v397, 0.0
        %v406 = vmax.f32 %v398, 0.0
        %v407 = vmax.f32 %v399, 0.0
        %v408 = vmax.f32 %v400, 0.0
        %v409 = vmax.f32 %v401, 0.0
        %v410 = vmax.f32 %v402, 0.0
        %v411 = vpack.c.bf16 %v404, %v403
        %v412 = vpack.c.bf16 %v406, %v405
        %v413 = vpack.c.bf16 %v408, %v407
        %v414 = vpack.c.bf16 %v410, %v409
        %v415 = vld [vmem:[%s2] sm:$0xf]
        %v416 = vld [vmem:[%s2 + $0x4] sm:$0xf]
        %v417 = vld [vmem:[%s2 + $0x8] sm:$0xf]
        %v418 = vld [vmem:[%s2 + $0xc] sm:$0xf]
        %v419 = vld [vmem:[%s2 + $0x10] sm:$0xf]
        %v420 = vld [vmem:[%s2 + $0x14] sm:$0xf]
        %v421 = vld [vmem:[%s2 + $0x18] sm:$0xf]
        %v422 = vld [vmem:[%s2 + $0x1c] sm:$0xf]
        %v423 = vld [vmem:[%s2 + $0x20] sm:$0xf]
        %v424 = vld [vmem:[%s2 + $0x24] sm:$0xf]
        %v425 = vld [vmem:[%s2 + $0x28] sm:$0xf]
        %v426 = vld [vmem:[%s2 + $0x2c] sm:$0xf]
        %v427 = vld [vmem:[%s2 + $0x30] sm:$0xf]
        %v428 = vld [vmem:[%s2 + $0x34] sm:$0xf]
        %v429 = vld [vmem:[%s2 + $0x38] sm:$0xf]
        %v430 = vld [vmem:[%s2 + $0x3c] sm:$0xf]
        %v447 = vunpack.c.l.b16 %v415
        %v448 = vunpack.c.l.b16 %v416
        %v449 = vunpack.c.l.b16 %v417
        %v450 = vunpack.c.l.b16 %v418
        %v451 = vunpack.c.l.b16 %v419
        %v452 = vunpack.c.l.b16 %v420
        %v453 = vunpack.c.l.b16 %v421
        %v454 = vunpack.c.l.b16 %v422
        %v455 = vunpack.c.l.b16 %v423
        %v456 = vunpack.c.l.b16 %v424
        %v457 = vunpack.c.l.b16 %v425
        %v458 = vunpack.c.l.b16 %v426
        %v459 = vunpack.c.l.b16 %v427
        %v460 = vunpack.c.l.b16 %v428
        %v461 = vunpack.c.l.b16 %v429
        %v462 = vunpack.c.l.b16 %v430
        %v463 = vpack.c.b16 %v448, %v447
        %v464 = vpack.c.b16 %v450, %v449
        %v465 = vpack.c.b16 %v452, %v451
        %v466 = vpack.c.b16 %v454, %v453
        %v467 = vpack.c.b16 %v456, %v455
        %v468 = vpack.c.b16 %v458, %v457
        %v469 = vpack.c.b16 %v460, %v459
        %v470 = vpack.c.b16 %v462, %v461
        %479 = vmatprep.subr.bf16.mxu0 0
        %480 = vmatpush1.bf16.msra.mxu0 %v470
        %481 = vmatprep.subr.bf16.mxu0 0
        %482 = vmatpush1.bf16.msra.mxu0 %v469
        %483 = vmatprep.subr.bf16.mxu0 0
        %484 = vmatpush1.bf16.msra.mxu0 %v468
        %485 = vmatprep.subr.bf16.mxu0 0
        %486 = vmatpush1.bf16.msra.mxu0 %v467
        %487 = vmatprep.subr.bf16.mxu0 0
        %488 = vmatpush1.bf16.msra.mxu0 %v466
        %489 = vmatprep.subr.bf16.mxu0 0
        %490 = vmatpush1.bf16.msra.mxu0 %v465
        %491 = vmatprep.subr.bf16.mxu0 0
        %492 = vmatpush1.bf16.msra.mxu0 %v464
        %493 = vmatprep.subr.bf16.mxu0 0
        %494 = vmatpush1.bf16.msra.mxu0 %v463
        %495 = vmatprep.subr.bf16.mxu0 0
        %496 = vmatpush2.bf16.msra.mxu0 0
        %497 = vmatprep.subr.bf16.mxu0 0
        %498 = vmatpush2.bf16.msra.mxu0 0
        %499 = vmatprep.subr.bf16.mxu0 0
        %500 = vmatpush2.bf16.msra.mxu0 0
        %501 = vmatprep.subr.bf16.mxu0 0
        %502 = vmatpush2.bf16.msra.mxu0 0
        %503 = vmatprep.subr.bf16.mxu0 0
        %504 = vmatpush2.bf16.msra.mxu0 0
        %505 = vmatprep.subr.bf16.mxu0 0
        %506 = vmatpush2.bf16.msra.mxu0 0
        %507 = vmatprep.subr.bf16.mxu0 0
        %508 = vmatpush2.bf16.msra.mxu0 0
        %509 = vmatprep.subr.bf16.mxu0 0
        %510 = vmatpush2.bf16.msra.mxu0 0
        %511 = vmatprep.mubr.bf16.mxu0 0
        %512 = vmatmul.mubr.bf16.gmra.mxu0 %v411
        %v513 = vpop.f32.mrf.mxu0
        %v514 = vadd.f32 0.0, %v513
        %v515 = vpop.f32.mrf.mxu0
        %v516 = vpop.f32.mrf.mxu0
        %v517 = vadd.f32 0.0, %v516
        %v518 = vpop.f32.mrf.mxu0
        %519 = vmatprep.mubr.bf16.mxu0 0
        %520 = vmatmul.mubr.bf16.gmra.mxu0 %v412
        %v521 = vpop.f32.mrf.mxu0
        %v522 = vadd.f32 0.0, %v521
        %v523 = vpop.f32.mrf.mxu0
        %v524 = vpop.f32.mrf.mxu0
        %v525 = vadd.f32 0.0, %v524
        %v526 = vpop.f32.mrf.mxu0
        %527 = vmatprep.mubr.bf16.mxu0 0
        %528 = vmatmul.mubr.bf16.gmra.mxu0 %v413
        %v529 = vpop.f32.mrf.mxu0
        %v530 = vadd.f32 0.0, %v529
        %v531 = vpop.f32.mrf.mxu0
        %v532 = vpop.f32.mrf.mxu0
        %v533 = vadd.f32 0.0, %v532
        %v534 = vpop.f32.mrf.mxu0
        %535 = vmatprep.mubr.bf16.mxu0 0
        %536 = vmatmul.mubr.bf16.gmra.mxu0 %v414
        %v537 = vpop.f32.mrf.mxu0
        %v538 = vadd.f32 0.0, %v537
        %v539 = vpop.f32.mrf.mxu0
        %v540 = vpop.f32.mrf.mxu0
        %v541 = vadd.f32 0.0, %v540
        %v542 = vpop.f32.mrf.mxu0
        %543 = vdwg.mxu0
        %v544 = vld [vmem:[%s6] sm:$0x1]
        %v546 = vlaneseq
        %v547 = vshrl.u32 %v546, 7
        %v548 = vsub.s32 0, %v547
        %v549 = vrot.slane %v544, %v548
        %v551 = vmul.f32 %v514, %v549
        %v552 = vmul.f32 %v517, %v549
        %v553 = vmul.f32 %v522, %v549
        %v554 = vmul.f32 %v525, %v549
        %v555 = vmul.f32 %v530, %v549
        %v556 = vmul.f32 %v533, %v549
        %v557 = vmul.f32 %v538, %v549
        %v558 = vmul.f32 %v541, %v549
        %v559 = vld [vmem:[%s7] sm:$0x1]
        %v561 = vlaneseq
        %v562 = vshrl.u32 %v561, 7
        %v563 = vsub.s32 0, %v562
        %v564 = vrot.slane %v559, %v563
        %v566 = vadd.f32 %v551, %v564
        %v567 = vadd.f32 %v552, %v564
        %v568 = vadd.f32 %v553, %v564
        %v569 = vadd.f32 %v554, %v564
        %v570 = vadd.f32 %v555, %v564
        %v571 = vadd.f32 %v556, %v564
        %v572 = vadd.f32 %v557, %v564
        %v573 = vadd.f32 %v558, %v564
        %v574 = vld [vmem:[%s353] sm:$0xf]
        %v575 = vld [vmem:[%s353 + $0x4] sm:$0xf]
        %v576 = vld [vmem:[%s353 + $0x8] sm:$0xf]
        %v577 = vld [vmem:[%s353 + $0xc] sm:$0xf]
        %v578 = vld [vmem:[%s353 + $0x10] sm:$0xf]
        %v579 = vld [vmem:[%s353 + $0x14] sm:$0xf]
        %v580 = vld [vmem:[%s353 + $0x18] sm:$0xf]
        %v581 = vld [vmem:[%s353 + $0x1c] sm:$0xf]
        %v582 = vld [vmem:[%s3] sm:$0xf]
        %v583 = vld [vmem:[%s3 + $0x4] sm:$0xf]
        %v584 = vld [vmem:[%s3 + $0x8] sm:$0xf]
        %v585 = vld [vmem:[%s3 + $0xc] sm:$0xf]
        %v586 = vld [vmem:[%s3 + $0x10] sm:$0xf]
        %v587 = vld [vmem:[%s3 + $0x14] sm:$0xf]
        %v588 = vld [vmem:[%s3 + $0x18] sm:$0xf]
        %v589 = vld [vmem:[%s3 + $0x1c] sm:$0xf]
        %v590 = vld [vmem:[%s3 + $0x20] sm:$0xf]
        %v591 = vld [vmem:[%s3 + $0x24] sm:$0xf]
        %v592 = vld [vmem:[%s3 + $0x28] sm:$0xf]
        %v593 = vld [vmem:[%s3 + $0x2c] sm:$0xf]
        %v594 = vld [vmem:[%s3 + $0x30] sm:$0xf]
        %v595 = vld [vmem:[%s3 + $0x34] sm:$0xf]
        %v596 = vld [vmem:[%s3 + $0x38] sm:$0xf]
        %v597 = vld [vmem:[%s3 + $0x3c] sm:$0xf]
        %v606 = vunpack.c.l.b16 %v574
        %v607 = vunpack.c.l.b16 %v575
        %v608 = vunpack.c.l.b16 %v576
        %v609 = vunpack.c.l.b16 %v577
        %v610 = vunpack.c.l.b16 %v578
        %v611 = vunpack.c.l.b16 %v579
        %v612 = vunpack.c.l.b16 %v580
        %v613 = vunpack.c.l.b16 %v581
        %v614 = vpack.c.b16 %v607, %v606
        %v615 = vpack.c.b16 %v609, %v608
        %v616 = vpack.c.b16 %v611, %v610
        %v617 = vpack.c.b16 %v613, %v612
        %v638 = vunpack.c.l.b16 %v582
        %v639 = vunpack.c.l.b16 %v583
        %v640 = vunpack.c.l.b16 %v584
        %v641 = vunpack.c.l.b16 %v585
        %v642 = vunpack.c.l.b16 %v586
        %v643 = vunpack.c.l.b16 %v587
        %v644 = vunpack.c.l.b16 %v588
        %v645 = vunpack.c.l.b16 %v589
        %v646 = vunpack.c.l.b16 %v590
        %v647 = vunpack.c.l.b16 %v591
        %v648 = vunpack.c.l.b16 %v592
        %v649 = vunpack.c.l.b16 %v593
        %v650 = vunpack.c.l.b16 %v594
        %v651 = vunpack.c.l.b16 %v595
        %v652 = vunpack.c.l.b16 %v596
        %v653 = vunpack.c.l.b16 %v597
        %v654 = vpack.c.b16 %v639, %v638
        %v655 = vpack.c.b16 %v641, %v640
        %v656 = vpack.c.b16 %v643, %v642
        %v657 = vpack.c.b16 %v645, %v644
        %v658 = vpack.c.b16 %v647, %v646
        %v659 = vpack.c.b16 %v649, %v648
        %v660 = vpack.c.b16 %v651, %v650
        %v661 = vpack.c.b16 %v653, %v652
        %670 = vmatprep.subr.bf16.mxu0 0
        %671 = vmatpush1.bf16.msra.mxu0 %v661
        %672 = vmatprep.subr.bf16.mxu0 0
        %673 = vmatpush1.bf16.msra.mxu0 %v660
        %674 = vmatprep.subr.bf16.mxu0 0
        %675 = vmatpush1.bf16.msra.mxu0 %v659
        %676 = vmatprep.subr.bf16.mxu0 0
        %677 = vmatpush1.bf16.msra.mxu0 %v658
        %678 = vmatprep.subr.bf16.mxu0 0
        %679 = vmatpush1.bf16.msra.mxu0 %v657
        %680 = vmatprep.subr.bf16.mxu0 0
        %681 = vmatpush1.bf16.msra.mxu0 %v656
        %682 = vmatprep.subr.bf16.mxu0 0
        %683 = vmatpush1.bf16.msra.mxu0 %v655
        %684 = vmatprep.subr.bf16.mxu0 0
        %685 = vmatpush1.bf16.msra.mxu0 %v654
        %686 = vmatprep.subr.bf16.mxu0 0
        %687 = vmatpush2.bf16.msra.mxu0 0
        %688 = vmatprep.subr.bf16.mxu0 0
        %689 = vmatpush2.bf16.msra.mxu0 0
        %690 = vmatprep.subr.bf16.mxu0 0
        %691 = vmatpush2.bf16.msra.mxu0 0
        %692 = vmatprep.subr.bf16.mxu0 0
        %693 = vmatpush2.bf16.msra.mxu0 0
        %694 = vmatprep.subr.bf16.mxu0 0
        %695 = vmatpush2.bf16.msra.mxu0 0
        %696 = vmatprep.subr.bf16.mxu0 0
        %697 = vmatpush2.bf16.msra.mxu0 0
        %698 = vmatprep.subr.bf16.mxu0 0
        %699 = vmatpush2.bf16.msra.mxu0 0
        %700 = vmatprep.subr.bf16.mxu0 0
        %701 = vmatpush2.bf16.msra.mxu0 0
        %702 = vmatprep.mubr.bf16.mxu0 0
        %703 = vmatmul.mubr.bf16.gmra.mxu0 %v614
        %v704 = vpop.f32.mrf.mxu0
        %v705 = vadd.f32 0.0, %v704
        %v706 = vpop.f32.mrf.mxu0
        %v707 = vpop.f32.mrf.mxu0
        %v708 = vadd.f32 0.0, %v707
        %v709 = vpop.f32.mrf.mxu0
        %710 = vmatprep.mubr.bf16.mxu0 0
        %711 = vmatmul.mubr.bf16.gmra.mxu0 %v615
        %v712 = vpop.f32.mrf.mxu0
        %v713 = vadd.f32 0.0, %v712
        %v714 = vpop.f32.mrf.mxu0
        %v715 = vpop.f32.mrf.mxu0
        %v716 = vadd.f32 0.0, %v715
        %v717 = vpop.f32.mrf.mxu0
        %718 = vmatprep.mubr.bf16.mxu0 0
        %719 = vmatmul.mubr.bf16.gmra.mxu0 %v616
        %v720 = vpop.f32.mrf.mxu0
        %v721 = vadd.f32 0.0, %v720
        %v722 = vpop.f32.mrf.mxu0
        %v723 = vpop.f32.mrf.mxu0
        %v724 = vadd.f32 0.0, %v723
        %v725 = vpop.f32.mrf.mxu0
        %726 = vmatprep.mubr.bf16.mxu0 0
        %727 = vmatmul.mubr.bf16.gmra.mxu0 %v617
        %v728 = vpop.f32.mrf.mxu0
        %v729 = vadd.f32 0.0, %v728
        %v730 = vpop.f32.mrf.mxu0
        %v731 = vpop.f32.mrf.mxu0
        %v732 = vadd.f32 0.0, %v731
        %v733 = vpop.f32.mrf.mxu0
        %734 = vdwg.mxu0
        %v735 = vadd.f32 %v566, %v705
        %v736 = vadd.f32 %v567, %v708
        %v737 = vadd.f32 %v568, %v713
        %v738 = vadd.f32 %v569, %v716
        %v739 = vadd.f32 %v570, %v721
        %v740 = vadd.f32 %v571, %v724
        %v741 = vadd.f32 %v572, %v729
        %v742 = vadd.f32 %v573, %v732
        %v743 = vld [vmem:[%s8] sm:$0x1]
        %v745 = vlaneseq
        %v746 = vshrl.u32 %v745, 7
        %v747 = vsub.s32 0, %v746
        %v748 = vrot.slane %v743, %v747
        %v750 = vadd.f32 %v735, %v748
        %v751 = vadd.f32 %v736, %v748
        %v752 = vadd.f32 %v737, %v748
        %v753 = vadd.f32 %v738, %v748
        %v754 = vadd.f32 %v739, %v748
        %v755 = vadd.f32 %v740, %v748
        %v756 = vadd.f32 %v741, %v748
        %v757 = vadd.f32 %v742, %v748
        %v758 = vmax.f32 %v750, 0.0
        %v759 = vmax.f32 %v751, 0.0
        %v760 = vmax.f32 %v752, 0.0
        %v761 = vmax.f32 %v753, 0.0
        %v762 = vmax.f32 %v754, 0.0
        %v763 = vmax.f32 %v755, 0.0
        %v764 = vmax.f32 %v756, 0.0
        %v765 = vmax.f32 %v757, 0.0
        %766 = vst [vmem:[%s342] sm:$0xff] %v758
        %767 = vst [vmem:[%s342 + $0x8] sm:$0xff] %v759
        %768 = vst [vmem:[%s342 + $0x10] sm:$0xff] %v760
        %769 = vst [vmem:[%s342 + $0x18] sm:$0xff] %v761
        %770 = vst [vmem:[%s342 + $0x20] sm:$0xff] %v762
        %771 = vst [vmem:[%s342 + $0x28] sm:$0xff] %v763
        %772 = vst [vmem:[%s342 + $0x30] sm:$0xff] %v764
        %773 = vst [vmem:[%s342 + $0x38] sm:$0xff] %v765
        %s774 = sand.u32 %s230, 1
        %s775 = scalar_lea.sflag [#allocation3], %s774
        %s776 = sand.u32 %s230, 1
        %s777 = smul.addr %s776, 64
        %s778 = scalar_lea.vmem [#allocation2], %s777
        // Predicated region
        $region57: #{bottleneck_forward.9} parent=55 // pred_check
          %p779 = pneg %p240
        $region58: #{bottleneck_forward.9} parent=55 // pred_check_branch
          %781 = sbr.rel (%p779) target = $region60
        $region59: #{bottleneck_forward.9} parent=55 // pred_region
          %s782 = smul.u32 8, %s23
          %s784 = ssub.s32 1024, 1024
          %785 = vsyncadd %s775, %s784
          %s786 = smul.addr %s782, 128
          %s787 = scalar_lea.hbm %s9, %s786
          %s788 = sshll.u32 %s778, 4
          %s789 = int_to_ptr.vmem [resolvable:$true] %s788
          %794 = dma.vmem_to_hbm [thread:$0]  %s789, 1024, %s787, %s775, 128, 128, 8
        $region60: #{bottleneck_forward.9} parent=55 // pred_fallthru
          _
      $region56: #{bottleneck_forward.9} parent=5 // pred_fallthru
        _
      %p795 = scmp.le.s32.totalorder 2, %s18
      // Predicated region
      $region61: #{bottleneck_forward.9} parent=5 // pred_check
        %p796 = pneg %p795
      $region62: #{bottleneck_forward.9} parent=5 // pred_check_branch
        %798 = sbr.rel (%p796) target = $region64
      $region63: #{bottleneck_forward.9} parent=5 // pred_region
        %s799 = ssub.s32 %s18, 2
        // Predicated region
        $region65: #{bottleneck_forward.9} parent=63 // pred_check
          %p800 = pneg %p246
        $region66: #{bottleneck_forward.9} parent=63 // pred_check_branch
          %802 = sbr.rel (%p800) target = $region68
        $region67: #{bottleneck_forward.9} parent=63 // pred_region
          %s803 = sand.u32 %s231, 1
          %s804 = scalar_lea.sflag [#allocation3], %s803
          %s805 = sand.u32 %s231, 1
          %s806 = smul.addr %s805, 64
          %s807 = scalar_lea.vmem [#allocation2], %s806
          %808 = dma.done %s804, 1024
        $region68: #{bottleneck_forward.9} parent=63 // pred_fallthru
          _
      $region64: #{bottleneck_forward.9} parent=5 // pred_fallthru
        _
    $region6: #{bottleneck_forward.9} parent=1 // loop_footer
      %s22 = sadd.s32 1, %s18
    $region7: #{bottleneck_forward.9} parent=1 // loop_footer_branch
      %17 = sbr.rel target = $region3
    $region8: #{bottleneck_forward.9} parent=1 // loop_exit
      _
    %809 = vsyncpa [#allocation3], 1
    %s810 = scalar_lea.sflag [#allocation3], 1
    %811 = vsyncpa %s810, 1

</llo_original>
